<compile_context>
chip_gen: v7x
topology: tpu7x:2x2x1
jax: 0.10.0
libtpu: 0.0.40
codegen_flags: <defaults>
</compile_context>

<pallas_src>
import numpy as np
import jax
import jax.numpy as jnp
from jax.experimental import pallas as pl
from jax.experimental.pallas import tpu as pltpu

_LAYERS = ("enc", "c5", "c6", "c7", "s4", "s5", "d1", "dt", "d3")
_LEAKY_SLOPE = 0.2


# --------------------------- in-kernel helpers ---------------------------

def _iota_mat(shape, fn):
    r = jax.lax.broadcasted_iota(jnp.int32, shape, 0)
    c = jax.lax.broadcasted_iota(jnp.int32, shape, 1)
    return fn(r, c).astype(jnp.float32)


def _pad_cols(t_in, pad):
    # (t_in, t_in+2*pad): (x @ M) zero-pads `pad` columns on each side of time.
    return _iota_mat((t_in, t_in + 2 * pad), lambda r, c: c == r + pad)


def _even_cols(t_in, t_out):
    # (x @ M)[:, i] = x[:, 2*i]
    return _iota_mat((t_in, t_out), lambda r, c: r == 2 * c)


def _odd_cols(t_in, t_out):
    # (x @ M)[:, i] = x[:, 2*i + 1]
    return _iota_mat((t_in, t_out), lambda r, c: r == 2 * c + 1)


def _repeat2_cols(t_in, t_out):
    # repeat_interleave(2) along time, truncated to t_out: (x @ M)[:, i] = x[:, i//2]
    return _iota_mat((t_in, t_out), lambda r, c: (c == 2 * r) | (c == 2 * r + 1))


def _stuff2_cols(t_in, t_out):
    # stride-2 zero stuffing: (x @ M)[:, 2*j] = x[:, j], odd columns are zero.
    return _iota_mat((t_in, t_out), lambda r, c: c == 2 * r)


def _conv_block(x, w_ref, p_ref, *, K, pad, act):
    """Conv1d(+bias) -> activation -> folded eval-mode BatchNorm on a (C, T) value.

    x     : (Cin, T_in) f32 value
    w_ref : (K*Cout, Cin) VMEM ref, row k*Cout+o holds tap-k weights W[o, :, k]
    p_ref : (Cout, 3) VMEM ref, columns = (conv bias, bn scale, bn shift)
    Returns (Cout, T_in + 2*pad - K + 1).
    """
    _, t_in = x.shape
    cout = p_ref.shape[0]
    t_conv = t_in + 2 * pad - K + 1

    xp = x if pad == 0 else jnp.dot(x, _pad_cols(t_in, pad),
                                    preferred_element_type=jnp.float32)
    # All K taps in a single MXU matmul; tap k lives in rows [k*Cout, (k+1)*Cout).
    y = jnp.dot(w_ref[...], xp, preferred_element_type=jnp.float32)   # (K*Cout, T_pad)

    acc = y[0:cout, 0:t_conv]
    for k in range(1, K):
        acc = acc + y[k * cout:(k + 1) * cout, k:k + t_conv]

    z = acc + p_ref[:, 0:1]                                   # conv bias
    if act == "leaky_relu":
        z = jnp.where(z >= 0.0, z, _LEAKY_SLOPE * z)
    elif act == "relu":
        z = jnp.maximum(z, 0.0)
    return z * p_ref[:, 1:2] + p_ref[:, 2:3]                  # BatchNorm1d (eval, folded)


# ------------------------------ fused kernel ------------------------------

def _fused_fwd_kernel(x_ref, *refs):
    (enc_w, enc_p, c5_w, c5_p, c6_w, c6_p, c7_w, c7_p,
     s4_w, s4_p, s5_w, s5_p, d1_w, d1_p, dt_w, dt_p, d3_w, d3_p,
     o_ref) = refs

    x = x_ref[...]                       # (Cin, T), batch dim squeezed by BlockSpec
    T = x.shape[1]
    T2 = T // 2
    T4 = (T2 + 2 * 2 - 5) // 2 + 1       # conv7 (K=5, stride=2, pad=2) output length

    # encoder: Conv1d(Cin,E,3,p=1) -> LeakyReLU(0.2) -> BN -> MaxPool1d(2,2)
    y = _conv_block(x, enc_w, enc_p, K=3, pad=1, act="leaky_relu")            # (E, T)
    fourth = jnp.maximum(
        jnp.dot(y, _even_cols(T, T2), preferred_element_type=jnp.float32),
        jnp.dot(y, _odd_cols(T, T2), preferred_element_type=jnp.float32))     # (E, T2)

    fifth = _conv_block(fourth, c5_w, c5_p, K=3, pad=1, act="leaky_relu")     # (E, T2)
    sixth = _conv_block(fifth, c6_w, c6_p, K=3, pad=1, act="leaky_relu")      # (E, T2)

    # conv7 (stride=2): full stride-1 conv, then keep even time columns
    y7 = _conv_block(sixth, c7_w, c7_p, K=5, pad=2, act="leaky_relu")         # (E, T2)
    seventh = jnp.dot(y7, _even_cols(T2, T4),
                      preferred_element_type=jnp.float32)                     # (E, T4)

    # upsample (repeat_interleave x2, truncated) + residual, then skip convs
    up = jnp.dot(seventh, _repeat2_cols(T4, T2),
                 preferred_element_type=jnp.float32)                          # (E, T2)
    sixth = _conv_block(up + sixth, s4_w, s4_p, K=3, pad=1, act="leaky_relu")
    fifth = _conv_block(sixth + fifth, s5_w, s5_p, K=3, pad=1, act="leaky_relu")

    # decoder: Conv -> ConvTranspose(== zero-stuff + flipped conv, pad=K-1-3=3) -> Conv
    d1 = _conv_block(fifth, d1_w, d1_p, K=3, pad=1, act="leaky_relu")         # (E, T2)
    d1_up = jnp.dot(d1, _stuff2_cols(T2, 2 * T2),
                    preferred_element_type=jnp.float32)                       # (E, T)
    d2 = _conv_block(d1_up, dt_w, dt_p, K=7, pad=3, act="relu")               # (Cout, T)
    out = _conv_block(d2, d3_w, d3_p, K=7, pad=3, act="none")                 # (Cout, T)

    o_ref[...] = out


def forward(params, x_nct):
    """x_nct: (B, Cin, T) float32, PyTorch NCW layout. Returns (B, Cout, T)."""
    B, Cin, T = x_nct.shape
    assert T % 4 == 0, "time length must be divisible by 4 (maxpool + stride-2 conv)"
    Cout = params["d3_p"].shape[0]

    args = [x_nct.astype(jnp.float32)]
    in_specs = [pl.BlockSpec((None, Cin, T), lambda b: (b, 0, 0))]
    for name in _LAYERS:
        w = params[name + "_w"]
        pk = params[name + "_p"]
        args += [w, pk]
        in_specs += [pl.BlockSpec(w.shape, lambda b: (0, 0)),
                     pl.BlockSpec(pk.shape, lambda b: (0, 0))]

    return pl.pallas_call(
        _fused_fwd_kernel,
        out_shape=jax.ShapeDtypeStruct((B, Cout, T), jnp.float32),
        grid=(B,),
        in_specs=in_specs,
        out_specs=pl.BlockSpec((None, Cout, T), lambda b: (b, 0, 0)),
        compiler_params=pltpu.CompilerParams(
            dimension_semantics=("parallel",)),
    )(*args)


# ---------------- deterministic parameter construction ----------------

def _init_conv(key, cout, cin, k):
    kw, kb = jax.random.split(key)
    bound = 1.0 / np.sqrt(cin * k)
    w = jax.random.uniform(kw, (cout, cin, k), jnp.float32, -bound, bound)
    b = jax.random.uniform(kb, (cout,), jnp.float32, -bound, bound)
    return w, b


def _init_bn(key, c, eps=1e-5):
    k1, k2, k3, k4 = jax.random.split(key, 4)
    gamma = 1.0 + 0.1 * jax.random.normal(k1, (c,), jnp.float32)
    beta = 0.1 * jax.random.normal(k2, (c,), jnp.float32)
    mean = 0.1 * jax.random.normal(k3, (c,), jnp.float32)
    var = jax.random.uniform(k4, (c,), jnp.float32, 0.5, 1.5)
    scale = gamma / jnp.sqrt(var + eps)
    shift = beta - mean * scale
    return scale, shift


def _conv_w_wide(w_oik):
    # PyTorch Conv1d weight (Cout, Cin, K) -> (K*Cout, Cin), row index k*Cout + o
    cout, cin, k = w_oik.shape
    return jnp.transpose(w_oik, (2, 0, 1)).reshape(k * cout, cin)


def _convT_w_wide(w_iok):
    # ConvTranspose1d weight (Cin, Cout, K): equivalent conv weight is
    # W[o, c, k] = Wt[c, o, K-1-k]; packed as (K*Cout, Cin), row k*Cout + o.
    cin, cout, k = w_iok.shape
    wf = w_iok[:, :, ::-1]
    return jnp.transpose(wf, (2, 1, 0)).reshape(k * cout, cin)


def init_params(key, Cin, Cout, E):
    keys = iter(jax.random.split(key, 32))
    p = {}

    def conv_bn(name, co, ci, k):
        w, b = _init_conv(next(keys), co, ci, k)
        s, t = _init_bn(next(keys), co)
        p[name + "_w"] = _conv_w_wide(w)
        p[name + "_p"] = jnp.stack([b, s, t], axis=1)          # (co, 3)

    conv_bn("enc", E, Cin, 3)   # encoder conv
    conv_bn("c5", E, E, 3)
    conv_bn("c6", E, E, 3)
    conv_bn("c7", E, E, 5)      # stride 2
    conv_bn("s4", E, E, 3)      # skip4
    conv_bn("s5", E, E, 3)      # skip5
    conv_bn("d1", E, E, 3)      # decoder first conv

    # ConvTranspose1d(E, Cout, 7, stride=2, padding=3, output_padding=1)
    kw, kb = jax.random.split(next(keys))
    bound = 1.0 / np.sqrt(E * 7)
    wt = jax.random.uniform(kw, (E, Cout, 7), jnp.float32, -bound, bound)
    bt = jax.random.uniform(kb, (Cout,), jnp.float32, -bound, bound)
    s, t = _init_bn(next(keys), Cout)
    p["dt_w"] = _convT_w_wide(wt)
    p["dt_p"] = jnp.stack([bt, s, t], axis=1)

    # final Conv1d(Cout, Cout, 7, padding=3): no activation / BN (scale=1, shift=0)
    w3, b3 = _init_conv(next(keys), Cout, Cout, 7)
    p["d3_w"] = _conv_w_wide(w3)
    p["d3_p"] = jnp.stack([b3, jnp.ones((Cout,), jnp.float32),
                           jnp.zeros((Cout,), jnp.float32)], axis=1)
    return p


if __name__ == "__main__":
    # feature_in=10, feature_out=12, default_size(embed)=32, batch=2, T=16
    B, Cin, Cout, T, E = 2, 10, 12, 16, 32
    key = jax.random.PRNGKey(0)
    kp, kx = jax.random.split(key)
    params = init_params(kp, Cin, Cout, E)
    x = jax.random.normal(kx, (B, Cin, T), dtype=jnp.float32)   # PyTorch NCW input

    fwd = jax.jit(forward)
    out = jax.block_until_ready(fwd(params, x))
    assert out.shape == (B, Cout, T), out.shape
    assert bool(jnp.all(jnp.isfinite(out)))
    print("KERNEL_OK")
</pallas_src>

<mosaic_0001>
module attributes {stable_mosaic.version = 11 : i64} {
  func.func @_fused_fwd_kernel(%arg0: i32, %arg1: memref<1x10x16xf32, #tpu.memory_space<vmem>>, %arg2: memref<96x10xf32, #tpu.memory_space<vmem>>, %arg3: memref<32x3xf32, #tpu.memory_space<vmem>>, %arg4: memref<96x32xf32, #tpu.memory_space<vmem>>, %arg5: memref<32x3xf32, #tpu.memory_space<vmem>>, %arg6: memref<96x32xf32, #tpu.memory_space<vmem>>, %arg7: memref<32x3xf32, #tpu.memory_space<vmem>>, %arg8: memref<160x32xf32, #tpu.memory_space<vmem>>, %arg9: memref<32x3xf32, #tpu.memory_space<vmem>>, %arg10: memref<96x32xf32, #tpu.memory_space<vmem>>, %arg11: memref<32x3xf32, #tpu.memory_space<vmem>>, %arg12: memref<96x32xf32, #tpu.memory_space<vmem>>, %arg13: memref<32x3xf32, #tpu.memory_space<vmem>>, %arg14: memref<96x32xf32, #tpu.memory_space<vmem>>, %arg15: memref<32x3xf32, #tpu.memory_space<vmem>>, %arg16: memref<84x32xf32, #tpu.memory_space<vmem>>, %arg17: memref<12x3xf32, #tpu.memory_space<vmem>>, %arg18: memref<84x12xf32, #tpu.memory_space<vmem>>, %arg19: memref<12x3xf32, #tpu.memory_space<vmem>>, %arg20: memref<1x12x16xf32, #tpu.memory_space<vmem>>) attributes {dimension_semantics = [#tpu.dimension_semantics<parallel>], iteration_bounds = array<i64: 2>, scalar_prefetch = 0 : i64, scratch_operands = 0 : i64, tpu.core_type = #tpu.core_type<tc>, window_params = [{transform_indices = @transform_0, window_bounds = array<i64: 1, 10, 16>}, {pipeline_mode = #tpu.pipeline_mode<synchronous>, transform_indices = @transform_1, window_bounds = array<i64: 96, 10>}, {pipeline_mode = #tpu.pipeline_mode<synchronous>, transform_indices = @transform_2, window_bounds = array<i64: 32, 3>}, {pipeline_mode = #tpu.pipeline_mode<synchronous>, transform_indices = @transform_3, window_bounds = array<i64: 96, 32>}, {pipeline_mode = #tpu.pipeline_mode<synchronous>, transform_indices = @transform_4, window_bounds = array<i64: 32, 3>}, {pipeline_mode = #tpu.pipeline_mode<synchronous>, transform_indices = @transform_5, window_bounds = array<i64: 96, 32>}, {pipeline_mode = #tpu.pipeline_mode<synchronous>, transform_indices = @transform_6, window_bounds = array<i64: 32, 3>}, {pipeline_mode = #tpu.pipeline_mode<synchronous>, transform_indices = @transform_7, window_bounds = array<i64: 160, 32>}, {pipeline_mode = #tpu.pipeline_mode<synchronous>, transform_indices = @transform_8, window_bounds = array<i64: 32, 3>}, {pipeline_mode = #tpu.pipeline_mode<synchronous>, transform_indices = @transform_9, window_bounds = array<i64: 96, 32>}, {pipeline_mode = #tpu.pipeline_mode<synchronous>, transform_indices = @transform_10, window_bounds = array<i64: 32, 3>}, {pipeline_mode = #tpu.pipeline_mode<synchronous>, transform_indices = @transform_11, window_bounds = array<i64: 96, 32>}, {pipeline_mode = #tpu.pipeline_mode<synchronous>, transform_indices = @transform_12, window_bounds = array<i64: 32, 3>}, {pipeline_mode = #tpu.pipeline_mode<synchronous>, transform_indices = @transform_13, window_bounds = array<i64: 96, 32>}, {pipeline_mode = #tpu.pipeline_mode<synchronous>, transform_indices = @transform_14, window_bounds = array<i64: 32, 3>}, {pipeline_mode = #tpu.pipeline_mode<synchronous>, transform_indices = @transform_15, window_bounds = array<i64: 84, 32>}, {pipeline_mode = #tpu.pipeline_mode<synchronous>, transform_indices = @transform_16, window_bounds = array<i64: 12, 3>}, {pipeline_mode = #tpu.pipeline_mode<synchronous>, transform_indices = @transform_17, window_bounds = array<i64: 84, 12>}, {pipeline_mode = #tpu.pipeline_mode<synchronous>, transform_indices = @transform_18, window_bounds = array<i64: 12, 3>}, {transform_indices = @transform_19, window_bounds = array<i64: 1, 12, 16>}]} {
    %c0 = arith.constant 0 : index
    %c0_0 = arith.constant 0 : index
    %c0_1 = arith.constant 0 : index
    %0 = vector.load %arg1[%c0, %c0_0, %c0_1] : memref<1x10x16xf32, #tpu.memory_space<vmem>>, vector<1x10x16xf32>
    %1 = vector.shape_cast %0 : vector<1x10x16xf32> to vector<10x16xf32>
    %2 = tpu.iota {dimensions = array<i32: 0>} : vector<16x18xi32>
    %3 = tpu.iota {dimensions = array<i32: 1>} : vector<16x18xi32>
    %c1_i32 = arith.constant 1 : i32
    %4 = vector.broadcast %c1_i32 : i32 to vector<16x18xi32>
    %5 = arith.addi %2, %4 : vector<16x18xi32>
    %6 = arith.cmpi eq, %3, %5 : vector<16x18xi32>
    %7 = arith.extui %6 : vector<16x18xi1> to vector<16x18xi32>
    %8 = arith.sitofp %7 : vector<16x18xi32> to vector<16x18xf32>
    %cst = arith.constant dense<0.000000e+00> : vector<10x18xf32>
    %9 = tpu.matmul %1, %8, %cst {dimension_numbers = #tpu.dot_dimension_numbers<[1], [0], [0], [1], [0, 0, 1, 1], [], []>} : vector<10x16xf32>, vector<16x18xf32>, vector<10x18xf32> -> vector<10x18xf32>
    %c0_2 = arith.constant 0 : index
    %c0_3 = arith.constant 0 : index
    %10 = vector.load %arg2[%c0_2, %c0_3] : memref<96x10xf32, #tpu.memory_space<vmem>>, vector<96x10xf32>
    %cst_4 = arith.constant dense<0.000000e+00> : vector<96x18xf32>
    %11 = tpu.matmul %10, %9, %cst_4 {dimension_numbers = #tpu.dot_dimension_numbers<[1], [0], [0], [1], [0, 0, 1, 1], [], []>} : vector<96x10xf32>, vector<10x18xf32>, vector<96x18xf32> -> vector<96x18xf32>
    %12 = vector.extract_strided_slice %11 {offsets = [0, 0], sizes = [32, 16], strides = [1, 1]} : vector<96x18xf32> to vector<32x16xf32>
    %13 = vector.extract_strided_slice %11 {offsets = [32, 1], sizes = [32, 16], strides = [1, 1]} : vector<96x18xf32> to vector<32x16xf32>
    %14 = arith.addf %12, %13 : vector<32x16xf32>
    %15 = vector.extract_strided_slice %11 {offsets = [64, 2], sizes = [32, 16], strides = [1, 1]} : vector<96x18xf32> to vector<32x16xf32>
    %16 = arith.addf %14, %15 : vector<32x16xf32>
    %c0_5 = arith.constant 0 : index
    %c0_6 = arith.constant 0 : index
    %17 = vector.load %arg3[%c0_5, %c0_6] : memref<32x3xf32, #tpu.memory_space<vmem>>, vector<32x1xf32>
    %18 = vector.broadcast %17 : vector<32x1xf32> to vector<32x16xf32>
    %19 = arith.addf %16, %18 : vector<32x16xf32>
    %cst_7 = arith.constant 0.000000e+00 : f32
    %20 = vector.broadcast %cst_7 : f32 to vector<32x16xf32>
    %21 = arith.cmpf oge, %19, %20 : vector<32x16xf32>
    %cst_8 = arith.constant 2.000000e-01 : f32
    %22 = vector.broadcast %cst_8 : f32 to vector<32x16xf32>
    %23 = arith.mulf %22, %19 : vector<32x16xf32>
    %24 = arith.select %21, %19, %23 : vector<32x16xi1>, vector<32x16xf32>
    %c0_9 = arith.constant 0 : index
    %c1 = arith.constant 1 : index
    %25 = vector.load %arg3[%c0_9, %c1] : memref<32x3xf32, #tpu.memory_space<vmem>>, vector<32x1xf32>
    %26 = vector.broadcast %25 : vector<32x1xf32> to vector<32x16xf32>
    %27 = arith.mulf %24, %26 : vector<32x16xf32>
    %c0_10 = arith.constant 0 : index
    %c2 = arith.constant 2 : index
    %28 = vector.load %arg3[%c0_10, %c2] : memref<32x3xf32, #tpu.memory_space<vmem>>, vector<32x1xf32>
    %29 = vector.broadcast %28 : vector<32x1xf32> to vector<32x16xf32>
    %30 = arith.addf %27, %29 : vector<32x16xf32>
    %31 = tpu.iota {dimensions = array<i32: 0>} : vector<16x8xi32>
    %32 = tpu.iota {dimensions = array<i32: 1>} : vector<16x8xi32>
    %c2_i32 = arith.constant 2 : i32
    %33 = vector.broadcast %c2_i32 : i32 to vector<16x8xi32>
    %34 = arith.muli %33, %32 : vector<16x8xi32>
    %35 = arith.cmpi eq, %31, %34 : vector<16x8xi32>
    %36 = arith.extui %35 : vector<16x8xi1> to vector<16x8xi32>
    %37 = arith.sitofp %36 : vector<16x8xi32> to vector<16x8xf32>
    %cst_11 = arith.constant dense<0.000000e+00> : vector<32x8xf32>
    %38 = tpu.matmul %30, %37, %cst_11 {dimension_numbers = #tpu.dot_dimension_numbers<[1], [0], [0], [1], [0, 0, 1, 1], [], []>} : vector<32x16xf32>, vector<16x8xf32>, vector<32x8xf32> -> vector<32x8xf32>
    %39 = tpu.iota {dimensions = array<i32: 0>} : vector<16x8xi32>
    %40 = tpu.iota {dimensions = array<i32: 1>} : vector<16x8xi32>
    %c2_i32_12 = arith.constant 2 : i32
    %41 = vector.broadcast %c2_i32_12 : i32 to vector<16x8xi32>
    %42 = arith.muli %41, %40 : vector<16x8xi32>
    %c1_i32_13 = arith.constant 1 : i32
    %43 = vector.broadcast %c1_i32_13 : i32 to vector<16x8xi32>
    %44 = arith.addi %42, %43 : vector<16x8xi32>
    %45 = arith.cmpi eq, %39, %44 : vector<16x8xi32>
    %46 = arith.extui %45 : vector<16x8xi1> to vector<16x8xi32>
    %47 = arith.sitofp %46 : vector<16x8xi32> to vector<16x8xf32>
    %cst_14 = arith.constant dense<0.000000e+00> : vector<32x8xf32>
    %48 = tpu.matmul %30, %47, %cst_14 {dimension_numbers = #tpu.dot_dimension_numbers<[1], [0], [0], [1], [0, 0, 1, 1], [], []>} : vector<32x16xf32>, vector<16x8xf32>, vector<32x8xf32> -> vector<32x8xf32>
    %49 = arith.maximumf %38, %48 : vector<32x8xf32>
    %50 = tpu.iota {dimensions = array<i32: 0>} : vector<8x10xi32>
    %51 = tpu.iota {dimensions = array<i32: 1>} : vector<8x10xi32>
    %c1_i32_15 = arith.constant 1 : i32
    %52 = vector.broadcast %c1_i32_15 : i32 to vector<8x10xi32>
    %53 = arith.addi %50, %52 : vector<8x10xi32>
    %54 = arith.cmpi eq, %51, %53 : vector<8x10xi32>
    %55 = arith.extui %54 : vector<8x10xi1> to vector<8x10xi32>
    %56 = arith.sitofp %55 : vector<8x10xi32> to vector<8x10xf32>
    %cst_16 = arith.constant dense<0.000000e+00> : vector<32x10xf32>
    %57 = tpu.matmul %49, %56, %cst_16 {dimension_numbers = #tpu.dot_dimension_numbers<[1], [0], [0], [1], [0, 0, 1, 1], [], []>} : vector<32x8xf32>, vector<8x10xf32>, vector<32x10xf32> -> vector<32x10xf32>
    %c0_17 = arith.constant 0 : index
    %c0_18 = arith.constant 0 : index
    %58 = vector.load %arg4[%c0_17, %c0_18] : memref<96x32xf32, #tpu.memory_space<vmem>>, vector<96x32xf32>
    %cst_19 = arith.constant dense<0.000000e+00> : vector<96x10xf32>
    %59 = tpu.matmul %58, %57, %cst_19 {dimension_numbers = #tpu.dot_dimension_numbers<[1], [0], [0], [1], [0, 0, 1, 1], [], []>} : vector<96x32xf32>, vector<32x10xf32>, vector<96x10xf32> -> vector<96x10xf32>
    %60 = vector.extract_strided_slice %59 {offsets = [0, 0], sizes = [32, 8], strides = [1, 1]} : vector<96x10xf32> to vector<32x8xf32>
    %61 = vector.extract_strided_slice %59 {offsets = [32, 1], sizes = [32, 8], strides = [1, 1]} : vector<96x10xf32> to vector<32x8xf32>
    %62 = arith.addf %60, %61 : vector<32x8xf32>
    %63 = vector.extract_strided_slice %59 {offsets = [64, 2], sizes = [32, 8], strides = [1, 1]} : vector<96x10xf32> to vector<32x8xf32>
    %64 = arith.addf %62, %63 : vector<32x8xf32>
    %c0_20 = arith.constant 0 : index
    %c0_21 = arith.constant 0 : index
    %65 = vector.load %arg5[%c0_20, %c0_21] : memref<32x3xf32, #tpu.memory_space<vmem>>, vector<32x1xf32>
    %66 = vector.broadcast %65 : vector<32x1xf32> to vector<32x8xf32>
    %67 = arith.addf %64, %66 : vector<32x8xf32>
    %cst_22 = arith.constant 0.000000e+00 : f32
    %68 = vector.broadcast %cst_22 : f32 to vector<32x8xf32>
    %69 = arith.cmpf oge, %67, %68 : vector<32x8xf32>
    %cst_23 = arith.constant 2.000000e-01 : f32
    %70 = vector.broadcast %cst_23 : f32 to vector<32x8xf32>
    %71 = arith.mulf %70, %67 : vector<32x8xf32>
    %72 = arith.select %69, %67, %71 : vector<32x8xi1>, vector<32x8xf32>
    %c0_24 = arith.constant 0 : index
    %c1_25 = arith.constant 1 : index
    %73 = vector.load %arg5[%c0_24, %c1_25] : memref<32x3xf32, #tpu.memory_space<vmem>>, vector<32x1xf32>
    %74 = vector.broadcast %73 : vector<32x1xf32> to vector<32x8xf32>
    %75 = arith.mulf %72, %74 : vector<32x8xf32>
    %c0_26 = arith.constant 0 : index
    %c2_27 = arith.constant 2 : index
    %76 = vector.load %arg5[%c0_26, %c2_27] : memref<32x3xf32, #tpu.memory_space<vmem>>, vector<32x1xf32>
    %77 = vector.broadcast %76 : vector<32x1xf32> to vector<32x8xf32>
    %78 = arith.addf %75, %77 : vector<32x8xf32>
    %79 = tpu.iota {dimensions = array<i32: 0>} : vector<8x10xi32>
    %80 = tpu.iota {dimensions = array<i32: 1>} : vector<8x10xi32>
    %c1_i32_28 = arith.constant 1 : i32
    %81 = vector.broadcast %c1_i32_28 : i32 to vector<8x10xi32>
    %82 = arith.addi %79, %81 : vector<8x10xi32>
    %83 = arith.cmpi eq, %80, %82 : vector<8x10xi32>
    %84 = arith.extui %83 : vector<8x10xi1> to vector<8x10xi32>
    %85 = arith.sitofp %84 : vector<8x10xi32> to vector<8x10xf32>
    %cst_29 = arith.constant dense<0.000000e+00> : vector<32x10xf32>
    %86 = tpu.matmul %78, %85, %cst_29 {dimension_numbers = #tpu.dot_dimension_numbers<[1], [0], [0], [1], [0, 0, 1, 1], [], []>} : vector<32x8xf32>, vector<8x10xf32>, vector<32x10xf32> -> vector<32x10xf32>
    %c0_30 = arith.constant 0 : index
    %c0_31 = arith.constant 0 : index
    %87 = vector.load %arg6[%c0_30, %c0_31] : memref<96x32xf32, #tpu.memory_space<vmem>>, vector<96x32xf32>
    %cst_32 = arith.constant dense<0.000000e+00> : vector<96x10xf32>
    %88 = tpu.matmul %87, %86, %cst_32 {dimension_numbers = #tpu.dot_dimension_numbers<[1], [0], [0], [1], [0, 0, 1, 1], [], []>} : vector<96x32xf32>, vector<32x10xf32>, vector<96x10xf32> -> vector<96x10xf32>
    %89 = vector.extract_strided_slice %88 {offsets = [0, 0], sizes = [32, 8], strides = [1, 1]} : vector<96x10xf32> to vector<32x8xf32>
    %90 = vector.extract_strided_slice %88 {offsets = [32, 1], sizes = [32, 8], strides = [1, 1]} : vector<96x10xf32> to vector<32x8xf32>
    %91 = arith.addf %89, %90 : vector<32x8xf32>
    %92 = vector.extract_strided_slice %88 {offsets = [64, 2], sizes = [32, 8], strides = [1, 1]} : vector<96x10xf32> to vector<32x8xf32>
    %93 = arith.addf %91, %92 : vector<32x8xf32>
    %c0_33 = arith.constant 0 : index
    %c0_34 = arith.constant 0 : index
    %94 = vector.load %arg7[%c0_33, %c0_34] : memref<32x3xf32, #tpu.memory_space<vmem>>, vector<32x1xf32>
    %95 = vector.broadcast %94 : vector<32x1xf32> to vector<32x8xf32>
    %96 = arith.addf %93, %95 : vector<32x8xf32>
    %cst_35 = arith.constant 0.000000e+00 : f32
    %97 = vector.broadcast %cst_35 : f32 to vector<32x8xf32>
    %98 = arith.cmpf oge, %96, %97 : vector<32x8xf32>
    %cst_36 = arith.constant 2.000000e-01 : f32
    %99 = vector.broadcast %cst_36 : f32 to vector<32x8xf32>
    %100 = arith.mulf %99, %96 : vector<32x8xf32>
    %101 = arith.select %98, %96, %100 : vector<32x8xi1>, vector<32x8xf32>
    %c0_37 = arith.constant 0 : index
    %c1_38 = arith.constant 1 : index
    %102 = vector.load %arg7[%c0_37, %c1_38] : memref<32x3xf32, #tpu.memory_space<vmem>>, vector<32x1xf32>
    %103 = vector.broadcast %102 : vector<32x1xf32> to vector<32x8xf32>
    %104 = arith.mulf %101, %103 : vector<32x8xf32>
    %c0_39 = arith.constant 0 : index
    %c2_40 = arith.constant 2 : index
    %105 = vector.load %arg7[%c0_39, %c2_40] : memref<32x3xf32, #tpu.memory_space<vmem>>, vector<32x1xf32>
    %106 = vector.broadcast %105 : vector<32x1xf32> to vector<32x8xf32>
    %107 = arith.addf %104, %106 : vector<32x8xf32>
    %108 = tpu.iota {dimensions = array<i32: 0>} : vector<8x12xi32>
    %109 = tpu.iota {dimensions = array<i32: 1>} : vector<8x12xi32>
    %c2_i32_41 = arith.constant 2 : i32
    %110 = vector.broadcast %c2_i32_41 : i32 to vector<8x12xi32>
    %111 = arith.addi %108, %110 : vector<8x12xi32>
    %112 = arith.cmpi eq, %109, %111 : vector<8x12xi32>
    %113 = arith.extui %112 : vector<8x12xi1> to vector<8x12xi32>
    %114 = arith.sitofp %113 : vector<8x12xi32> to vector<8x12xf32>
    %cst_42 = arith.constant dense<0.000000e+00> : vector<32x12xf32>
    %115 = tpu.matmul %107, %114, %cst_42 {dimension_numbers = #tpu.dot_dimension_numbers<[1], [0], [0], [1], [0, 0, 1, 1], [], []>} : vector<32x8xf32>, vector<8x12xf32>, vector<32x12xf32> -> vector<32x12xf32>
    %c0_43 = arith.constant 0 : index
    %c0_44 = arith.constant 0 : index
    %116 = vector.load %arg8[%c0_43, %c0_44] : memref<160x32xf32, #tpu.memory_space<vmem>>, vector<160x32xf32>
    %cst_45 = arith.constant dense<0.000000e+00> : vector<160x12xf32>
    %117 = tpu.matmul %116, %115, %cst_45 {dimension_numbers = #tpu.dot_dimension_numbers<[1], [0], [0], [1], [0, 0, 1, 1], [], []>} : vector<160x32xf32>, vector<32x12xf32>, vector<160x12xf32> -> vector<160x12xf32>
    %118 = vector.extract_strided_slice %117 {offsets = [0, 0], sizes = [32, 8], strides = [1, 1]} : vector<160x12xf32> to vector<32x8xf32>
    %119 = vector.extract_strided_slice %117 {offsets = [32, 1], sizes = [32, 8], strides = [1, 1]} : vector<160x12xf32> to vector<32x8xf32>
    %120 = arith.addf %118, %119 : vector<32x8xf32>
    %121 = vector.extract_strided_slice %117 {offsets = [64, 2], sizes = [32, 8], strides = [1, 1]} : vector<160x12xf32> to vector<32x8xf32>
    %122 = arith.addf %120, %121 : vector<32x8xf32>
    %123 = vector.extract_strided_slice %117 {offsets = [96, 3], sizes = [32, 8], strides = [1, 1]} : vector<160x12xf32> to vector<32x8xf32>
    %124 = arith.addf %122, %123 : vector<32x8xf32>
    %125 = vector.extract_strided_slice %117 {offsets = [128, 4], sizes = [32, 8], strides = [1, 1]} : vector<160x12xf32> to vector<32x8xf32>
    %126 = arith.addf %124, %125 : vector<32x8xf32>
    %c0_46 = arith.constant 0 : index
    %c0_47 = arith.constant 0 : index
    %127 = vector.load %arg9[%c0_46, %c0_47] : memref<32x3xf32, #tpu.memory_space<vmem>>, vector<32x1xf32>
    %128 = vector.broadcast %127 : vector<32x1xf32> to vector<32x8xf32>
    %129 = arith.addf %126, %128 : vector<32x8xf32>
    %cst_48 = arith.constant 0.000000e+00 : f32
    %130 = vector.broadcast %cst_48 : f32 to vector<32x8xf32>
    %131 = arith.cmpf oge, %129, %130 : vector<32x8xf32>
    %cst_49 = arith.constant 2.000000e-01 : f32
    %132 = vector.broadcast %cst_49 : f32 to vector<32x8xf32>
    %133 = arith.mulf %132, %129 : vector<32x8xf32>
    %134 = arith.select %131, %129, %133 : vector<32x8xi1>, vector<32x8xf32>
    %c0_50 = arith.constant 0 : index
    %c1_51 = arith.constant 1 : index
    %135 = vector.load %arg9[%c0_50, %c1_51] : memref<32x3xf32, #tpu.memory_space<vmem>>, vector<32x1xf32>
    %136 = vector.broadcast %135 : vector<32x1xf32> to vector<32x8xf32>
    %137 = arith.mulf %134, %136 : vector<32x8xf32>
    %c0_52 = arith.constant 0 : index
    %c2_53 = arith.constant 2 : index
    %138 = vector.load %arg9[%c0_52, %c2_53] : memref<32x3xf32, #tpu.memory_space<vmem>>, vector<32x1xf32>
    %139 = vector.broadcast %138 : vector<32x1xf32> to vector<32x8xf32>
    %140 = arith.addf %137, %139 : vector<32x8xf32>
    %141 = tpu.iota {dimensions = array<i32: 0>} : vector<8x4xi32>
    %142 = tpu.iota {dimensions = array<i32: 1>} : vector<8x4xi32>
    %c2_i32_54 = arith.constant 2 : i32
    %143 = vector.broadcast %c2_i32_54 : i32 to vector<8x4xi32>
    %144 = arith.muli %143, %142 : vector<8x4xi32>
    %145 = arith.cmpi eq, %141, %144 : vector<8x4xi32>
    %146 = arith.extui %145 : vector<8x4xi1> to vector<8x4xi32>
    %147 = arith.sitofp %146 : vector<8x4xi32> to vector<8x4xf32>
    %cst_55 = arith.constant dense<0.000000e+00> : vector<32x4xf32>
    %148 = tpu.matmul %140, %147, %cst_55 {dimension_numbers = #tpu.dot_dimension_numbers<[1], [0], [0], [1], [0, 0, 1, 1], [], []>} : vector<32x8xf32>, vector<8x4xf32>, vector<32x4xf32> -> vector<32x4xf32>
    %149 = tpu.iota {dimensions = array<i32: 0>} : vector<4x8xi32>
    %150 = tpu.iota {dimensions = array<i32: 1>} : vector<4x8xi32>
    %c2_i32_56 = arith.constant 2 : i32
    %151 = vector.broadcast %c2_i32_56 : i32 to vector<4x8xi32>
    %152 = arith.muli %151, %149 : vector<4x8xi32>
    %153 = arith.cmpi eq, %150, %152 : vector<4x8xi32>
    %c2_i32_57 = arith.constant 2 : i32
    %154 = vector.broadcast %c2_i32_57 : i32 to vector<4x8xi32>
    %155 = arith.muli %154, %149 : vector<4x8xi32>
    %c1_i32_58 = arith.constant 1 : i32
    %156 = vector.broadcast %c1_i32_58 : i32 to vector<4x8xi32>
    %157 = arith.addi %155, %156 : vector<4x8xi32>
    %158 = arith.cmpi eq, %150, %157 : vector<4x8xi32>
    %159 = arith.ori %153, %158 : vector<4x8xi1>
    %160 = arith.extui %159 : vector<4x8xi1> to vector<4x8xi32>
    %161 = arith.sitofp %160 : vector<4x8xi32> to vector<4x8xf32>
    %cst_59 = arith.constant dense<0.000000e+00> : vector<32x8xf32>
    %162 = tpu.matmul %148, %161, %cst_59 {dimension_numbers = #tpu.dot_dimension_numbers<[1], [0], [0], [1], [0, 0, 1, 1], [], []>} : vector<32x4xf32>, vector<4x8xf32>, vector<32x8xf32> -> vector<32x8xf32>
    %163 = arith.addf %162, %107 : vector<32x8xf32>
    %164 = tpu.iota {dimensions = array<i32: 0>} : vector<8x10xi32>
    %165 = tpu.iota {dimensions = array<i32: 1>} : vector<8x10xi32>
    %c1_i32_60 = arith.constant 1 : i32
    %166 = vector.broadcast %c1_i32_60 : i32 to vector<8x10xi32>
    %167 = arith.addi %164, %166 : vector<8x10xi32>
    %168 = arith.cmpi eq, %165, %167 : vector<8x10xi32>
    %169 = arith.extui %168 : vector<8x10xi1> to vector<8x10xi32>
    %170 = arith.sitofp %169 : vector<8x10xi32> to vector<8x10xf32>
    %cst_61 = arith.constant dense<0.000000e+00> : vector<32x10xf32>
    %171 = tpu.matmul %163, %170, %cst_61 {dimension_numbers = #tpu.dot_dimension_numbers<[1], [0], [0], [1], [0, 0, 1, 1], [], []>} : vector<32x8xf32>, vector<8x10xf32>, vector<32x10xf32> -> vector<32x10xf32>
    %c0_62 = arith.constant 0 : index
    %c0_63 = arith.constant 0 : index
    %172 = vector.load %arg10[%c0_62, %c0_63] : memref<96x32xf32, #tpu.memory_space<vmem>>, vector<96x32xf32>
    %cst_64 = arith.constant dense<0.000000e+00> : vector<96x10xf32>
    %173 = tpu.matmul %172, %171, %cst_64 {dimension_numbers = #tpu.dot_dimension_numbers<[1], [0], [0], [1], [0, 0, 1, 1], [], []>} : vector<96x32xf32>, vector<32x10xf32>, vector<96x10xf32> -> vector<96x10xf32>
    %174 = vector.extract_strided_slice %173 {offsets = [0, 0], sizes = [32, 8], strides = [1, 1]} : vector<96x10xf32> to vector<32x8xf32>
    %175 = vector.extract_strided_slice %173 {offsets = [32, 1], sizes = [32, 8], strides = [1, 1]} : vector<96x10xf32> to vector<32x8xf32>
    %176 = arith.addf %174, %175 : vector<32x8xf32>
    %177 = vector.extract_strided_slice %173 {offsets = [64, 2], sizes = [32, 8], strides = [1, 1]} : vector<96x10xf32> to vector<32x8xf32>
    %178 = arith.addf %176, %177 : vector<32x8xf32>
    %c0_65 = arith.constant 0 : index
    %c0_66 = arith.constant 0 : index
    %179 = vector.load %arg11[%c0_65, %c0_66] : memref<32x3xf32, #tpu.memory_space<vmem>>, vector<32x1xf32>
    %180 = vector.broadcast %179 : vector<32x1xf32> to vector<32x8xf32>
    %181 = arith.addf %178, %180 : vector<32x8xf32>
    %cst_67 = arith.constant 0.000000e+00 : f32
    %182 = vector.broadcast %cst_67 : f32 to vector<32x8xf32>
    %183 = arith.cmpf oge, %181, %182 : vector<32x8xf32>
    %cst_68 = arith.constant 2.000000e-01 : f32
    %184 = vector.broadcast %cst_68 : f32 to vector<32x8xf32>
    %185 = arith.mulf %184, %181 : vector<32x8xf32>
    %186 = arith.select %183, %181, %185 : vector<32x8xi1>, vector<32x8xf32>
    %c0_69 = arith.constant 0 : index
    %c1_70 = arith.constant 1 : index
    %187 = vector.load %arg11[%c0_69, %c1_70] : memref<32x3xf32, #tpu.memory_space<vmem>>, vector<32x1xf32>
    %188 = vector.broadcast %187 : vector<32x1xf32> to vector<32x8xf32>
    %189 = arith.mulf %186, %188 : vector<32x8xf32>
    %c0_71 = arith.constant 0 : index
    %c2_72 = arith.constant 2 : index
    %190 = vector.load %arg11[%c0_71, %c2_72] : memref<32x3xf32, #tpu.memory_space<vmem>>, vector<32x1xf32>
    %191 = vector.broadcast %190 : vector<32x1xf32> to vector<32x8xf32>
    %192 = arith.addf %189, %191 : vector<32x8xf32>
    %193 = arith.addf %192, %78 : vector<32x8xf32>
    %194 = tpu.iota {dimensions = array<i32: 0>} : vector<8x10xi32>
    %195 = tpu.iota {dimensions = array<i32: 1>} : vector<8x10xi32>
    %c1_i32_73 = arith.constant 1 : i32
    %196 = vector.broadcast %c1_i32_73 : i32 to vector<8x10xi32>
    %197 = arith.addi %194, %196 : vector<8x10xi32>
    %198 = arith.cmpi eq, %195, %197 : vector<8x10xi32>
    %199 = arith.extui %198 : vector<8x10xi1> to vector<8x10xi32>
    %200 = arith.sitofp %199 : vector<8x10xi32> to vector<8x10xf32>
    %cst_74 = arith.constant dense<0.000000e+00> : vector<32x10xf32>
    %201 = tpu.matmul %193, %200, %cst_74 {dimension_numbers = #tpu.dot_dimension_numbers<[1], [0], [0], [1], [0, 0, 1, 1], [], []>} : vector<32x8xf32>, vector<8x10xf32>, vector<32x10xf32> -> vector<32x10xf32>
    %c0_75 = arith.constant 0 : index
    %c0_76 = arith.constant 0 : index
    %202 = vector.load %arg12[%c0_75, %c0_76] : memref<96x32xf32, #tpu.memory_space<vmem>>, vector<96x32xf32>
    %cst_77 = arith.constant dense<0.000000e+00> : vector<96x10xf32>
    %203 = tpu.matmul %202, %201, %cst_77 {dimension_numbers = #tpu.dot_dimension_numbers<[1], [0], [0], [1], [0, 0, 1, 1], [], []>} : vector<96x32xf32>, vector<32x10xf32>, vector<96x10xf32> -> vector<96x10xf32>
    %204 = vector.extract_strided_slice %203 {offsets = [0, 0], sizes = [32, 8], strides = [1, 1]} : vector<96x10xf32> to vector<32x8xf32>
    %205 = vector.extract_strided_slice %203 {offsets = [32, 1], sizes = [32, 8], strides = [1, 1]} : vector<96x10xf32> to vector<32x8xf32>
    %206 = arith.addf %204, %205 : vector<32x8xf32>
    %207 = vector.extract_strided_slice %203 {offsets = [64, 2], sizes = [32, 8], strides = [1, 1]} : vector<96x10xf32> to vector<32x8xf32>
    %208 = arith.addf %206, %207 : vector<32x8xf32>
    %c0_78 = arith.constant 0 : index
    %c0_79 = arith.constant 0 : index
    %209 = vector.load %arg13[%c0_78, %c0_79] : memref<32x3xf32, #tpu.memory_space<vmem>>, vector<32x1xf32>
    %210 = vector.broadcast %209 : vector<32x1xf32> to vector<32x8xf32>
    %211 = arith.addf %208, %210 : vector<32x8xf32>
    %cst_80 = arith.constant 0.000000e+00 : f32
    %212 = vector.broadcast %cst_80 : f32 to vector<32x8xf32>
    %213 = arith.cmpf oge, %211, %212 : vector<32x8xf32>
    %cst_81 = arith.constant 2.000000e-01 : f32
    %214 = vector.broadcast %cst_81 : f32 to vector<32x8xf32>
    %215 = arith.mulf %214, %211 : vector<32x8xf32>
    %216 = arith.select %213, %211, %215 : vector<32x8xi1>, vector<32x8xf32>
    %c0_82 = arith.constant 0 : index
    %c1_83 = arith.constant 1 : index
    %217 = vector.load %arg13[%c0_82, %c1_83] : memref<32x3xf32, #tpu.memory_space<vmem>>, vector<32x1xf32>
    %218 = vector.broadcast %217 : vector<32x1xf32> to vector<32x8xf32>
    %219 = arith.mulf %216, %218 : vector<32x8xf32>
    %c0_84 = arith.constant 0 : index
    %c2_85 = arith.constant 2 : index
    %220 = vector.load %arg13[%c0_84, %c2_85] : memref<32x3xf32, #tpu.memory_space<vmem>>, vector<32x1xf32>
    %221 = vector.broadcast %220 : vector<32x1xf32> to vector<32x8xf32>
    %222 = arith.addf %219, %221 : vector<32x8xf32>
    %223 = tpu.iota {dimensions = array<i32: 0>} : vector<8x10xi32>
    %224 = tpu.iota {dimensions = array<i32: 1>} : vector<8x10xi32>
    %c1_i32_86 = arith.constant 1 : i32
    %225 = vector.broadcast %c1_i32_86 : i32 to vector<8x10xi32>
    %226 = arith.addi %223, %225 : vector<8x10xi32>
    %227 = arith.cmpi eq, %224, %226 : vector<8x10xi32>
    %228 = arith.extui %227 : vector<8x10xi1> to vector<8x10xi32>
    %229 = arith.sitofp %228 : vector<8x10xi32> to vector<8x10xf32>
    %cst_87 = arith.constant dense<0.000000e+00> : vector<32x10xf32>
    %230 = tpu.matmul %222, %229, %cst_87 {dimension_numbers = #tpu.dot_dimension_numbers<[1], [0], [0], [1], [0, 0, 1, 1], [], []>} : vector<32x8xf32>, vector<8x10xf32>, vector<32x10xf32> -> vector<32x10xf32>
    %c0_88 = arith.constant 0 : index
    %c0_89 = arith.constant 0 : index
    %231 = vector.load %arg14[%c0_88, %c0_89] : memref<96x32xf32, #tpu.memory_space<vmem>>, vector<96x32xf32>
    %cst_90 = arith.constant dense<0.000000e+00> : vector<96x10xf32>
    %232 = tpu.matmul %231, %230, %cst_90 {dimension_numbers = #tpu.dot_dimension_numbers<[1], [0], [0], [1], [0, 0, 1, 1], [], []>} : vector<96x32xf32>, vector<32x10xf32>, vector<96x10xf32> -> vector<96x10xf32>
    %233 = vector.extract_strided_slice %232 {offsets = [0, 0], sizes = [32, 8], strides = [1, 1]} : vector<96x10xf32> to vector<32x8xf32>
    %234 = vector.extract_strided_slice %232 {offsets = [32, 1], sizes = [32, 8], strides = [1, 1]} : vector<96x10xf32> to vector<32x8xf32>
    %235 = arith.addf %233, %234 : vector<32x8xf32>
    %236 = vector.extract_strided_slice %232 {offsets = [64, 2], sizes = [32, 8], strides = [1, 1]} : vector<96x10xf32> to vector<32x8xf32>
    %237 = arith.addf %235, %236 : vector<32x8xf32>
    %c0_91 = arith.constant 0 : index
    %c0_92 = arith.constant 0 : index
    %238 = vector.load %arg15[%c0_91, %c0_92] : memref<32x3xf32, #tpu.memory_space<vmem>>, vector<32x1xf32>
    %239 = vector.broadcast %238 : vector<32x1xf32> to vector<32x8xf32>
    %240 = arith.addf %237, %239 : vector<32x8xf32>
    %cst_93 = arith.constant 0.000000e+00 : f32
    %241 = vector.broadcast %cst_93 : f32 to vector<32x8xf32>
    %242 = arith.cmpf oge, %240, %241 : vector<32x8xf32>
    %cst_94 = arith.constant 2.000000e-01 : f32
    %243 = vector.broadcast %cst_94 : f32 to vector<32x8xf32>
    %244 = arith.mulf %243, %240 : vector<32x8xf32>
    %245 = arith.select %242, %240, %244 : vector<32x8xi1>, vector<32x8xf32>
    %c0_95 = arith.constant 0 : index
    %c1_96 = arith.constant 1 : index
    %246 = vector.load %arg15[%c0_95, %c1_96] : memref<32x3xf32, #tpu.memory_space<vmem>>, vector<32x1xf32>
    %247 = vector.broadcast %246 : vector<32x1xf32> to vector<32x8xf32>
    %248 = arith.mulf %245, %247 : vector<32x8xf32>
    %c0_97 = arith.constant 0 : index
    %c2_98 = arith.constant 2 : index
    %249 = vector.load %arg15[%c0_97, %c2_98] : memref<32x3xf32, #tpu.memory_space<vmem>>, vector<32x1xf32>
    %250 = vector.broadcast %249 : vector<32x1xf32> to vector<32x8xf32>
    %251 = arith.addf %248, %250 : vector<32x8xf32>
    %252 = tpu.iota {dimensions = array<i32: 0>} : vector<8x16xi32>
    %253 = tpu.iota {dimensions = array<i32: 1>} : vector<8x16xi32>
    %c2_i32_99 = arith.constant 2 : i32
    %254 = vector.broadcast %c2_i32_99 : i32 to vector<8x16xi32>
    %255 = arith.muli %254, %252 : vector<8x16xi32>
    %256 = arith.cmpi eq, %253, %255 : vector<8x16xi32>
    %257 = arith.extui %256 : vector<8x16xi1> to vector<8x16xi32>
    %258 = arith.sitofp %257 : vector<8x16xi32> to vector<8x16xf32>
    %cst_100 = arith.constant dense<0.000000e+00> : vector<32x16xf32>
    %259 = tpu.matmul %251, %258, %cst_100 {dimension_numbers = #tpu.dot_dimension_numbers<[1], [0], [0], [1], [0, 0, 1, 1], [], []>} : vector<32x8xf32>, vector<8x16xf32>, vector<32x16xf32> -> vector<32x16xf32>
    %260 = tpu.iota {dimensions = array<i32: 0>} : vector<16x22xi32>
    %261 = tpu.iota {dimensions = array<i32: 1>} : vector<16x22xi32>
    %c3_i32 = arith.constant 3 : i32
    %262 = vector.broadcast %c3_i32 : i32 to vector<16x22xi32>
    %263 = arith.addi %260, %262 : vector<16x22xi32>
    %264 = arith.cmpi eq, %261, %263 : vector<16x22xi32>
    %265 = arith.extui %264 : vector<16x22xi1> to vector<16x22xi32>
    %266 = arith.sitofp %265 : vector<16x22xi32> to vector<16x22xf32>
    %cst_101 = arith.constant dense<0.000000e+00> : vector<32x22xf32>
    %267 = tpu.matmul %259, %266, %cst_101 {dimension_numbers = #tpu.dot_dimension_numbers<[1], [0], [0], [1], [0, 0, 1, 1], [], []>} : vector<32x16xf32>, vector<16x22xf32>, vector<32x22xf32> -> vector<32x22xf32>
    %c0_102 = arith.constant 0 : index
    %c0_103 = arith.constant 0 : index
    %268 = vector.load %arg16[%c0_102, %c0_103] : memref<84x32xf32, #tpu.memory_space<vmem>>, vector<84x32xf32>
    %cst_104 = arith.constant dense<0.000000e+00> : vector<84x22xf32>
    %269 = tpu.matmul %268, %267, %cst_104 {dimension_numbers = #tpu.dot_dimension_numbers<[1], [0], [0], [1], [0, 0, 1, 1], [], []>} : vector<84x32xf32>, vector<32x22xf32>, vector<84x22xf32> -> vector<84x22xf32>
    %270 = vector.extract_strided_slice %269 {offsets = [0, 0], sizes = [12, 16], strides = [1, 1]} : vector<84x22xf32> to vector<12x16xf32>
    %271 = vector.extract_strided_slice %269 {offsets = [12, 1], sizes = [12, 16], strides = [1, 1]} : vector<84x22xf32> to vector<12x16xf32>
    %272 = arith.addf %270, %271 : vector<12x16xf32>
    %273 = vector.extract_strided_slice %269 {offsets = [24, 2], sizes = [12, 16], strides = [1, 1]} : vector<84x22xf32> to vector<12x16xf32>
    %274 = arith.addf %272, %273 : vector<12x16xf32>
    %275 = vector.extract_strided_slice %269 {offsets = [36, 3], sizes = [12, 16], strides = [1, 1]} : vector<84x22xf32> to vector<12x16xf32>
    %276 = arith.addf %274, %275 : vector<12x16xf32>
    %277 = vector.extract_strided_slice %269 {offsets = [48, 4], sizes = [12, 16], strides = [1, 1]} : vector<84x22xf32> to vector<12x16xf32>
    %278 = arith.addf %276, %277 : vector<12x16xf32>
    %279 = vector.extract_strided_slice %269 {offsets = [60, 5], sizes = [12, 16], strides = [1, 1]} : vector<84x22xf32> to vector<12x16xf32>
    %280 = arith.addf %278, %279 : vector<12x16xf32>
    %281 = vector.extract_strided_slice %269 {offsets = [72, 6], sizes = [12, 16], strides = [1, 1]} : vector<84x22xf32> to vector<12x16xf32>
    %282 = arith.addf %280, %281 : vector<12x16xf32>
    %c0_105 = arith.constant 0 : index
    %c0_106 = arith.constant 0 : index
    %283 = vector.load %arg17[%c0_105, %c0_106] : memref<12x3xf32, #tpu.memory_space<vmem>>, vector<12x1xf32>
    %284 = vector.broadcast %283 : vector<12x1xf32> to vector<12x16xf32>
    %285 = arith.addf %282, %284 : vector<12x16xf32>
    %cst_107 = arith.constant 0.000000e+00 : f32
    %286 = vector.broadcast %cst_107 : f32 to vector<12x16xf32>
    %287 = arith.maximumf %285, %286 : vector<12x16xf32>
    %c0_108 = arith.constant 0 : index
    %c1_109 = arith.constant 1 : index
    %288 = vector.load %arg17[%c0_108, %c1_109] : memref<12x3xf32, #tpu.memory_space<vmem>>, vector<12x1xf32>
    %289 = vector.broadcast %288 : vector<12x1xf32> to vector<12x16xf32>
    %290 = arith.mulf %287, %289 : vector<12x16xf32>
    %c0_110 = arith.constant 0 : index
    %c2_111 = arith.constant 2 : index
    %291 = vector.load %arg17[%c0_110, %c2_111] : memref<12x3xf32, #tpu.memory_space<vmem>>, vector<12x1xf32>
    %292 = vector.broadcast %291 : vector<12x1xf32> to vector<12x16xf32>
    %293 = arith.addf %290, %292 : vector<12x16xf32>
    %294 = tpu.iota {dimensions = array<i32: 0>} : vector<16x22xi32>
    %295 = tpu.iota {dimensions = array<i32: 1>} : vector<16x22xi32>
    %c3_i32_112 = arith.constant 3 : i32
    %296 = vector.broadcast %c3_i32_112 : i32 to vector<16x22xi32>
    %297 = arith.addi %294, %296 : vector<16x22xi32>
    %298 = arith.cmpi eq, %295, %297 : vector<16x22xi32>
    %299 = arith.extui %298 : vector<16x22xi1> to vector<16x22xi32>
    %300 = arith.sitofp %299 : vector<16x22xi32> to vector<16x22xf32>
    %cst_113 = arith.constant dense<0.000000e+00> : vector<12x22xf32>
    %301 = tpu.matmul %293, %300, %cst_113 {dimension_numbers = #tpu.dot_dimension_numbers<[1], [0], [0], [1], [0, 0, 1, 1], [], []>} : vector<12x16xf32>, vector<16x22xf32>, vector<12x22xf32> -> vector<12x22xf32>
    %c0_114 = arith.constant 0 : index
    %c0_115 = arith.constant 0 : index
    %302 = vector.load %arg18[%c0_114, %c0_115] : memref<84x12xf32, #tpu.memory_space<vmem>>, vector<84x12xf32>
    %cst_116 = arith.constant dense<0.000000e+00> : vector<84x22xf32>
    %303 = tpu.matmul %302, %301, %cst_116 {dimension_numbers = #tpu.dot_dimension_numbers<[1], [0], [0], [1], [0, 0, 1, 1], [], []>} : vector<84x12xf32>, vector<12x22xf32>, vector<84x22xf32> -> vector<84x22xf32>
    %304 = vector.extract_strided_slice %303 {offsets = [0, 0], sizes = [12, 16], strides = [1, 1]} : vector<84x22xf32> to vector<12x16xf32>
    %305 = vector.extract_strided_slice %303 {offsets = [12, 1], sizes = [12, 16], strides = [1, 1]} : vector<84x22xf32> to vector<12x16xf32>
    %306 = arith.addf %304, %305 : vector<12x16xf32>
    %307 = vector.extract_strided_slice %303 {offsets = [24, 2], sizes = [12, 16], strides = [1, 1]} : vector<84x22xf32> to vector<12x16xf32>
    %308 = arith.addf %306, %307 : vector<12x16xf32>
    %309 = vector.extract_strided_slice %303 {offsets = [36, 3], sizes = [12, 16], strides = [1, 1]} : vector<84x22xf32> to vector<12x16xf32>
    %310 = arith.addf %308, %309 : vector<12x16xf32>
    %311 = vector.extract_strided_slice %303 {offsets = [48, 4], sizes = [12, 16], strides = [1, 1]} : vector<84x22xf32> to vector<12x16xf32>
    %312 = arith.addf %310, %311 : vector<12x16xf32>
    %313 = vector.extract_strided_slice %303 {offsets = [60, 5], sizes = [12, 16], strides = [1, 1]} : vector<84x22xf32> to vector<12x16xf32>
    %314 = arith.addf %312, %313 : vector<12x16xf32>
    %315 = vector.extract_strided_slice %303 {offsets = [72, 6], sizes = [12, 16], strides = [1, 1]} : vector<84x22xf32> to vector<12x16xf32>
    %316 = arith.addf %314, %315 : vector<12x16xf32>
    %c0_117 = arith.constant 0 : index
    %c0_118 = arith.constant 0 : index
    %317 = vector.load %arg19[%c0_117, %c0_118] : memref<12x3xf32, #tpu.memory_space<vmem>>, vector<12x1xf32>
    %318 = vector.broadcast %317 : vector<12x1xf32> to vector<12x16xf32>
    %319 = arith.addf %316, %318 : vector<12x16xf32>
    %c0_119 = arith.constant 0 : index
    %c1_120 = arith.constant 1 : index
    %320 = vector.load %arg19[%c0_119, %c1_120] : memref<12x3xf32, #tpu.memory_space<vmem>>, vector<12x1xf32>
    %321 = vector.broadcast %320 : vector<12x1xf32> to vector<12x16xf32>
    %322 = arith.mulf %319, %321 : vector<12x16xf32>
    %c0_121 = arith.constant 0 : index
    %c2_122 = arith.constant 2 : index
    %323 = vector.load %arg19[%c0_121, %c2_122] : memref<12x3xf32, #tpu.memory_space<vmem>>, vector<12x1xf32>
    %324 = vector.broadcast %323 : vector<12x1xf32> to vector<12x16xf32>
    %325 = arith.addf %322, %324 : vector<12x16xf32>
    %c0_123 = arith.constant 0 : index
    %c0_124 = arith.constant 0 : index
    %c0_125 = arith.constant 0 : index
    %326 = vector.load %arg20[%c0_123, %c0_124, %c0_125] : memref<1x12x16xf32, #tpu.memory_space<vmem>>, vector<1x12x16xf32>
    %327 = vector.shape_cast %326 : vector<1x12x16xf32> to vector<12x16xf32>
    %328 = vector.shape_cast %325 : vector<12x16xf32> to vector<1x12x16xf32>
    tpu.vector_store %arg20[%c0_123, %c0_124, %c0_125], %328 {strides = array<i32>} : memref<1x12x16xf32, #tpu.memory_space<vmem>>, vector<1x12x16xf32>,
    return
  }
  func.func @transform_0(%arg0: i32) -> (i32, i32, i32) {
    %c0_i32 = arith.constant 0 : i32
    %c0_i32_0 = arith.constant 0 : i32
    %c0_i32_1 = arith.constant 0 : i32
    return %arg0, %c0_i32, %c0_i32_0 : i32, i32, i32
  }
  func.func @transform_1(%arg0: i32) -> (i32, i32) {
    %c0_i32 = arith.constant 0 : i32
    %c0_i32_0 = arith.constant 0 : i32
    %c0_i32_1 = arith.constant 0 : i32
    return %c0_i32, %c0_i32_0 : i32, i32
  }
  func.func @transform_2(%arg0: i32) -> (i32, i32) {
    %c0_i32 = arith.constant 0 : i32
    %c0_i32_0 = arith.constant 0 : i32
    %c0_i32_1 = arith.constant 0 : i32
    return %c0_i32, %c0_i32_0 : i32, i32
  }
  func.func @transform_3(%arg0: i32) -> (i32, i32) {
    %c0_i32 = arith.constant 0 : i32
    %c0_i32_0 = arith.constant 0 : i32
    %c0_i32_1 = arith.constant 0 : i32
    return %c0_i32, %c0_i32_0 : i32, i32
  }
  func.func @transform_4(%arg0: i32) -> (i32, i32) {
    %c0_i32 = arith.constant 0 : i32
    %c0_i32_0 = arith.constant 0 : i32
    %c0_i32_1 = arith.constant 0 : i32
    return %c0_i32, %c0_i32_0 : i32, i32
  }
  func.func @transform_5(%arg0: i32) -> (i32, i32) {
    %c0_i32 = arith.constant 0 : i32
    %c0_i32_0 = arith.constant 0 : i32
    %c0_i32_1 = arith.constant 0 : i32
    return %c0_i32, %c0_i32_0 : i32, i32
  }
  func.func @transform_6(%arg0: i32) -> (i32, i32) {
    %c0_i32 = arith.constant 0 : i32
    %c0_i32_0 = arith.constant 0 : i32
    %c0_i32_1 = arith.constant 0 : i32
    return %c0_i32, %c0_i32_0 : i32, i32
  }
  func.func @transform_7(%arg0: i32) -> (i32, i32) {
    %c0_i32 = arith.constant 0 : i32
    %c0_i32_0 = arith.constant 0 : i32
    %c0_i32_1 = arith.constant 0 : i32
    return %c0_i32, %c0_i32_0 : i32, i32
  }
  func.func @transform_8(%arg0: i32) -> (i32, i32) {
    %c0_i32 = arith.constant 0 : i32
    %c0_i32_0 = arith.constant 0 : i32
    %c0_i32_1 = arith.constant 0 : i32
    return %c0_i32, %c0_i32_0 : i32, i32
  }
  func.func @transform_9(%arg0: i32) -> (i32, i32) {
    %c0_i32 = arith.constant 0 : i32
    %c0_i32_0 = arith.constant 0 : i32
    %c0_i32_1 = arith.constant 0 : i32
    return %c0_i32, %c0_i32_0 : i32, i32
  }
  func.func @transform_10(%arg0: i32) -> (i32, i32) {
    %c0_i32 = arith.constant 0 : i32
    %c0_i32_0 = arith.constant 0 : i32
    %c0_i32_1 = arith.constant 0 : i32
    return %c0_i32, %c0_i32_0 : i32, i32
  }
  func.func @transform_11(%arg0: i32) -> (i32, i32) {
    %c0_i32 = arith.constant 0 : i32
    %c0_i32_0 = arith.constant 0 : i32
    %c0_i32_1 = arith.constant 0 : i32
    return %c0_i32, %c0_i32_0 : i32, i32
  }
  func.func @transform_12(%arg0: i32) -> (i32, i32) {
    %c0_i32 = arith.constant 0 : i32
    %c0_i32_0 = arith.constant 0 : i32
    %c0_i32_1 = arith.constant 0 : i32
    return %c0_i32, %c0_i32_0 : i32, i32
  }
  func.func @transform_13(%arg0: i32) -> (i32, i32) {
    %c0_i32 = arith.constant 0 : i32
    %c0_i32_0 = arith.constant 0 : i32
    %c0_i32_1 = arith.constant 0 : i32
    return %c0_i32, %c0_i32_0 : i32, i32
  }
  func.func @transform_14(%arg0: i32) -> (i32, i32) {
    %c0_i32 = arith.constant 0 : i32
    %c0_i32_0 = arith.constant 0 : i32
    %c0_i32_1 = arith.constant 0 : i32
    return %c0_i32, %c0_i32_0 : i32, i32
  }
  func.func @transform_15(%arg0: i32) -> (i32, i32) {
    %c0_i32 = arith.constant 0 : i32
    %c0_i32_0 = arith.constant 0 : i32
    %c0_i32_1 = arith.constant 0 : i32
    return %c0_i32, %c0_i32_0 : i32, i32
  }
  func.func @transform_16(%arg0: i32) -> (i32, i32) {
    %c0_i32 = arith.constant 0 : i32
    %c0_i32_0 = arith.constant 0 : i32
    %c0_i32_1 = arith.constant 0 : i32
    return %c0_i32, %c0_i32_0 : i32, i32
  }
  func.func @transform_17(%arg0: i32) -> (i32, i32) {
    %c0_i32 = arith.constant 0 : i32
    %c0_i32_0 = arith.constant 0 : i32
    %c0_i32_1 = arith.constant 0 : i32
    return %c0_i32, %c0_i32_0 : i32, i32
  }
  func.func @transform_18(%arg0: i32) -> (i32, i32) {
    %c0_i32 = arith.constant 0 : i32
    %c0_i32_0 = arith.constant 0 : i32
    %c0_i32_1 = arith.constant 0 : i32
    return %c0_i32, %c0_i32_0 : i32, i32
  }
  func.func @transform_19(%arg0: i32) -> (i32, i32, i32) {
    %c0_i32 = arith.constant 0 : i32
    %c0_i32_0 = arith.constant 0 : i32
    %c0_i32_1 = arith.constant 0 : i32
    return %arg0, %c0_i32, %c0_i32_0 : i32, i32, i32
  }
}

</mosaic_0001>

<llo_original>
// kernel: forward.1
$region0: #{forward.1}
  #allocation0 [shape = 'u32[]', space=smem, size = 0x4, offset = 0x4, fixed_abs, tag = 'smem constant byte address 0x4 - core index']
  #allocation1 [shape = 'u32[144,128]{1,0:T(1,128)}', space=vmem, size = 0x12000, scoped, tag = 'internal scratch']
  %s0 = inlined_call_operand.vmem [shape: f32[2,10,16], index: 0, kind: input, shape index: {}]
  %s1 = inlined_call_operand.vmem [shape: f32[96,10], index: 1, kind: input, shape index: {}]
  %s2 = inlined_call_operand.vmem [shape: f32[32,3], index: 2, kind: input, shape index: {}]
  %s3 = inlined_call_operand.vmem [shape: f32[96,32], index: 3, kind: input, shape index: {}]
  %s4 = inlined_call_operand.vmem [shape: f32[32,3], index: 4, kind: input, shape index: {}]
  %s5 = inlined_call_operand.vmem [shape: f32[96,32], index: 5, kind: input, shape index: {}]
  %s6 = inlined_call_operand.vmem [shape: f32[32,3], index: 6, kind: input, shape index: {}]
  %s7 = inlined_call_operand.vmem [shape: f32[160,32], index: 7, kind: input, shape index: {}]
  %s8 = inlined_call_operand.vmem [shape: f32[32,3], index: 8, kind: input, shape index: {}]
  %s9 = inlined_call_operand.vmem [shape: f32[96,32], index: 9, kind: input, shape index: {}]
  %s10 = inlined_call_operand.vmem [shape: f32[32,3], index: 10, kind: input, shape index: {}]
  %s11 = inlined_call_operand.vmem [shape: f32[96,32], index: 11, kind: input, shape index: {}]
  %s12 = inlined_call_operand.vmem [shape: f32[32,3], index: 12, kind: input, shape index: {}]
  %s13 = inlined_call_operand.vmem [shape: f32[96,32], index: 13, kind: input, shape index: {}]
  %s14 = inlined_call_operand.vmem [shape: f32[32,3], index: 14, kind: input, shape index: {}]
  %s15 = inlined_call_operand.vmem [shape: f32[84,32], index: 15, kind: input, shape index: {}]
  %s16 = inlined_call_operand.vmem [shape: f32[12,3], index: 16, kind: input, shape index: {}]
  %s17 = inlined_call_operand.vmem [shape: f32[84,12], index: 17, kind: input, shape index: {}]
  %s18 = inlined_call_operand.vmem [shape: f32[12,3], index: 18, kind: input, shape index: {}]
  %s19 = inlined_call_operand.vmem [shape: f32[2,12,16], index: 19, kind: output, shape index: {}]
  %s20 = sld [smem:[#allocation0]]
  $region109: #{forward.1} parent=0
    _
  %s22 = ssub.s32 1, %s20
  %s23 = scalar_select 0, %s22, %s20
  loop: start=0, step=1, limit=4
  $region2: #{forward.1} parent=0 // loop_pre_header
    _
  $region3: #{forward.1} parent=0 // loop_header
    %s25 = sphi 0, %s29
    %p26 = scmp.ge.s32.totalorder %s25, 4
    %s35 = sphi 0, %s37
    %s38 = sphi 0, %s35
    %s39 = sphi 0, %s38
    %s55 = sphi 0, %s39
    %s59 = sphi 0, %s59
    %s61 = sphi 0, %s59
    %s62 = sphi 0, %s61
    %s76 = sphi 0, %s62
    %s80 = sphi 0, %s80
    %s82 = sphi 0, %s80
    %s83 = sphi 0, %s82
    %s97 = sphi 0, %s83
    %s101 = sphi 0, %s101
    %s103 = sphi 0, %s101
    %s104 = sphi 0, %s103
    %s118 = sphi 0, %s104
    %s122 = sphi 0, %s122
    %s124 = sphi 0, %s122
    %s125 = sphi 0, %s124
    %s139 = sphi 0, %s125
    %s143 = sphi 0, %s143
    %s145 = sphi 0, %s143
    %s146 = sphi 0, %s145
    %s160 = sphi 0, %s146
    %s164 = sphi 0, %s164
    %s166 = sphi 0, %s164
    %s167 = sphi 0, %s166
    %s181 = sphi 0, %s167
    %s185 = sphi 0, %s185
    %s187 = sphi 0, %s185
    %s188 = sphi 0, %s187
    %s202 = sphi 0, %s188
    %s206 = sphi 0, %s206
    %s208 = sphi 0, %s206
    %s209 = sphi 0, %s208
    %s223 = sphi 0, %s209
    %s227 = sphi 0, %s227
    %s229 = sphi 0, %s227
    %s230 = sphi 0, %s229
    %s244 = sphi 0, %s230
    %s248 = sphi 0, %s248
    %s250 = sphi 0, %s248
    %s251 = sphi 0, %s250
    %s265 = sphi 0, %s251
    %s269 = sphi 0, %s269
    %s271 = sphi 0, %s269
    %s272 = sphi 0, %s271
    %s286 = sphi 0, %s272
    %s290 = sphi 0, %s290
    %s292 = sphi 0, %s290
    %s293 = sphi 0, %s292
    %s307 = sphi 0, %s293
    %s311 = sphi 0, %s311
    %s313 = sphi 0, %s311
    %s314 = sphi 0, %s313
    %s328 = sphi 0, %s314
    %s332 = sphi 0, %s332
    %s334 = sphi 0, %s332
    %s335 = sphi 0, %s334
    %s349 = sphi 0, %s335
    %s353 = sphi 0, %s353
    %s355 = sphi 0, %s353
    %s356 = sphi 0, %s355
    %s370 = sphi 0, %s356
    %s374 = sphi 0, %s374
    %s376 = sphi 0, %s374
    %s377 = sphi 0, %s376
    %s391 = sphi 0, %s377
    %s395 = sphi 0, %s395
    %s397 = sphi 0, %s395
    %s398 = sphi 0, %s397
    %s412 = sphi 0, %s398
    %s416 = sphi 0, %s416
    %s418 = sphi 0, %s416
    %s419 = sphi 0, %s418
    %s433 = sphi 0, %s419
    %s439 = sphi 0, %s441
    %s442 = sphi 0, %s439
    %s443 = sphi 0, %s442
    %s459 = sphi 0, %s443
  $region4: #{forward.1} parent=0 // loop_header_branch
    %28 = sbr.rel (%p26) target = $region8
  $region5: #{forward.1} parent=0 // loop_body
    %s30 = ssub.s32 %s25, 1
    %s31 = ssub.s32 %s25, 2
    %s32 = sadd.s32 %s25, 1
    %s33 = ssub.s32 %s25, %s32
    %p34 = scmp.eq.s32.totalorder %s33, 0
    %s36 = sadd.s32 %s35, 1
    %s37 = scalar_select %p34, %s35, %s36
    %p40 = pneg %p34
    %p41 = scmp.eq.s32.totalorder %s25, 1
    %p42 = por %p40, %p41
    %p43 = scmp.ne.s32.totalorder %s35, %s38
    %p44 = scmp.eq.s32.totalorder %s25, 0
    %p45 = por %p43, %p44
    %p46 = scmp.ne.s32.totalorder %s35, %s38
    %p47 = scmp.eq.s32.totalorder %s30, 1
    %p48 = por %p46, %p47
    %p49 = scmp.ne.s32.totalorder %s38, %s39
    %p50 = scmp.eq.s32.totalorder %s30, 0
    %p51 = por %p49, %p50
    %p52 = scmp.ne.s32.totalorder %s38, %s39
    %p53 = scmp.eq.s32.totalorder %s31, 1
    %p54 = por %p52, %p53
    %p56 = scmp.ne.s32.totalorder %s39, %s55
    %p57 = scmp.eq.s32.totalorder %s31, 0
    %p58 = por %p56, %p57
    %s60 = sadd.s32 %s59, 1
    %p63 = scmp.eq.s32.totalorder %s25, 1
    %p64 = scmp.ne.s32.totalorder %s59, %s61
    %p65 = scmp.eq.s32.totalorder %s25, 0
    %p66 = por %p64, %p65
    %p67 = scmp.ne.s32.totalorder %s59, %s61
    %p68 = scmp.eq.s32.totalorder %s30, 1
    %p69 = por %p67, %p68
    %p70 = scmp.ne.s32.totalorder %s61, %s62
    %p71 = scmp.eq.s32.totalorder %s30, 0
    %p72 = por %p70, %p71
    %p73 = scmp.ne.s32.totalorder %s61, %s62
    %p74 = scmp.eq.s32.totalorder %s31, 1
    %p75 = por %p73, %p74
    %p77 = scmp.ne.s32.totalorder %s62, %s76
    %p78 = scmp.eq.s32.totalorder %s31, 0
    %p79 = por %p77, %p78
    %s81 = sadd.s32 %s80, 1
    %p84 = scmp.eq.s32.totalorder %s25, 1
    %p85 = scmp.ne.s32.totalorder %s80, %s82
    %p86 = scmp.eq.s32.totalorder %s25, 0
    %p87 = por %p85, %p86
    %p88 = scmp.ne.s32.totalorder %s80, %s82
    %p89 = scmp.eq.s32.totalorder %s30, 1
    %p90 = por %p88, %p89
    %p91 = scmp.ne.s32.totalorder %s82, %s83
    %p92 = scmp.eq.s32.totalorder %s30, 0
    %p93 = por %p91, %p92
    %p94 = scmp.ne.s32.totalorder %s82, %s83
    %p95 = scmp.eq.s32.totalorder %s31, 1
    %p96 = por %p94, %p95
    %p98 = scmp.ne.s32.totalorder %s83, %s97
    %p99 = scmp.eq.s32.totalorder %s31, 0
    %p100 = por %p98, %p99
    %s102 = sadd.s32 %s101, 1
    %p105 = scmp.eq.s32.totalorder %s25, 1
    %p106 = scmp.ne.s32.totalorder %s101, %s103
    %p107 = scmp.eq.s32.totalorder %s25, 0
    %p108 = por %p106, %p107
    %p109 = scmp.ne.s32.totalorder %s101, %s103
    %p110 = scmp.eq.s32.totalorder %s30, 1
    %p111 = por %p109, %p110
    %p112 = scmp.ne.s32.totalorder %s103, %s104
    %p113 = scmp.eq.s32.totalorder %s30, 0
    %p114 = por %p112, %p113
    %p115 = scmp.ne.s32.totalorder %s103, %s104
    %p116 = scmp.eq.s32.totalorder %s31, 1
    %p117 = por %p115, %p116
    %p119 = scmp.ne.s32.totalorder %s104, %s118
    %p120 = scmp.eq.s32.totalorder %s31, 0
    %p121 = por %p119, %p120
    %s123 = sadd.s32 %s122, 1
    %p126 = scmp.eq.s32.totalorder %s25, 1
    %p127 = scmp.ne.s32.totalorder %s122, %s124
    %p128 = scmp.eq.s32.totalorder %s25, 0
    %p129 = por %p127, %p128
    %p130 = scmp.ne.s32.totalorder %s122, %s124
    %p131 = scmp.eq.s32.totalorder %s30, 1
    %p132 = por %p130, %p131
    %p133 = scmp.ne.s32.totalorder %s124, %s125
    %p134 = scmp.eq.s32.totalorder %s30, 0
    %p135 = por %p133, %p134
    %p136 = scmp.ne.s32.totalorder %s124, %s125
    %p137 = scmp.eq.s32.totalorder %s31, 1
    %p138 = por %p136, %p137
    %p140 = scmp.ne.s32.totalorder %s125, %s139
    %p141 = scmp.eq.s32.totalorder %s31, 0
    %p142 = por %p140, %p141
    %s144 = sadd.s32 %s143, 1
    %p147 = scmp.eq.s32.totalorder %s25, 1
    %p148 = scmp.ne.s32.totalorder %s143, %s145
    %p149 = scmp.eq.s32.totalorder %s25, 0
    %p150 = por %p148, %p149
    %p151 = scmp.ne.s32.totalorder %s143, %s145
    %p152 = scmp.eq.s32.totalorder %s30, 1
    %p153 = por %p151, %p152
    %p154 = scmp.ne.s32.totalorder %s145, %s146
    %p155 = scmp.eq.s32.totalorder %s30, 0
    %p156 = por %p154, %p155
    %p157 = scmp.ne.s32.totalorder %s145, %s146
    %p158 = scmp.eq.s32.totalorder %s31, 1
    %p159 = por %p157, %p158
    %p161 = scmp.ne.s32.totalorder %s146, %s160
    %p162 = scmp.eq.s32.totalorder %s31, 0
    %p163 = por %p161, %p162
    %s165 = sadd.s32 %s164, 1
    %p168 = scmp.eq.s32.totalorder %s25, 1
    %p169 = scmp.ne.s32.totalorder %s164, %s166
    %p170 = scmp.eq.s32.totalorder %s25, 0
    %p171 = por %p169, %p170
    %p172 = scmp.ne.s32.totalorder %s164, %s166
    %p173 = scmp.eq.s32.totalorder %s30, 1
    %p174 = por %p172, %p173
    %p175 = scmp.ne.s32.totalorder %s166, %s167
    %p176 = scmp.eq.s32.totalorder %s30, 0
    %p177 = por %p175, %p176
    %p178 = scmp.ne.s32.totalorder %s166, %s167
    %p179 = scmp.eq.s32.totalorder %s31, 1
    %p180 = por %p178, %p179
    %p182 = scmp.ne.s32.totalorder %s167, %s181
    %p183 = scmp.eq.s32.totalorder %s31, 0
    %p184 = por %p182, %p183
    %s186 = sadd.s32 %s185, 1
    %p189 = scmp.eq.s32.totalorder %s25, 1
    %p190 = scmp.ne.s32.totalorder %s185, %s187
    %p191 = scmp.eq.s32.totalorder %s25, 0
    %p192 = por %p190, %p191
    %p193 = scmp.ne.s32.totalorder %s185, %s187
    %p194 = scmp.eq.s32.totalorder %s30, 1
    %p195 = por %p193, %p194
    %p196 = scmp.ne.s32.totalorder %s187, %s188
    %p197 = scmp.eq.s32.totalorder %s30, 0
    %p198 = por %p196, %p197
    %p199 = scmp.ne.s32.totalorder %s187, %s188
    %p200 = scmp.eq.s32.totalorder %s31, 1
    %p201 = por %p199, %p200
    %p203 = scmp.ne.s32.totalorder %s188, %s202
    %p204 = scmp.eq.s32.totalorder %s31, 0
    %p205 = por %p203, %p204
    %s207 = sadd.s32 %s206, 1
    %p210 = scmp.eq.s32.totalorder %s25, 1
    %p211 = scmp.ne.s32.totalorder %s206, %s208
    %p212 = scmp.eq.s32.totalorder %s25, 0
    %p213 = por %p211, %p212
    %p214 = scmp.ne.s32.totalorder %s206, %s208
    %p215 = scmp.eq.s32.totalorder %s30, 1
    %p216 = por %p214, %p215
    %p217 = scmp.ne.s32.totalorder %s208, %s209
    %p218 = scmp.eq.s32.totalorder %s30, 0
    %p219 = por %p217, %p218
    %p220 = scmp.ne.s32.totalorder %s208, %s209
    %p221 = scmp.eq.s32.totalorder %s31, 1
    %p222 = por %p220, %p221
    %p224 = scmp.ne.s32.totalorder %s209, %s223
    %p225 = scmp.eq.s32.totalorder %s31, 0
    %p226 = por %p224, %p225
    %s228 = sadd.s32 %s227, 1
    %p231 = scmp.eq.s32.totalorder %s25, 1
    %p232 = scmp.ne.s32.totalorder %s227, %s229
    %p233 = scmp.eq.s32.totalorder %s25, 0
    %p234 = por %p232, %p233
    %p235 = scmp.ne.s32.totalorder %s227, %s229
    %p236 = scmp.eq.s32.totalorder %s30, 1
    %p237 = por %p235, %p236
    %p238 = scmp.ne.s32.totalorder %s229, %s230
    %p239 = scmp.eq.s32.totalorder %s30, 0
    %p240 = por %p238, %p239
    %p241 = scmp.ne.s32.totalorder %s229, %s230
    %p242 = scmp.eq.s32.totalorder %s31, 1
    %p243 = por %p241, %p242
    %p245 = scmp.ne.s32.totalorder %s230, %s244
    %p246 = scmp.eq.s32.totalorder %s31, 0
    %p247 = por %p245, %p246
    %s249 = sadd.s32 %s248, 1
    %p252 = scmp.eq.s32.totalorder %s25, 1
    %p253 = scmp.ne.s32.totalorder %s248, %s250
    %p254 = scmp.eq.s32.totalorder %s25, 0
    %p255 = por %p253, %p254
    %p256 = scmp.ne.s32.totalorder %s248, %s250
    %p257 = scmp.eq.s32.totalorder %s30, 1
    %p258 = por %p256, %p257
    %p259 = scmp.ne.s32.totalorder %s250, %s251
    %p260 = scmp.eq.s32.totalorder %s30, 0
    %p261 = por %p259, %p260
    %p262 = scmp.ne.s32.totalorder %s250, %s251
    %p263 = scmp.eq.s32.totalorder %s31, 1
    %p264 = por %p262, %p263
    %p266 = scmp.ne.s32.totalorder %s251, %s265
    %p267 = scmp.eq.s32.totalorder %s31, 0
    %p268 = por %p266, %p267
    %s270 = sadd.s32 %s269, 1
    %p273 = scmp.eq.s32.totalorder %s25, 1
    %p274 = scmp.ne.s32.totalorder %s269, %s271
    %p275 = scmp.eq.s32.totalorder %s25, 0
    %p276 = por %p274, %p275
    %p277 = scmp.ne.s32.totalorder %s269, %s271
    %p278 = scmp.eq.s32.totalorder %s30, 1
    %p279 = por %p277, %p278
    %p280 = scmp.ne.s32.totalorder %s271, %s272
    %p281 = scmp.eq.s32.totalorder %s30, 0
    %p282 = por %p280, %p281
    %p283 = scmp.ne.s32.totalorder %s271, %s272
    %p284 = scmp.eq.s32.totalorder %s31, 1
    %p285 = por %p283, %p284
    %p287 = scmp.ne.s32.totalorder %s272, %s286
    %p288 = scmp.eq.s32.totalorder %s31, 0
    %p289 = por %p287, %p288
    %s291 = sadd.s32 %s290, 1
    %p294 = scmp.eq.s32.totalorder %s25, 1
    %p295 = scmp.ne.s32.totalorder %s290, %s292
    %p296 = scmp.eq.s32.totalorder %s25, 0
    %p297 = por %p295, %p296
    %p298 = scmp.ne.s32.totalorder %s290, %s292
    %p299 = scmp.eq.s32.totalorder %s30, 1
    %p300 = por %p298, %p299
    %p301 = scmp.ne.s32.totalorder %s292, %s293
    %p302 = scmp.eq.s32.totalorder %s30, 0
    %p303 = por %p301, %p302
    %p304 = scmp.ne.s32.totalorder %s292, %s293
    %p305 = scmp.eq.s32.totalorder %s31, 1
    %p306 = por %p304, %p305
    %p308 = scmp.ne.s32.totalorder %s293, %s307
    %p309 = scmp.eq.s32.totalorder %s31, 0
    %p310 = por %p308, %p309
    %s312 = sadd.s32 %s311, 1
    %p315 = scmp.eq.s32.totalorder %s25, 1
    %p316 = scmp.ne.s32.totalorder %s311, %s313
    %p317 = scmp.eq.s32.totalorder %s25, 0
    %p318 = por %p316, %p317
    %p319 = scmp.ne.s32.totalorder %s311, %s313
    %p320 = scmp.eq.s32.totalorder %s30, 1
    %p321 = por %p319, %p320
    %p322 = scmp.ne.s32.totalorder %s313, %s314
    %p323 = scmp.eq.s32.totalorder %s30, 0
    %p324 = por %p322, %p323
    %p325 = scmp.ne.s32.totalorder %s313, %s314
    %p326 = scmp.eq.s32.totalorder %s31, 1
    %p327 = por %p325, %p326
    %p329 = scmp.ne.s32.totalorder %s314, %s328
    %p330 = scmp.eq.s32.totalorder %s31, 0
    %p331 = por %p329, %p330
    %s333 = sadd.s32 %s332, 1
    %p336 = scmp.eq.s32.totalorder %s25, 1
    %p337 = scmp.ne.s32.totalorder %s332, %s334
    %p338 = scmp.eq.s32.totalorder %s25, 0
    %p339 = por %p337, %p338
    %p340 = scmp.ne.s32.totalorder %s332, %s334
    %p341 = scmp.eq.s32.totalorder %s30, 1
    %p342 = por %p340, %p341
    %p343 = scmp.ne.s32.totalorder %s334, %s335
    %p344 = scmp.eq.s32.totalorder %s30, 0
    %p345 = por %p343, %p344
    %p346 = scmp.ne.s32.totalorder %s334, %s335
    %p347 = scmp.eq.s32.totalorder %s31, 1
    %p348 = por %p346, %p347
    %p350 = scmp.ne.s32.totalorder %s335, %s349
    %p351 = scmp.eq.s32.totalorder %s31, 0
    %p352 = por %p350, %p351
    %s354 = sadd.s32 %s353, 1
    %p357 = scmp.eq.s32.totalorder %s25, 1
    %p358 = scmp.ne.s32.totalorder %s353, %s355
    %p359 = scmp.eq.s32.totalorder %s25, 0
    %p360 = por %p358, %p359
    %p361 = scmp.ne.s32.totalorder %s353, %s355
    %p362 = scmp.eq.s32.totalorder %s30, 1
    %p363 = por %p361, %p362
    %p364 = scmp.ne.s32.totalorder %s355, %s356
    %p365 = scmp.eq.s32.totalorder %s30, 0
    %p366 = por %p364, %p365
    %p367 = scmp.ne.s32.totalorder %s355, %s356
    %p368 = scmp.eq.s32.totalorder %s31, 1
    %p369 = por %p367, %p368
    %p371 = scmp.ne.s32.totalorder %s356, %s370
    %p372 = scmp.eq.s32.totalorder %s31, 0
    %p373 = por %p371, %p372
    %s375 = sadd.s32 %s374, 1
    %p378 = scmp.eq.s32.totalorder %s25, 1
    %p379 = scmp.ne.s32.totalorder %s374, %s376
    %p380 = scmp.eq.s32.totalorder %s25, 0
    %p381 = por %p379, %p380
    %p382 = scmp.ne.s32.totalorder %s374, %s376
    %p383 = scmp.eq.s32.totalorder %s30, 1
    %p384 = por %p382, %p383
    %p385 = scmp.ne.s32.totalorder %s376, %s377
    %p386 = scmp.eq.s32.totalorder %s30, 0
    %p387 = por %p385, %p386
    %p388 = scmp.ne.s32.totalorder %s376, %s377
    %p389 = scmp.eq.s32.totalorder %s31, 1
    %p390 = por %p388, %p389
    %p392 = scmp.ne.s32.totalorder %s377, %s391
    %p393 = scmp.eq.s32.totalorder %s31, 0
    %p394 = por %p392, %p393
    %s396 = sadd.s32 %s395, 1
    %p399 = scmp.eq.s32.totalorder %s25, 1
    %p400 = scmp.ne.s32.totalorder %s395, %s397
    %p401 = scmp.eq.s32.totalorder %s25, 0
    %p402 = por %p400, %p401
    %p403 = scmp.ne.s32.totalorder %s395, %s397
    %p404 = scmp.eq.s32.totalorder %s30, 1
    %p405 = por %p403, %p404
    %p406 = scmp.ne.s32.totalorder %s397, %s398
    %p407 = scmp.eq.s32.totalorder %s30, 0
    %p408 = por %p406, %p407
    %p409 = scmp.ne.s32.totalorder %s397, %s398
    %p410 = scmp.eq.s32.totalorder %s31, 1
    %p411 = por %p409, %p410
    %p413 = scmp.ne.s32.totalorder %s398, %s412
    %p414 = scmp.eq.s32.totalorder %s31, 0
    %p415 = por %p413, %p414
    %s417 = sadd.s32 %s416, 1
    %p420 = scmp.eq.s32.totalorder %s25, 1
    %p421 = scmp.ne.s32.totalorder %s416, %s418
    %p422 = scmp.eq.s32.totalorder %s25, 0
    %p423 = por %p421, %p422
    %p424 = scmp.ne.s32.totalorder %s416, %s418
    %p425 = scmp.eq.s32.totalorder %s30, 1
    %p426 = por %p424, %p425
    %p427 = scmp.ne.s32.totalorder %s418, %s419
    %p428 = scmp.eq.s32.totalorder %s30, 0
    %p429 = por %p427, %p428
    %p430 = scmp.ne.s32.totalorder %s418, %s419
    %p431 = scmp.eq.s32.totalorder %s31, 1
    %p432 = por %p430, %p431
    %p434 = scmp.ne.s32.totalorder %s419, %s433
    %p435 = scmp.eq.s32.totalorder %s31, 0
    %p436 = por %p434, %p435
    %s437 = ssub.s32 %s25, %s32
    %p438 = scmp.eq.s32.totalorder %s437, 0
    %s440 = sadd.s32 %s439, 1
    %s441 = scalar_select %p438, %s439, %s440
    %p444 = pneg %p438
    %p445 = scmp.eq.s32.totalorder %s25, 1
    %p446 = por %p444, %p445
    %p447 = scmp.ne.s32.totalorder %s439, %s442
    %p448 = scmp.eq.s32.totalorder %s25, 0
    %p449 = por %p447, %p448
    %p450 = scmp.ne.s32.totalorder %s439, %s442
    %p451 = scmp.eq.s32.totalorder %s30, 1
    %p452 = por %p450, %p451
    %p453 = scmp.ne.s32.totalorder %s442, %s443
    %p454 = scmp.eq.s32.totalorder %s30, 0
    %p455 = por %p453, %p454
    %p456 = scmp.ne.s32.totalorder %s442, %s443
    %p457 = scmp.eq.s32.totalorder %s31, 1
    %p458 = por %p456, %p457
    %p460 = scmp.ne.s32.totalorder %s443, %s459
    %p461 = scmp.eq.s32.totalorder %s31, 0
    %p462 = por %p460, %p461
    %p463 = scmp.le.s32.totalorder 1, %s25
    %p464 = scmp.lt.s32.totalorder %s25, 3
    %p465 = pnand %p463, %p464
    %p466 = pneg %p465
    // Predicated region
    $region9: #{forward.1} parent=5 // pred_check
      _
    $region10: #{forward.1} parent=5 // pred_check_branch
      %468 = sbr.rel (%p465) target = $region12
    $region11: #{forward.1} parent=5 // pred_region
      %s469 = ssub.s32 %s25, 1
      // Predicated region
      $region13: #{forward.1} parent=11 // pred_check
        %p470 = pneg %p72
      $region14: #{forward.1} parent=11 // pred_check_branch
        %472 = sbr.rel (%p470) target = $region16
      $region15: #{forward.1} parent=11 // pred_region
        _
      $region16: #{forward.1} parent=11 // pred_fallthru
        _
      // Predicated region
      $region17: #{forward.1} parent=11 // pred_check
        %p473 = pneg %p93
      $region18: #{forward.1} parent=11 // pred_check_branch
        %475 = sbr.rel (%p473) target = $region20
      $region19: #{forward.1} parent=11 // pred_region
        _
      $region20: #{forward.1} parent=11 // pred_fallthru
        _
      // Predicated region
      $region21: #{forward.1} parent=11 // pred_check
        %p476 = pneg %p114
      $region22: #{forward.1} parent=11 // pred_check_branch
        %478 = sbr.rel (%p476) target = $region24
      $region23: #{forward.1} parent=11 // pred_region
        _
      $region24: #{forward.1} parent=11 // pred_fallthru
        _
      // Predicated region
      $region25: #{forward.1} parent=11 // pred_check
        %p479 = pneg %p135
      $region26: #{forward.1} parent=11 // pred_check_branch
        %481 = sbr.rel (%p479) target = $region28
      $region27: #{forward.1} parent=11 // pred_region
        _
      $region28: #{forward.1} parent=11 // pred_fallthru
        _
      // Predicated region
      $region29: #{forward.1} parent=11 // pred_check
        %p482 = pneg %p156
      $region30: #{forward.1} parent=11 // pred_check_branch
        %484 = sbr.rel (%p482) target = $region32
      $region31: #{forward.1} parent=11 // pred_region
        _
      $region32: #{forward.1} parent=11 // pred_fallthru
        _
      // Predicated region
      $region33: #{forward.1} parent=11 // pred_check
        %p485 = pneg %p177
      $region34: #{forward.1} parent=11 // pred_check_branch
        %487 = sbr.rel (%p485) target = $region36
      $region35: #{forward.1} parent=11 // pred_region
        _
      $region36: #{forward.1} parent=11 // pred_fallthru
        _
      // Predicated region
      $region37: #{forward.1} parent=11 // pred_check
        %p488 = pneg %p198
      $region38: #{forward.1} parent=11 // pred_check_branch
        %490 = sbr.rel (%p488) target = $region40
      $region39: #{forward.1} parent=11 // pred_region
        _
      $region40: #{forward.1} parent=11 // pred_fallthru
        _
      // Predicated region
      $region41: #{forward.1} parent=11 // pred_check
        %p491 = pneg %p219
      $region42: #{forward.1} parent=11 // pred_check_branch
        %493 = sbr.rel (%p491) target = $region44
      $region43: #{forward.1} parent=11 // pred_region
        _
      $region44: #{forward.1} parent=11 // pred_fallthru
        _
      // Predicated region
      $region45: #{forward.1} parent=11 // pred_check
        %p494 = pneg %p240
      $region46: #{forward.1} parent=11 // pred_check_branch
        %496 = sbr.rel (%p494) target = $region48
      $region47: #{forward.1} parent=11 // pred_region
        _
      $region48: #{forward.1} parent=11 // pred_fallthru
        _
      // Predicated region
      $region49: #{forward.1} parent=11 // pred_check
        %p497 = pneg %p261
      $region50: #{forward.1} parent=11 // pred_check_branch
        %499 = sbr.rel (%p497) target = $region52
      $region51: #{forward.1} parent=11 // pred_region
        _
      $region52: #{forward.1} parent=11 // pred_fallthru
        _
      // Predicated region
      $region53: #{forward.1} parent=11 // pred_check
        %p500 = pneg %p282
      $region54: #{forward.1} parent=11 // pred_check_branch
        %502 = sbr.rel (%p500) target = $region56
      $region55: #{forward.1} parent=11 // pred_region
        _
      $region56: #{forward.1} parent=11 // pred_fallthru
        _
      // Predicated region
      $region57: #{forward.1} parent=11 // pred_check
        %p503 = pneg %p303
      $region58: #{forward.1} parent=11 // pred_check_branch
        %505 = sbr.rel (%p503) target = $region60
      $region59: #{forward.1} parent=11 // pred_region
        _
      $region60: #{forward.1} parent=11 // pred_fallthru
        _
      // Predicated region
      $region61: #{forward.1} parent=11 // pred_check
        %p506 = pneg %p324
      $region62: #{forward.1} parent=11 // pred_check_branch
        %508 = sbr.rel (%p506) target = $region64
      $region63: #{forward.1} parent=11 // pred_region
        _
      $region64: #{forward.1} parent=11 // pred_fallthru
        _
      // Predicated region
      $region65: #{forward.1} parent=11 // pred_check
        %p509 = pneg %p345
      $region66: #{forward.1} parent=11 // pred_check_branch
        %511 = sbr.rel (%p509) target = $region68
      $region67: #{forward.1} parent=11 // pred_region
        _
      $region68: #{forward.1} parent=11 // pred_fallthru
        _
      // Predicated region
      $region69: #{forward.1} parent=11 // pred_check
        %p512 = pneg %p366
      $region70: #{forward.1} parent=11 // pred_check_branch
        %514 = sbr.rel (%p512) target = $region72
      $region71: #{forward.1} parent=11 // pred_region
        _
      $region72: #{forward.1} parent=11 // pred_fallthru
        _
      // Predicated region
      $region73: #{forward.1} parent=11 // pred_check
        %p515 = pneg %p387
      $region74: #{forward.1} parent=11 // pred_check_branch
        %517 = sbr.rel (%p515) target = $region76
      $region75: #{forward.1} parent=11 // pred_region
        _
      $region76: #{forward.1} parent=11 // pred_fallthru
        _
      // Predicated region
      $region77: #{forward.1} parent=11 // pred_check
        %p518 = pneg %p408
      $region78: #{forward.1} parent=11 // pred_check_branch
        %520 = sbr.rel (%p518) target = $region80
      $region79: #{forward.1} parent=11 // pred_region
        _
      $region80: #{forward.1} parent=11 // pred_fallthru
        _
      // Predicated region
      $region81: #{forward.1} parent=11 // pred_check
        %p521 = pneg %p429
      $region82: #{forward.1} parent=11 // pred_check_branch
        %523 = sbr.rel (%p521) target = $region84
      $region83: #{forward.1} parent=11 // pred_region
        _
      $region84: #{forward.1} parent=11 // pred_fallthru
        _
    $region12: #{forward.1} parent=5 // pred_fallthru
      _
    %p524 = scmp.lt.s32.totalorder %s25, 2
    // Predicated region
    $region85: #{forward.1} parent=5 // pred_check
      %p525 = pneg %p524
    $region86: #{forward.1} parent=5 // pred_check_branch
      %527 = sbr.rel (%p525) target = $region88
    $region87: #{forward.1} parent=5 // pred_region
      // Predicated region
      $region89: #{forward.1} parent=87 // pred_check
        %p528 = pneg %p45
      $region90: #{forward.1} parent=87 // pred_check_branch
        %530 = sbr.rel (%p528) target = $region92
      $region91: #{forward.1} parent=87 // pred_region
        %p531 = scmp.lt.s32.totalorder %s25, 1
        %s532 = scalar_select %p531, %s25, 1
        %s533 = smul.addr %s532, 2
        %s534 = smul.addr %s533, 8
        %s535 = scalar_lea.vmem %s0, %s534
      $region92: #{forward.1} parent=87 // pred_fallthru
        _
    $region88: #{forward.1} parent=5 // pred_fallthru
      _
    %p536 = scmp.le.s32.totalorder 1, %s25
    %p537 = scmp.lt.s32.totalorder %s25, 3
    %p538 = pnand %p536, %p537
    %p539 = pneg %p538
    // Predicated region
    $region93: #{forward.1} parent=5 // pred_check
      _
    $region94: #{forward.1} parent=5 // pred_check_branch
      %541 = sbr.rel (%p538) target = $region96
    $region95: #{forward.1} parent=5 // pred_region
      %s542 = ssub.s32 %s25, 1
      %p543 = scmp.lt.s32.totalorder %s30, 1
      %s544 = scalar_select %p543, %s30, 1
      %s545 = smul.addr %s544, 2
      %s546 = smul.addr %s545, 8
      %s547 = scalar_lea.vmem %s0, %s546
      %p548 = pneg %p51
      %p549 = pneg %p48
      %p550 = pneg %p72
      %p551 = pneg %p69
      %p552 = pneg %p93
      %p553 = pneg %p90
      %p554 = pneg %p114
      %p555 = pneg %p111
      %p556 = pneg %p135
      %p557 = pneg %p132
      %p558 = pneg %p156
      %p559 = pneg %p153
      %p560 = pneg %p177
      %p561 = pneg %p174
      %p562 = pneg %p198
      %p563 = pneg %p195
      %p564 = pneg %p219
      %p565 = pneg %p216
      %p566 = pneg %p240
      %p567 = pneg %p237
      %p568 = pneg %p261
      %p569 = pneg %p258
      %p570 = pneg %p282
      %p571 = pneg %p279
      %p572 = pneg %p303
      %p573 = pneg %p300
      %p574 = pneg %p324
      %p575 = pneg %p321
      %p576 = pneg %p345
      %p577 = pneg %p342
      %p578 = pneg %p366
      %p579 = pneg %p363
      %p580 = pneg %p387
      %p581 = pneg %p384
      %p582 = pneg %p408
      %p583 = pneg %p405
      %p584 = pneg %p429
      %p585 = pneg %p426
      %p586 = pneg %p455
      %p587 = pneg %p452
      %p588 = scmp.lt.s32.totalorder %s30, 1
      %s589 = scalar_select %p588, %s30, 1
      %s590 = smul.addr %s589, 2
      %s591 = smul.addr %s590, 8
      %s592 = scalar_lea.vmem %s19, %s591
      %p593 = scmp.lt.s32.totalorder %s30, 1
      %s594 = scalar_select %p593, %s30, 1
      %s595 = smul.addr %s594, 2
      %s596 = smul.addr %s595, 8
      %s597 = scalar_lea.vmem %s0, %s596
      %p598 = scmp.lt.s32.totalorder %s30, 1
      %s599 = scalar_select %p598, %s30, 1
      %s600 = smul.addr %s599, 2
      %s601 = smul.addr %s600, 8
      %s602 = scalar_lea.vmem %s19, %s601
      %v603 = vld [vmem:[%s597] sm:$0xff]
      %v604 = vld [vmem:[%s597 + $0x8] sm:$0x3]
      %v605 = vlaneseq
      %v606 = vshrl.u32 %v605, 7
      %v607 = vadd.s32 %v606, 8
      %v608 = vlaneseq
      %v609 = vand.u32 %v608, 127
      %v610 = vadd.s32 %v606, 1
      %v611 = vadd.s32 %v607, 1
      %vm612 = vcmp.eq.s32.totalorder %v609, %v610
      %vm613 = vcmp.eq.s32.totalorder %v609, %v611
      %v614 = vsel %vm612, 1, 0
      %v615 = vsel %vm613, 1, 0
      %v616 = vcvt.s32.f32 %v614
      %v617 = vcvt.s32.f32 %v615
      %vm618 = vcmask 130048
      %v620 = vsel %vm618, %v603, 0
      %v623 = vsel %vm618, %v604, 0
      %625 = vmatprep.subr.mxu0 0.0
      %626 = vmatpush1.msra.mxu0 %v616
      %627 = vmatprep.subr.mxu0 0.0
      %628 = vmatpush1.msra.mxu0 %v617
      %629 = vmatprep.subr.mxu0 0.0
      %630 = vmatpush1.msra.mxu0 0.0
      %631 = vmatprep.subr.mxu0 0.0
      %632 = vmatpush1.msra.mxu0 0.0
      %633 = vmatprep.subr.mxu0 0.0
      %634 = vmatpush1.msra.mxu0 0.0
      %635 = vmatprep.subr.mxu0 0.0
      %636 = vmatpush1.msra.mxu0 0.0
      %637 = vmatprep.subr.mxu0 0.0
      %638 = vmatpush1.msra.mxu0 0.0
      %639 = vmatprep.subr.mxu0 0.0
      %640 = vmatpush1.msra.mxu0 0.0
      %641 = vmatprep.subr.mxu0 0.0
      %642 = vmatpush1.msra.mxu0 0.0
      %643 = vmatprep.subr.mxu0 0.0
      %644 = vmatpush1.msra.mxu0 0.0
      %645 = vmatprep.subr.mxu0 0.0
      %646 = vmatpush1.msra.mxu0 0.0
      %647 = vmatprep.subr.mxu0 0.0
      %648 = vmatpush1.msra.mxu0 0.0
      %649 = vmatprep.subr.mxu0 0.0
      %650 = vmatpush1.msra.mxu0 0.0
      %651 = vmatprep.subr.mxu0 0.0
      %652 = vmatpush1.msra.mxu0 0.0
      %653 = vmatprep.subr.mxu0 0.0
      %654 = vmatpush1.msra.mxu0 0.0
      %655 = vmatprep.subr.mxu0 0.0
      %656 = vmatpush1.msra.mxu0 0.0
      %657 = vmatprep.subr.mxu0 0.0
      %658 = vmatpush1.msra.mxu0 0.0
      %659 = vmatprep.subr.mxu0 0.0
      %660 = vmatpush1.msra.mxu0 0.0
      %661 = vmatprep.subr.mxu0 0.0
      %662 = vmatpush1.msra.mxu0 0.0
      %663 = vmatprep.subr.mxu0 0.0
      %664 = vmatpush1.msra.mxu0 0.0
      %665 = vmatprep.subr.mxu0 0.0
      %666 = vmatpush1.msra.mxu0 0.0
      %667 = vmatprep.subr.mxu0 0.0
      %668 = vmatpush1.msra.mxu0 0.0
      %669 = vmatprep.subr.mxu0 0.0
      %670 = vmatpush1.msra.mxu0 0.0
      %671 = vmatprep.subr.mxu0 0.0
      %672 = vmatpush1.msra.mxu0 0.0
      %673 = vmatprep.subr.mxu0 0.0
      %674 = vmatpush1.msra.mxu0 0.0
      %675 = vmatprep.subr.mxu0 0.0
      %676 = vmatpush1.msra.mxu0 0.0
      %677 = vmatprep.subr.mxu0 0.0
      %678 = vmatpush1.msra.mxu0 0.0
      %679 = vmatprep.subr.mxu0 0.0
      %680 = vmatpush1.msra.mxu0 0.0
      %681 = vmatprep.subr.mxu0 0.0
      %682 = vmatpush1.msra.mxu0 0.0
      %683 = vmatprep.subr.mxu0 0.0
      %684 = vmatpush1.msra.mxu0 0.0
      %685 = vmatprep.subr.mxu0 0.0
      %686 = vmatpush1.msra.mxu0 0.0
      %687 = vmatprep.subr.mxu0 0.0
      %688 = vmatpush1.msra.mxu0 0.0
      %689 = vmatprep.mubr.f32.mxu0 0.0
      %690 = vmatmul.mubr.f32.gmra.mrb[0].mxu0 %v620
      %v691 = vpop.f32.mrb[0].mxu0
      %v692 = vadd.f32 0.0, %v691
      %v693 = vpop.f32.mrb[0].mxu0
      %694 = vmatprep.mubr.f32.mxu0 0.0
      %695 = vmatmul.mubr.f32.gmra.mrb[0].mxu0 %v623
      %v696 = vpop.f32.mrb[0].mxu0
      %v697 = vadd.f32 0.0, %v696
      %v698 = vpop.f32.mrb[0].mxu0
      %699 = vdwg.mxu0
      %v700 = vld [vmem:[%s1] sm:$0xff]
      %v701 = vld [vmem:[%s1 + $0x8] sm:$0xff]
      %v702 = vld [vmem:[%s1 + $0x10] sm:$0xff]
      %v703 = vld [vmem:[%s1 + $0x18] sm:$0xff]
      %v704 = vld [vmem:[%s1 + $0x20] sm:$0xff]
      %v705 = vld [vmem:[%s1 + $0x28] sm:$0xff]
      %v706 = vld [vmem:[%s1 + $0x30] sm:$0xff]
      %v707 = vld [vmem:[%s1 + $0x38] sm:$0xff]
      %v708 = vld [vmem:[%s1 + $0x40] sm:$0xff]
      %v709 = vld [vmem:[%s1 + $0x48] sm:$0xff]
      %v710 = vld [vmem:[%s1 + $0x50] sm:$0xff]
      %v711 = vld [vmem:[%s1 + $0x58] sm:$0xff]
      %vm712 = vcmask 80896
      %v714 = vsel %vm712, %v700, 0
      %v717 = vsel %vm712, %v701, 0
      %v720 = vsel %vm712, %v702, 0
      %v723 = vsel %vm712, %v703, 0
      %v726 = vsel %vm712, %v704, 0
      %v729 = vsel %vm712, %v705, 0
      %v732 = vsel %vm712, %v706, 0
      %v735 = vsel %vm712, %v707, 0
      %v738 = vsel %vm712, %v708, 0
      %v741 = vsel %vm712, %v709, 0
      %v744 = vsel %vm712, %v710, 0
      %v747 = vsel %vm712, %v711, 0
      %vm749 = vcmask 1041408
      %v751 = vsel %vm749, %v697, 0
      %753 = vmatprep.subr.mxu0 0.0
      %754 = vmatpush1.msra.mxu0 %v692
      %755 = vmatprep.subr.mxu0 0.0
      %756 = vmatpush1.msra.mxu0 %v751
      %757 = vmatprep.subr.mxu0 0.0
      %758 = vmatpush1.msra.mxu0 0.0
      %759 = vmatprep.subr.mxu0 0.0
      %760 = vmatpush1.msra.mxu0 0.0
      %761 = vmatprep.subr.mxu0 0.0
      %762 = vmatpush1.msra.mxu0 0.0
      %763 = vmatprep.subr.mxu0 0.0
      %764 = vmatpush1.msra.mxu0 0.0
      %765 = vmatprep.subr.mxu0 0.0
      %766 = vmatpush1.msra.mxu0 0.0
      %767 = vmatprep.subr.mxu0 0.0
      %768 = vmatpush1.msra.mxu0 0.0
      %769 = vmatprep.subr.mxu0 0.0
      %770 = vmatpush1.msra.mxu0 0.0
      %771 = vmatprep.subr.mxu0 0.0
      %772 = vmatpush1.msra.mxu0 0.0
      %773 = vmatprep.subr.mxu0 0.0
      %774 = vmatpush1.msra.mxu0 0.0
      %775 = vmatprep.subr.mxu0 0.0
      %776 = vmatpush1.msra.mxu0 0.0
      %777 = vmatprep.subr.mxu0 0.0
      %778 = vmatpush1.msra.mxu0 0.0
      %779 = vmatprep.subr.mxu0 0.0
      %780 = vmatpush1.msra.mxu0 0.0
      %781 = vmatprep.subr.mxu0 0.0
      %782 = vmatpush1.msra.mxu0 0.0
      %783 = vmatprep.subr.mxu0 0.0
      %784 = vmatpush1.msra.mxu0 0.0
      %785 = vmatprep.subr.mxu0 0.0
      %786 = vmatpush1.msra.mxu0 0.0
      %787 = vmatprep.subr.mxu0 0.0
      %788 = vmatpush1.msra.mxu0 0.0
      %789 = vmatprep.subr.mxu0 0.0
      %790 = vmatpush1.msra.mxu0 0.0
      %791 = vmatprep.subr.mxu0 0.0
      %792 = vmatpush1.msra.mxu0 0.0
      %793 = vmatprep.subr.mxu0 0.0
      %794 = vmatpush1.msra.mxu0 0.0
      %795 = vmatprep.subr.mxu0 0.0
      %796 = vmatpush1.msra.mxu0 0.0
      %797 = vmatprep.subr.mxu0 0.0
      %798 = vmatpush1.msra.mxu0 0.0
      %799 = vmatprep.subr.mxu0 0.0
      %800 = vmatpush1.msra.mxu0 0.0
      %801 = vmatprep.subr.mxu0 0.0
      %802 = vmatpush1.msra.mxu0 0.0
      %803 = vmatprep.subr.mxu0 0.0
      %804 = vmatpush1.msra.mxu0 0.0
      %805 = vmatprep.subr.mxu0 0.0
      %806 = vmatpush1.msra.mxu0 0.0
      %807 = vmatprep.subr.mxu0 0.0
      %808 = vmatpush1.msra.mxu0 0.0
      %809 = vmatprep.subr.mxu0 0.0
      %810 = vmatpush1.msra.mxu0 0.0
      %811 = vmatprep.subr.mxu0 0.0
      %812 = vmatpush1.msra.mxu0 0.0
      %813 = vmatprep.subr.mxu0 0.0
      %814 = vmatpush1.msra.mxu0 0.0
      %815 = vmatprep.subr.mxu0 0.0
      %816 = vmatpush1.msra.mxu0 0.0
      %817 = vmatprep.mubr.f32.mxu0 0.0
      %818 = vmatmul.mubr.f32.gmra.mrb[0].mxu0 %v714
      %v819 = vpop.f32.mrb[0].mxu0
      %v820 = vadd.f32 0.0, %v819
      %v821 = vpop.f32.mrb[0].mxu0
      %822 = vmatprep.mubr.f32.mxu0 0.0
      %823 = vmatmul.mubr.f32.gmra.mrb[0].mxu0 %v717
      %v824 = vpop.f32.mrb[0].mxu0
      %v825 = vadd.f32 0.0, %v824
      %v826 = vpop.f32.mrb[0].mxu0
      %827 = vmatprep.mubr.f32.mxu0 0.0
      %828 = vmatmul.mubr.f32.gmra.mrb[0].mxu0 %v720
      %v829 = vpop.f32.mrb[0].mxu0
      %v830 = vadd.f32 0.0, %v829
      %v831 = vpop.f32.mrb[0].mxu0
      %832 = vmatprep.mubr.f32.mxu0 0.0
      %833 = vmatmul.mubr.f32.gmra.mrb[0].mxu0 %v723
      %v834 = vpop.f32.mrb[0].mxu0
      %v835 = vadd.f32 0.0, %v834
      %v836 = vpop.f32.mrb[0].mxu0
      %837 = vmatprep.mubr.f32.mxu0 0.0
      %838 = vmatmul.mubr.f32.gmra.mrb[0].mxu0 %v726
      %v839 = vpop.f32.mrb[0].mxu0
      %v840 = vadd.f32 0.0, %v839
      %v841 = vpop.f32.mrb[0].mxu0
      %842 = vmatprep.mubr.f32.mxu0 0.0
      %843 = vmatmul.mubr.f32.gmra.mrb[0].mxu0 %v729
      %v844 = vpop.f32.mrb[0].mxu0
      %v845 = vadd.f32 0.0, %v844
      %v846 = vpop.f32.mrb[0].mxu0
      %847 = vmatprep.mubr.f32.mxu0 0.0
      %848 = vmatmul.mubr.f32.gmra.mrb[0].mxu0 %v732
      %v849 = vpop.f32.mrb[0].mxu0
      %v850 = vadd.f32 0.0, %v849
      %v851 = vpop.f32.mrb[0].mxu0
      %852 = vmatprep.mubr.f32.mxu0 0.0
      %853 = vmatmul.mubr.f32.gmra.mrb[0].mxu0 %v735
      %v854 = vpop.f32.mrb[0].mxu0
      %v855 = vadd.f32 0.0, %v854
      %v856 = vpop.f32.mrb[0].mxu0
      %857 = vmatprep.mubr.f32.mxu0 0.0
      %858 = vmatmul.mubr.f32.gmra.mrb[0].mxu0 %v738
      %v859 = vpop.f32.mrb[0].mxu0
      %v860 = vadd.f32 0.0, %v859
      %v861 = vpop.f32.mrb[0].mxu0
      %862 = vmatprep.mubr.f32.mxu0 0.0
      %863 = vmatmul.mubr.f32.gmra.mrb[0].mxu0 %v741
      %v864 = vpop.f32.mrb[0].mxu0
      %v865 = vadd.f32 0.0, %v864
      %v866 = vpop.f32.mrb[0].mxu0
      %867 = vmatprep.mubr.f32.mxu0 0.0
      %868 = vmatmul.mubr.f32.gmra.mrb[0].mxu0 %v744
      %v869 = vpop.f32.mrb[0].mxu0
      %v870 = vadd.f32 0.0, %v869
      %v871 = vpop.f32.mrb[0].mxu0
      %872 = vmatprep.mubr.f32.mxu0 0.0
      %873 = vmatmul.mubr.f32.gmra.mrb[0].mxu0 %v747
      %v874 = vpop.f32.mrb[0].mxu0
      %v875 = vadd.f32 0.0, %v874
      %v876 = vpop.f32.mrb[0].mxu0
      %877 = vdwg.mxu0
      %882 = vrot.lane.b32.xlu0 %v840, 127
      %v883 = vpop.permute.xlu0 %882
      %884 = vrot.lane.b32.xlu0 %v845, 127
      %v885 = vpop.permute.xlu0 %884
      %886 = vrot.lane.b32.xlu0 %v850, 127
      %v887 = vpop.permute.xlu0 %886
      %888 = vrot.lane.b32.xlu0 %v855, 127
      %v889 = vpop.permute.xlu0 %888
      %v894 = vadd.f32 %v820, %v883
      %v895 = vadd.f32 %v825, %v885
      %v896 = vadd.f32 %v830, %v887
      %v897 = vadd.f32 %v835, %v889
      %902 = vrot.lane.b32.xlu0 %v860, 126
      %v903 = vpop.permute.xlu0 %902
      %904 = vrot.lane.b32.xlu0 %v865, 126
      %v905 = vpop.permute.xlu0 %904
      %906 = vrot.lane.b32.xlu0 %v870, 126
      %v907 = vpop.permute.xlu0 %906
      %908 = vrot.lane.b32.xlu0 %v875, 126
      %v909 = vpop.permute.xlu0 %908
      %v914 = vadd.f32 %v894, %v903
      %v915 = vadd.f32 %v895, %v905
      %v916 = vadd.f32 %v896, %v907
      %v917 = vadd.f32 %v897, %v909
      %v918 = vld [vmem:[%s2] sm:$0xff]
      %v919 = vld [vmem:[%s2 + $0x8] sm:$0xff]
      %v920 = vld [vmem:[%s2 + $0x10] sm:$0xff]
      %v921 = vld [vmem:[%s2 + $0x18] sm:$0xff]
      %923 = vset.pattern.permute.xlu0 0
      %924 = vperm.xlu0 %923, %v918
      %v925 = vpop.permute.xlu0 %924
      %928 = vset.pattern.permute.xlu0 0
      %929 = vperm.xlu0 %928, %v919
      %v930 = vpop.permute.xlu0 %929
      %933 = vset.pattern.permute.xlu0 0
      %934 = vperm.xlu0 %933, %v920
      %v935 = vpop.permute.xlu0 %934
      %938 = vset.pattern.permute.xlu0 0
      %939 = vperm.xlu0 %938, %v921
      %v940 = vpop.permute.xlu0 %939
      %v942 = vadd.f32 %v914, %v925
      %v943 = vadd.f32 %v915, %v930
      %v944 = vadd.f32 %v916, %v935
      %v945 = vadd.f32 %v917, %v940
      %vm946 = vcmp.ge.f32.partialorder %v942, 0.0
      %vm947 = vcmp.ge.f32.partialorder %v943, 0.0
      %vm948 = vcmp.ge.f32.partialorder %v944, 0.0
      %vm949 = vcmp.ge.f32.partialorder %v945, 0.0
      %v950 = vmul.f32 %v942, 0.2
      %v951 = vmul.f32 %v943, 0.2
      %v952 = vmul.f32 %v944, 0.2
      %v953 = vmul.f32 %v945, 0.2
      %v954 = vsel %vm946, %v942, %v950
      %v955 = vsel %vm947, %v943, %v951
      %v956 = vsel %vm948, %v944, %v952
      %v957 = vsel %vm949, %v945, %v953
      %958 = vset.pattern.permute.xlu0 1
      %959 = vperm.xlu0 %958, %v918
      %v960 = vpop.permute.xlu0 %959
      %962 = vset.pattern.permute.xlu0 1
      %963 = vperm.xlu0 %962, %v919
      %v964 = vpop.permute.xlu0 %963
      %966 = vset.pattern.permute.xlu0 1
      %967 = vperm.xlu0 %966, %v920
      %v968 = vpop.permute.xlu0 %967
      %970 = vset.pattern.permute.xlu0 1
      %971 = vperm.xlu0 %970, %v921
      %v972 = vpop.permute.xlu0 %971
      %v974 = vmul.f32 %v954, %v960
      %v975 = vmul.f32 %v955, %v964
      %v976 = vmul.f32 %v956, %v968
      %v977 = vmul.f32 %v957, %v972
      %978 = vset.pattern.permute.xlu0 2
      %979 = vperm.xlu0 %978, %v918
      %v980 = vpop.permute.xlu0 %979
      %982 = vset.pattern.permute.xlu0 2
      %983 = vperm.xlu0 %982, %v919
      %v984 = vpop.permute.xlu0 %983
      %986 = vset.pattern.permute.xlu0 2
      %987 = vperm.xlu0 %986, %v920
      %v988 = vpop.permute.xlu0 %987
      %990 = vset.pattern.permute.xlu0 2
      %991 = vperm.xlu0 %990, %v921
      %v992 = vpop.permute.xlu0 %991
      %v994 = vadd.f32 %v974, %v980
      %v995 = vadd.f32 %v975, %v984
      %v996 = vadd.f32 %v976, %v988
      %v997 = vadd.f32 %v977, %v992
      %v998 = vmul.u32 %v609, 2
      %vm999 = vcmp.eq.s32.totalorder %v606, %v998
      %vm1000 = vcmp.eq.s32.totalorder %v607, %v998
      %v1001 = vsel %vm999, 1, 0
      %v1002 = vsel %vm1000, 1, 0
      %v1003 = vcvt.s32.f32 %v1001
      %v1004 = vcvt.s32.f32 %v1002
      %v1006 = vsel %vm618, %v994, 0
      %v1009 = vsel %vm618, %v995, 0
      %v1012 = vsel %vm618, %v996, 0
      %v1015 = vsel %vm618, %v997, 0
      %1017 = vmatprep.subr.mxu0 0.0
      %1018 = vmatpush1.msra.mxu0 %v1003
      %1019 = vmatprep.subr.mxu0 0.0
      %1020 = vmatpush1.msra.mxu0 %v1004
      %1021 = vmatprep.subr.mxu0 0.0
      %1022 = vmatpush1.msra.mxu0 0.0
      %1023 = vmatprep.subr.mxu0 0.0
      %1024 = vmatpush1.msra.mxu0 0.0
      %1025 = vmatprep.subr.mxu0 0.0
      %1026 = vmatpush1.msra.mxu0 0.0
      %1027 = vmatprep.subr.mxu0 0.0
      %1028 = vmatpush1.msra.mxu0 0.0
      %1029 = vmatprep.subr.mxu0 0.0
      %1030 = vmatpush1.msra.mxu0 0.0
      %1031 = vmatprep.subr.mxu0 0.0
      %1032 = vmatpush1.msra.mxu0 0.0
      %1033 = vmatprep.subr.mxu0 0.0
      %1034 = vmatpush1.msra.mxu0 0.0
      %1035 = vmatprep.subr.mxu0 0.0
      %1036 = vmatpush1.msra.mxu0 0.0
      %1037 = vmatprep.subr.mxu0 0.0
      %1038 = vmatpush1.msra.mxu0 0.0
      %1039 = vmatprep.subr.mxu0 0.0
      %1040 = vmatpush1.msra.mxu0 0.0
      %1041 = vmatprep.subr.mxu0 0.0
      %1042 = vmatpush1.msra.mxu0 0.0
      %1043 = vmatprep.subr.mxu0 0.0
      %1044 = vmatpush1.msra.mxu0 0.0
      %1045 = vmatprep.subr.mxu0 0.0
      %1046 = vmatpush1.msra.mxu0 0.0
      %1047 = vmatprep.subr.mxu0 0.0
      %1048 = vmatpush1.msra.mxu0 0.0
      %1049 = vmatprep.subr.mxu0 0.0
      %1050 = vmatpush1.msra.mxu0 0.0
      %1051 = vmatprep.subr.mxu0 0.0
      %1052 = vmatpush1.msra.mxu0 0.0
      %1053 = vmatprep.subr.mxu0 0.0
      %1054 = vmatpush1.msra.mxu0 0.0
      %1055 = vmatprep.subr.mxu0 0.0
      %1056 = vmatpush1.msra.mxu0 0.0
      %1057 = vmatprep.subr.mxu0 0.0
      %1058 = vmatpush1.msra.mxu0 0.0
      %1059 = vmatprep.subr.mxu0 0.0
      %1060 = vmatpush1.msra.mxu0 0.0
      %1061 = vmatprep.subr.mxu0 0.0
      %1062 = vmatpush1.msra.mxu0 0.0
      %1063 = vmatprep.subr.mxu0 0.0
      %1064 = vmatpush1.msra.mxu0 0.0
      %1065 = vmatprep.subr.mxu0 0.0
      %1066 = vmatpush1.msra.mxu0 0.0
      %1067 = vmatprep.subr.mxu0 0.0
      %1068 = vmatpush1.msra.mxu0 0.0
      %1069 = vmatprep.subr.mxu0 0.0
      %1070 = vmatpush1.msra.mxu0 0.0
      %1071 = vmatprep.subr.mxu0 0.0
      %1072 = vmatpush1.msra.mxu0 0.0
      %1073 = vmatprep.subr.mxu0 0.0
      %1074 = vmatpush1.msra.mxu0 0.0
      %1075 = vmatprep.subr.mxu0 0.0
      %1076 = vmatpush1.msra.mxu0 0.0
      %1077 = vmatprep.subr.mxu0 0.0
      %1078 = vmatpush1.msra.mxu0 0.0
      %1079 = vmatprep.subr.mxu0 0.0
      %1080 = vmatpush1.msra.mxu0 0.0
      %1081 = vmatprep.mubr.f32.mxu0 0.0
      %1082 = vmatmul.mubr.f32.gmra.mrb[0].mxu0 %v1006
      %v1083 = vpop.f32.mrb[0].mxu0
      %v1084 = vadd.f32 0.0, %v1083
      %v1085 = vpop.f32.mrb[0].mxu0
      %1086 = vmatprep.mubr.f32.mxu0 0.0
      %1087 = vmatmul.mubr.f32.gmra.mrb[0].mxu0 %v1009
      %v1088 = vpop.f32.mrb[0].mxu0
      %v1089 = vadd.f32 0.0, %v1088
      %v1090 = vpop.f32.mrb[0].mxu0
      %1091 = vmatprep.mubr.f32.mxu0 0.0
      %1092 = vmatmul.mubr.f32.gmra.mrb[0].mxu0 %v1012
      %v1093 = vpop.f32.mrb[0].mxu0
      %v1094 = vadd.f32 0.0, %v1093
      %v1095 = vpop.f32.mrb[0].mxu0
      %1096 = vmatprep.mubr.f32.mxu0 0.0
      %1097 = vmatmul.mubr.f32.gmra.mrb[0].mxu0 %v1015
      %v1098 = vpop.f32.mrb[0].mxu0
      %v1099 = vadd.f32 0.0, %v1098
      %v1100 = vpop.f32.mrb[0].mxu0
      %1101 = vdwg.mxu0
      %v1102 = vadd.s32 %v998, 1
      %vm1103 = vcmp.eq.s32.totalorder %v606, %v1102
      %vm1104 = vcmp.eq.s32.totalorder %v607, %v1102
      %v1105 = vsel %vm1103, 1, 0
      %v1106 = vsel %vm1104, 1, 0
      %v1107 = vcvt.s32.f32 %v1105
      %v1108 = vcvt.s32.f32 %v1106
      %1109 = vmatprep.subr.mxu0 0.0
      %1110 = vmatpush1.msra.mxu0 %v1107
      %1111 = vmatprep.subr.mxu0 0.0
      %1112 = vmatpush1.msra.mxu0 %v1108
      %1113 = vmatprep.subr.mxu0 0.0
      %1114 = vmatpush1.msra.mxu0 0.0
      %1115 = vmatprep.subr.mxu0 0.0
      %1116 = vmatpush1.msra.mxu0 0.0
      %1117 = vmatprep.subr.mxu0 0.0
      %1118 = vmatpush1.msra.mxu0 0.0
      %1119 = vmatprep.subr.mxu0 0.0
      %1120 = vmatpush1.msra.mxu0 0.0
      %1121 = vmatprep.subr.mxu0 0.0
      %1122 = vmatpush1.msra.mxu0 0.0
      %1123 = vmatprep.subr.mxu0 0.0
      %1124 = vmatpush1.msra.mxu0 0.0
      %1125 = vmatprep.subr.mxu0 0.0
      %1126 = vmatpush1.msra.mxu0 0.0
      %1127 = vmatprep.subr.mxu0 0.0
      %1128 = vmatpush1.msra.mxu0 0.0
      %1129 = vmatprep.subr.mxu0 0.0
      %1130 = vmatpush1.msra.mxu0 0.0
      %1131 = vmatprep.subr.mxu0 0.0
      %1132 = vmatpush1.msra.mxu0 0.0
      %1133 = vmatprep.subr.mxu0 0.0
      %1134 = vmatpush1.msra.mxu0 0.0
      %1135 = vmatprep.subr.mxu0 0.0
      %1136 = vmatpush1.msra.mxu0 0.0
      %1137 = vmatprep.subr.mxu0 0.0
      %1138 = vmatpush1.msra.mxu0 0.0
      %1139 = vmatprep.subr.mxu0 0.0
      %1140 = vmatpush1.msra.mxu0 0.0
      %1141 = vmatprep.subr.mxu0 0.0
      %1142 = vmatpush1.msra.mxu0 0.0
      %1143 = vmatprep.subr.mxu0 0.0
      %1144 = vmatpush1.msra.mxu0 0.0
      %1145 = vmatprep.subr.mxu0 0.0
      %1146 = vmatpush1.msra.mxu0 0.0
      %1147 = vmatprep.subr.mxu0 0.0
      %1148 = vmatpush1.msra.mxu0 0.0
      %1149 = vmatprep.subr.mxu0 0.0
      %1150 = vmatpush1.msra.mxu0 0.0
      %1151 = vmatprep.subr.mxu0 0.0
      %1152 = vmatpush1.msra.mxu0 0.0
      %1153 = vmatprep.subr.mxu0 0.0
      %1154 = vmatpush1.msra.mxu0 0.0
      %1155 = vmatprep.subr.mxu0 0.0
      %1156 = vmatpush1.msra.mxu0 0.0
      %1157 = vmatprep.subr.mxu0 0.0
      %1158 = vmatpush1.msra.mxu0 0.0
      %1159 = vmatprep.subr.mxu0 0.0
      %1160 = vmatpush1.msra.mxu0 0.0
      %1161 = vmatprep.subr.mxu0 0.0
      %1162 = vmatpush1.msra.mxu0 0.0
      %1163 = vmatprep.subr.mxu0 0.0
      %1164 = vmatpush1.msra.mxu0 0.0
      %1165 = vmatprep.subr.mxu0 0.0
      %1166 = vmatpush1.msra.mxu0 0.0
      %1167 = vmatprep.subr.mxu0 0.0
      %1168 = vmatpush1.msra.mxu0 0.0
      %1169 = vmatprep.subr.mxu0 0.0
      %1170 = vmatpush1.msra.mxu0 0.0
      %1171 = vmatprep.subr.mxu0 0.0
      %1172 = vmatpush1.msra.mxu0 0.0
      %1173 = vmatprep.mubr.f32.mxu0 0.0
      %1174 = vmatmul.mubr.f32.gmra.mrb[0].mxu0 %v1006
      %v1175 = vpop.f32.mrb[0].mxu0
      %v1176 = vadd.f32 0.0, %v1175
      %v1177 = vpop.f32.mrb[0].mxu0
      %1178 = vmatprep.mubr.f32.mxu0 0.0
      %1179 = vmatmul.mubr.f32.gmra.mrb[0].mxu0 %v1009
      %v1180 = vpop.f32.mrb[0].mxu0
      %v1181 = vadd.f32 0.0, %v1180
      %v1182 = vpop.f32.mrb[0].mxu0
      %1183 = vmatprep.mubr.f32.mxu0 0.0
      %1184 = vmatmul.mubr.f32.gmra.mrb[0].mxu0 %v1012
      %v1185 = vpop.f32.mrb[0].mxu0
      %v1186 = vadd.f32 0.0, %v1185
      %v1187 = vpop.f32.mrb[0].mxu0
      %1188 = vmatprep.mubr.f32.mxu0 0.0
      %1189 = vmatmul.mubr.f32.gmra.mrb[0].mxu0 %v1015
      %v1190 = vpop.f32.mrb[0].mxu0
      %v1191 = vadd.f32 0.0, %v1190
      %v1192 = vpop.f32.mrb[0].mxu0
      %1193 = vdwg.mxu0
      %v1194 = vmax.f32 %v1084, %v1176
      %v1195 = vmax.f32 %v1089, %v1181
      %v1196 = vmax.f32 %v1094, %v1186
      %v1197 = vmax.f32 %v1099, %v1191
      %vm1198 = vcmask 64512
      %v1200 = vsel %vm1198, %v1194, 0
      %v1203 = vsel %vm1198, %v1195, 0
      %v1206 = vsel %vm1198, %v1196, 0
      %v1209 = vsel %vm1198, %v1197, 0
      %1211 = vmatprep.subr.mxu0 0.0
      %1212 = vmatpush1.msra.mxu0 %v616
      %1213 = vmatprep.subr.mxu0 0.0
      %1214 = vmatpush1.msra.mxu0 0.0
      %1215 = vmatprep.subr.mxu0 0.0
      %1216 = vmatpush1.msra.mxu0 0.0
      %1217 = vmatprep.subr.mxu0 0.0
      %1218 = vmatpush1.msra.mxu0 0.0
      %1219 = vmatprep.subr.mxu0 0.0
      %1220 = vmatpush1.msra.mxu0 0.0
      %1221 = vmatprep.subr.mxu0 0.0
      %1222 = vmatpush1.msra.mxu0 0.0
      %1223 = vmatprep.subr.mxu0 0.0
      %1224 = vmatpush1.msra.mxu0 0.0
      %1225 = vmatprep.subr.mxu0 0.0
      %1226 = vmatpush1.msra.mxu0 0.0
      %1227 = vmatprep.subr.mxu0 0.0
      %1228 = vmatpush1.msra.mxu0 0.0
      %1229 = vmatprep.subr.mxu0 0.0
      %1230 = vmatpush1.msra.mxu0 0.0
      %1231 = vmatprep.subr.mxu0 0.0
      %1232 = vmatpush1.msra.mxu0 0.0
      %1233 = vmatprep.subr.mxu0 0.0
      %1234 = vmatpush1.msra.mxu0 0.0
      %1235 = vmatprep.subr.mxu0 0.0
      %1236 = vmatpush1.msra.mxu0 0.0
      %1237 = vmatprep.subr.mxu0 0.0
      %1238 = vmatpush1.msra.mxu0 0.0
      %1239 = vmatprep.subr.mxu0 0.0
      %1240 = vmatpush1.msra.mxu0 0.0
      %1241 = vmatprep.subr.mxu0 0.0
      %1242 = vmatpush1.msra.mxu0 0.0
      %1243 = vmatprep.subr.mxu0 0.0
      %1244 = vmatpush1.msra.mxu0 0.0
      %1245 = vmatprep.subr.mxu0 0.0
      %1246 = vmatpush1.msra.mxu0 0.0
      %1247 = vmatprep.subr.mxu0 0.0
      %1248 = vmatpush1.msra.mxu0 0.0
      %1249 = vmatprep.subr.mxu0 0.0
      %1250 = vmatpush1.msra.mxu0 0.0
      %1251 = vmatprep.subr.mxu0 0.0
      %1252 = vmatpush1.msra.mxu0 0.0
      %1253 = vmatprep.subr.mxu0 0.0
      %1254 = vmatpush1.msra.mxu0 0.0
      %1255 = vmatprep.subr.mxu0 0.0
      %1256 = vmatpush1.msra.mxu0 0.0
      %1257 = vmatprep.subr.mxu0 0.0
      %1258 = vmatpush1.msra.mxu0 0.0
      %1259 = vmatprep.subr.mxu0 0.0
      %1260 = vmatpush1.msra.mxu0 0.0
      %1261 = vmatprep.subr.mxu0 0.0
      %1262 = vmatpush1.msra.mxu0 0.0
      %1263 = vmatprep.subr.mxu0 0.0
      %1264 = vmatpush1.msra.mxu0 0.0
      %1265 = vmatprep.subr.mxu0 0.0
      %1266 = vmatpush1.msra.mxu0 0.0
      %1267 = vmatprep.subr.mxu0 0.0
      %1268 = vmatpush1.msra.mxu0 0.0
      %1269 = vmatprep.subr.mxu0 0.0
      %1270 = vmatpush1.msra.mxu0 0.0
      %1271 = vmatprep.subr.mxu0 0.0
      %1272 = vmatpush1.msra.mxu0 0.0
      %1273 = vmatprep.subr.mxu0 0.0
      %1274 = vmatpush1.msra.mxu0 0.0
      %1275 = vmatprep.mubr.f32.mxu0 0.0
      %1276 = vmatmul.mubr.f32.gmra.mrb[0].mxu0 %v1200
      %v1277 = vpop.f32.mrb[0].mxu0
      %v1278 = vadd.f32 0.0, %v1277
      %v1279 = vpop.f32.mrb[0].mxu0
      %1280 = vmatprep.mubr.f32.mxu0 0.0
      %1281 = vmatmul.mubr.f32.gmra.mrb[0].mxu0 %v1203
      %v1282 = vpop.f32.mrb[0].mxu0
      %v1283 = vadd.f32 0.0, %v1282
      %v1284 = vpop.f32.mrb[0].mxu0
      %1285 = vmatprep.mubr.f32.mxu0 0.0
      %1286 = vmatmul.mubr.f32.gmra.mrb[0].mxu0 %v1206
      %v1287 = vpop.f32.mrb[0].mxu0
      %v1288 = vadd.f32 0.0, %v1287
      %v1289 = vpop.f32.mrb[0].mxu0
      %1290 = vmatprep.mubr.f32.mxu0 0.0
      %1291 = vmatmul.mubr.f32.gmra.mrb[0].mxu0 %v1209
      %v1292 = vpop.f32.mrb[0].mxu0
      %v1293 = vadd.f32 0.0, %v1292
      %v1294 = vpop.f32.mrb[0].mxu0
      %1295 = vdwg.mxu0
      %v1296 = vld [vmem:[%s3] sm:$0xff]
      %v1297 = vld [vmem:[%s3 + $0x8] sm:$0xff]
      %v1298 = vld [vmem:[%s3 + $0x10] sm:$0xff]
      %v1299 = vld [vmem:[%s3 + $0x18] sm:$0xff]
      %v1300 = vld [vmem:[%s3 + $0x20] sm:$0xff]
      %v1301 = vld [vmem:[%s3 + $0x28] sm:$0xff]
      %v1302 = vld [vmem:[%s3 + $0x30] sm:$0xff]
      %v1303 = vld [vmem:[%s3 + $0x38] sm:$0xff]
      %v1304 = vld [vmem:[%s3 + $0x40] sm:$0xff]
      %v1305 = vld [vmem:[%s3 + $0x48] sm:$0xff]
      %v1306 = vld [vmem:[%s3 + $0x50] sm:$0xff]
      %v1307 = vld [vmem:[%s3 + $0x58] sm:$0xff]
      %vm1308 = vcmask 261120
      %v1310 = vsel %vm1308, %v1296, 0
      %v1313 = vsel %vm1308, %v1297, 0
      %v1316 = vsel %vm1308, %v1298, 0
      %v1319 = vsel %vm1308, %v1299, 0
      %v1322 = vsel %vm1308, %v1300, 0
      %v1325 = vsel %vm1308, %v1301, 0
      %v1328 = vsel %vm1308, %v1302, 0
      %v1331 = vsel %vm1308, %v1303, 0
      %v1334 = vsel %vm1308, %v1304, 0
      %v1337 = vsel %vm1308, %v1305, 0
      %v1340 = vsel %vm1308, %v1306, 0
      %v1343 = vsel %vm1308, %v1307, 0
      %1345 = vmatprep.subr.mxu0 0.0
      %1346 = vmatpush1.msra.mxu0 %v1278
      %1347 = vmatprep.subr.mxu0 0.0
      %1348 = vmatpush1.msra.mxu0 %v1283
      %1349 = vmatprep.subr.mxu0 0.0
      %1350 = vmatpush1.msra.mxu0 %v1288
      %1351 = vmatprep.subr.mxu0 0.0
      %1352 = vmatpush1.msra.mxu0 %v1293
      %1353 = vmatprep.subr.mxu0 0.0
      %1354 = vmatpush1.msra.mxu0 0.0
      %1355 = vmatprep.subr.mxu0 0.0
      %1356 = vmatpush1.msra.mxu0 0.0
      %1357 = vmatprep.subr.mxu0 0.0
      %1358 = vmatpush1.msra.mxu0 0.0
      %1359 = vmatprep.subr.mxu0 0.0
      %1360 = vmatpush1.msra.mxu0 0.0
      %1361 = vmatprep.subr.mxu0 0.0
      %1362 = vmatpush1.msra.mxu0 0.0
      %1363 = vmatprep.subr.mxu0 0.0
      %1364 = vmatpush1.msra.mxu0 0.0
      %1365 = vmatprep.subr.mxu0 0.0
      %1366 = vmatpush1.msra.mxu0 0.0
      %1367 = vmatprep.subr.mxu0 0.0
      %1368 = vmatpush1.msra.mxu0 0.0
      %1369 = vmatprep.subr.mxu0 0.0
      %1370 = vmatpush1.msra.mxu0 0.0
      %1371 = vmatprep.subr.mxu0 0.0
      %1372 = vmatpush1.msra.mxu0 0.0
      %1373 = vmatprep.subr.mxu0 0.0
      %1374 = vmatpush1.msra.mxu0 0.0
      %1375 = vmatprep.subr.mxu0 0.0
      %1376 = vmatpush1.msra.mxu0 0.0
      %1377 = vmatprep.subr.mxu0 0.0
      %1378 = vmatpush1.msra.mxu0 0.0
      %1379 = vmatprep.subr.mxu0 0.0
      %1380 = vmatpush1.msra.mxu0 0.0
      %1381 = vmatprep.subr.mxu0 0.0
      %1382 = vmatpush1.msra.mxu0 0.0
      %1383 = vmatprep.subr.mxu0 0.0
      %1384 = vmatpush1.msra.mxu0 0.0
      %1385 = vmatprep.subr.mxu0 0.0
      %1386 = vmatpush1.msra.mxu0 0.0
      %1387 = vmatprep.subr.mxu0 0.0
      %1388 = vmatpush1.msra.mxu0 0.0
      %1389 = vmatprep.subr.mxu0 0.0
      %1390 = vmatpush1.msra.mxu0 0.0
      %1391 = vmatprep.subr.mxu0 0.0
      %1392 = vmatpush1.msra.mxu0 0.0
      %1393 = vmatprep.subr.mxu0 0.0
      %1394 = vmatpush1.msra.mxu0 0.0
      %1395 = vmatprep.subr.mxu0 0.0
      %1396 = vmatpush1.msra.mxu0 0.0
      %1397 = vmatprep.subr.mxu0 0.0
      %1398 = vmatpush1.msra.mxu0 0.0
      %1399 = vmatprep.subr.mxu0 0.0
      %1400 = vmatpush1.msra.mxu0 0.0
      %1401 = vmatprep.subr.mxu0 0.0
      %1402 = vmatpush1.msra.mxu0 0.0
      %1403 = vmatprep.subr.mxu0 0.0
      %1404 = vmatpush1.msra.mxu0 0.0
      %1405 = vmatprep.subr.mxu0 0.0
      %1406 = vmatpush1.msra.mxu0 0.0
      %1407 = vmatprep.subr.mxu0 0.0
      %1408 = vmatpush1.msra.mxu0 0.0
      %1409 = vmatprep.mubr.f32.mxu0 0.0
      %1410 = vmatmul.mubr.f32.gmra.mrb[0].mxu0 %v1310
      %v1411 = vpop.f32.mrb[0].mxu0
      %v1412 = vadd.f32 0.0, %v1411
      %v1413 = vpop.f32.mrb[0].mxu0
      %1414 = vmatprep.mubr.f32.mxu0 0.0
      %1415 = vmatmul.mubr.f32.gmra.mrb[0].mxu0 %v1313
      %v1416 = vpop.f32.mrb[0].mxu0
      %v1417 = vadd.f32 0.0, %v1416
      %v1418 = vpop.f32.mrb[0].mxu0
      %1419 = vmatprep.mubr.f32.mxu0 0.0
      %1420 = vmatmul.mubr.f32.gmra.mrb[0].mxu0 %v1316
      %v1421 = vpop.f32.mrb[0].mxu0
      %v1422 = vadd.f32 0.0, %v1421
      %v1423 = vpop.f32.mrb[0].mxu0
      %1424 = vmatprep.mubr.f32.mxu0 0.0
      %1425 = vmatmul.mubr.f32.gmra.mrb[0].mxu0 %v1319
      %v1426 = vpop.f32.mrb[0].mxu0
      %v1427 = vadd.f32 0.0, %v1426
      %v1428 = vpop.f32.mrb[0].mxu0
      %1429 = vmatprep.mubr.f32.mxu0 0.0
      %1430 = vmatmul.mubr.f32.gmra.mrb[0].mxu0 %v1322
      %v1431 = vpop.f32.mrb[0].mxu0
      %v1432 = vadd.f32 0.0, %v1431
      %v1433 = vpop.f32.mrb[0].mxu0
      %1434 = vmatprep.mubr.f32.mxu0 0.0
      %1435 = vmatmul.mubr.f32.gmra.mrb[0].mxu0 %v1325
      %v1436 = vpop.f32.mrb[0].mxu0
      %v1437 = vadd.f32 0.0, %v1436
      %v1438 = vpop.f32.mrb[0].mxu0
      %1439 = vmatprep.mubr.f32.mxu0 0.0
      %1440 = vmatmul.mubr.f32.gmra.mrb[0].mxu0 %v1328
      %v1441 = vpop.f32.mrb[0].mxu0
      %v1442 = vadd.f32 0.0, %v1441
      %v1443 = vpop.f32.mrb[0].mxu0
      %1444 = vmatprep.mubr.f32.mxu0 0.0
      %1445 = vmatmul.mubr.f32.gmra.mrb[0].mxu0 %v1331
      %v1446 = vpop.f32.mrb[0].mxu0
      %v1447 = vadd.f32 0.0, %v1446
      %v1448 = vpop.f32.mrb[0].mxu0
      %1449 = vmatprep.mubr.f32.mxu0 0.0
      %1450 = vmatmul.mubr.f32.gmra.mrb[0].mxu0 %v1334
      %v1451 = vpop.f32.mrb[0].mxu0
      %v1452 = vadd.f32 0.0, %v1451
      %v1453 = vpop.f32.mrb[0].mxu0
      %1454 = vmatprep.mubr.f32.mxu0 0.0
      %1455 = vmatmul.mubr.f32.gmra.mrb[0].mxu0 %v1337
      %v1456 = vpop.f32.mrb[0].mxu0
      %v1457 = vadd.f32 0.0, %v1456
      %v1458 = vpop.f32.mrb[0].mxu0
      %1459 = vmatprep.mubr.f32.mxu0 0.0
      %1460 = vmatmul.mubr.f32.gmra.mrb[0].mxu0 %v1340
      %v1461 = vpop.f32.mrb[0].mxu0
      %v1462 = vadd.f32 0.0, %v1461
      %v1463 = vpop.f32.mrb[0].mxu0
      %1464 = vmatprep.mubr.f32.mxu0 0.0
      %1465 = vmatmul.mubr.f32.gmra.mrb[0].mxu0 %v1343
      %v1466 = vpop.f32.mrb[0].mxu0
      %v1467 = vadd.f32 0.0, %v1466
      %v1468 = vpop.f32.mrb[0].mxu0
      %1469 = vdwg.mxu0
      %1474 = vrot.lane.b32.xlu0 %v1432, 127
      %v1475 = vpop.permute.xlu0 %1474
      %1476 = vrot.lane.b32.xlu0 %v1437, 127
      %v1477 = vpop.permute.xlu0 %1476
      %1478 = vrot.lane.b32.xlu0 %v1442, 127
      %v1479 = vpop.permute.xlu0 %1478
      %1480 = vrot.lane.b32.xlu0 %v1447, 127
      %v1481 = vpop.permute.xlu0 %1480
      %v1486 = vadd.f32 %v1412, %v1475
      %v1487 = vadd.f32 %v1417, %v1477
      %v1488 = vadd.f32 %v1422, %v1479
      %v1489 = vadd.f32 %v1427, %v1481
      %1494 = vrot.lane.b32.xlu0 %v1452, 126
      %v1495 = vpop.permute.xlu0 %1494
      %1496 = vrot.lane.b32.xlu0 %v1457, 126
      %v1497 = vpop.permute.xlu0 %1496
      %1498 = vrot.lane.b32.xlu0 %v1462, 126
      %v1499 = vpop.permute.xlu0 %1498
      %1500 = vrot.lane.b32.xlu0 %v1467, 126
      %v1501 = vpop.permute.xlu0 %1500
      %v1506 = vadd.f32 %v1486, %v1495
      %v1507 = vadd.f32 %v1487, %v1497
      %v1508 = vadd.f32 %v1488, %v1499
      %v1509 = vadd.f32 %v1489, %v1501
      %v1510 = vld [vmem:[%s4] sm:$0xff]
      %v1511 = vld [vmem:[%s4 + $0x8] sm:$0xff]
      %v1512 = vld [vmem:[%s4 + $0x10] sm:$0xff]
      %v1513 = vld [vmem:[%s4 + $0x18] sm:$0xff]
      %1515 = vset.pattern.permute.xlu0 0
      %1516 = vperm.xlu0 %1515, %v1510
      %v1517 = vpop.permute.xlu0 %1516
      %1520 = vset.pattern.permute.xlu0 0
      %1521 = vperm.xlu0 %1520, %v1511
      %v1522 = vpop.permute.xlu0 %1521
      %1525 = vset.pattern.permute.xlu0 0
      %1526 = vperm.xlu0 %1525, %v1512
      %v1527 = vpop.permute.xlu0 %1526
      %1530 = vset.pattern.permute.xlu0 0
      %1531 = vperm.xlu0 %1530, %v1513
      %v1532 = vpop.permute.xlu0 %1531
      %v1534 = vadd.f32 %v1506, %v1517
      %v1535 = vadd.f32 %v1507, %v1522
      %v1536 = vadd.f32 %v1508, %v1527
      %v1537 = vadd.f32 %v1509, %v1532
      %vm1538 = vcmp.ge.f32.partialorder %v1534, 0.0
      %vm1539 = vcmp.ge.f32.partialorder %v1535, 0.0
      %vm1540 = vcmp.ge.f32.partialorder %v1536, 0.0
      %vm1541 = vcmp.ge.f32.partialorder %v1537, 0.0
      %v1542 = vmul.f32 %v1534, 0.2
      %v1543 = vmul.f32 %v1535, 0.2
      %v1544 = vmul.f32 %v1536, 0.2
      %v1545 = vmul.f32 %v1537, 0.2
      %v1546 = vsel %vm1538, %v1534, %v1542
      %v1547 = vsel %vm1539, %v1535, %v1543
      %v1548 = vsel %vm1540, %v1536, %v1544
      %v1549 = vsel %vm1541, %v1537, %v1545
      %1550 = vset.pattern.permute.xlu0 1
      %1551 = vperm.xlu0 %1550, %v1510
      %v1552 = vpop.permute.xlu0 %1551
      %1554 = vset.pattern.permute.xlu0 1
      %1555 = vperm.xlu0 %1554, %v1511
      %v1556 = vpop.permute.xlu0 %1555
      %1558 = vset.pattern.permute.xlu0 1
      %1559 = vperm.xlu0 %1558, %v1512
      %v1560 = vpop.permute.xlu0 %1559
      %1562 = vset.pattern.permute.xlu0 1
      %1563 = vperm.xlu0 %1562, %v1513
      %v1564 = vpop.permute.xlu0 %1563
      %v1566 = vmul.f32 %v1546, %v1552
      %v1567 = vmul.f32 %v1547, %v1556
      %v1568 = vmul.f32 %v1548, %v1560
      %v1569 = vmul.f32 %v1549, %v1564
      %1570 = vset.pattern.permute.xlu0 2
      %1571 = vperm.xlu0 %1570, %v1510
      %v1572 = vpop.permute.xlu0 %1571
      %1574 = vset.pattern.permute.xlu0 2
      %1575 = vperm.xlu0 %1574, %v1511
      %v1576 = vpop.permute.xlu0 %1575
      %1578 = vset.pattern.permute.xlu0 2
      %1579 = vperm.xlu0 %1578, %v1512
      %v1580 = vpop.permute.xlu0 %1579
      %1582 = vset.pattern.permute.xlu0 2
      %1583 = vperm.xlu0 %1582, %v1513
      %v1584 = vpop.permute.xlu0 %1583
      %v1586 = vadd.f32 %v1566, %v1572
      %v1587 = vadd.f32 %v1567, %v1576
      %v1588 = vadd.f32 %v1568, %v1580
      %v1589 = vadd.f32 %v1569, %v1584
      %v1591 = vsel %vm1198, %v1586, 0
      %v1594 = vsel %vm1198, %v1587, 0
      %v1597 = vsel %vm1198, %v1588, 0
      %v1600 = vsel %vm1198, %v1589, 0
      %1602 = vmatprep.subr.mxu0 0.0
      %1603 = vmatpush1.msra.mxu0 %v616
      %1604 = vmatprep.subr.mxu0 0.0
      %1605 = vmatpush1.msra.mxu0 0.0
      %1606 = vmatprep.subr.mxu0 0.0
      %1607 = vmatpush1.msra.mxu0 0.0
      %1608 = vmatprep.subr.mxu0 0.0
      %1609 = vmatpush1.msra.mxu0 0.0
      %1610 = vmatprep.subr.mxu0 0.0
      %1611 = vmatpush1.msra.mxu0 0.0
      %1612 = vmatprep.subr.mxu0 0.0
      %1613 = vmatpush1.msra.mxu0 0.0
      %1614 = vmatprep.subr.mxu0 0.0
      %1615 = vmatpush1.msra.mxu0 0.0
      %1616 = vmatprep.subr.mxu0 0.0
      %1617 = vmatpush1.msra.mxu0 0.0
      %1618 = vmatprep.subr.mxu0 0.0
      %1619 = vmatpush1.msra.mxu0 0.0
      %1620 = vmatprep.subr.mxu0 0.0
      %1621 = vmatpush1.msra.mxu0 0.0
      %1622 = vmatprep.subr.mxu0 0.0
      %1623 = vmatpush1.msra.mxu0 0.0
      %1624 = vmatprep.subr.mxu0 0.0
      %1625 = vmatpush1.msra.mxu0 0.0
      %1626 = vmatprep.subr.mxu0 0.0
      %1627 = vmatpush1.msra.mxu0 0.0
      %1628 = vmatprep.subr.mxu0 0.0
      %1629 = vmatpush1.msra.mxu0 0.0
      %1630 = vmatprep.subr.mxu0 0.0
      %1631 = vmatpush1.msra.mxu0 0.0
      %1632 = vmatprep.subr.mxu0 0.0
      %1633 = vmatpush1.msra.mxu0 0.0
      %1634 = vmatprep.subr.mxu0 0.0
      %1635 = vmatpush1.msra.mxu0 0.0
      %1636 = vmatprep.subr.mxu0 0.0
      %1637 = vmatpush1.msra.mxu0 0.0
      %1638 = vmatprep.subr.mxu0 0.0
      %1639 = vmatpush1.msra.mxu0 0.0
      %1640 = vmatprep.subr.mxu0 0.0
      %1641 = vmatpush1.msra.mxu0 0.0
      %1642 = vmatprep.subr.mxu0 0.0
      %1643 = vmatpush1.msra.mxu0 0.0
      %1644 = vmatprep.subr.mxu0 0.0
      %1645 = vmatpush1.msra.mxu0 0.0
      %1646 = vmatprep.subr.mxu0 0.0
      %1647 = vmatpush1.msra.mxu0 0.0
      %1648 = vmatprep.subr.mxu0 0.0
      %1649 = vmatpush1.msra.mxu0 0.0
      %1650 = vmatprep.subr.mxu0 0.0
      %1651 = vmatpush1.msra.mxu0 0.0
      %1652 = vmatprep.subr.mxu0 0.0
      %1653 = vmatpush1.msra.mxu0 0.0
      %1654 = vmatprep.subr.mxu0 0.0
      %1655 = vmatpush1.msra.mxu0 0.0
      %1656 = vmatprep.subr.mxu0 0.0
      %1657 = vmatpush1.msra.mxu0 0.0
      %1658 = vmatprep.subr.mxu0 0.0
      %1659 = vmatpush1.msra.mxu0 0.0
      %1660 = vmatprep.subr.mxu0 0.0
      %1661 = vmatpush1.msra.mxu0 0.0
      %1662 = vmatprep.subr.mxu0 0.0
      %1663 = vmatpush1.msra.mxu0 0.0
      %1664 = vmatprep.subr.mxu0 0.0
      %1665 = vmatpush1.msra.mxu0 0.0
      %1666 = vmatprep.mubr.f32.mxu0 0.0
      %1667 = vmatmul.mubr.f32.gmra.mrb[0].mxu0 %v1591
      %v1668 = vpop.f32.mrb[0].mxu0
      %v1669 = vadd.f32 0.0, %v1668
      %v1670 = vpop.f32.mrb[0].mxu0
      %1671 = vmatprep.mubr.f32.mxu0 0.0
      %1672 = vmatmul.mubr.f32.gmra.mrb[0].mxu0 %v1594
      %v1673 = vpop.f32.mrb[0].mxu0
      %v1674 = vadd.f32 0.0, %v1673
      %v1675 = vpop.f32.mrb[0].mxu0
      %1676 = vmatprep.mubr.f32.mxu0 0.0
      %1677 = vmatmul.mubr.f32.gmra.mrb[0].mxu0 %v1597
      %v1678 = vpop.f32.mrb[0].mxu0
      %v1679 = vadd.f32 0.0, %v1678
      %v1680 = vpop.f32.mrb[0].mxu0
      %1681 = vmatprep.mubr.f32.mxu0 0.0
      %1682 = vmatmul.mubr.f32.gmra.mrb[0].mxu0 %v1600
      %v1683 = vpop.f32.mrb[0].mxu0
      %v1684 = vadd.f32 0.0, %v1683
      %v1685 = vpop.f32.mrb[0].mxu0
      %1686 = vdwg.mxu0
      %v1687 = vld [vmem:[%s5] sm:$0xff]
      %v1688 = vld [vmem:[%s5 + $0x8] sm:$0xff]
      %v1689 = vld [vmem:[%s5 + $0x10] sm:$0xff]
      %v1690 = vld [vmem:[%s5 + $0x18] sm:$0xff]
      %v1691 = vld [vmem:[%s5 + $0x20] sm:$0xff]
      %v1692 = vld [vmem:[%s5 + $0x28] sm:$0xff]
      %v1693 = vld [vmem:[%s5 + $0x30] sm:$0xff]
      %v1694 = vld [vmem:[%s5 + $0x38] sm:$0xff]
      %v1695 = vld [vmem:[%s5 + $0x40] sm:$0xff]
      %v1696 = vld [vmem:[%s5 + $0x48] sm:$0xff]
      %v1697 = vld [vmem:[%s5 + $0x50] sm:$0xff]
      %v1698 = vld [vmem:[%s5 + $0x58] sm:$0xff]
      %v1700 = vsel %vm1308, %v1687, 0
      %v1703 = vsel %vm1308, %v1688, 0
      %v1706 = vsel %vm1308, %v1689, 0
      %v1709 = vsel %vm1308, %v1690, 0
      %v1712 = vsel %vm1308, %v1691, 0
      %v1715 = vsel %vm1308, %v1692, 0
      %v1718 = vsel %vm1308, %v1693, 0
      %v1721 = vsel %vm1308, %v1694, 0
      %v1724 = vsel %vm1308, %v1695, 0
      %v1727 = vsel %vm1308, %v1696, 0
      %v1730 = vsel %vm1308, %v1697, 0
      %v1733 = vsel %vm1308, %v1698, 0
      %1735 = vmatprep.subr.mxu0 0.0
      %1736 = vmatpush1.msra.mxu0 %v1669
      %1737 = vmatprep.subr.mxu0 0.0
      %1738 = vmatpush1.msra.mxu0 %v1674
      %1739 = vmatprep.subr.mxu0 0.0
      %1740 = vmatpush1.msra.mxu0 %v1679
      %1741 = vmatprep.subr.mxu0 0.0
      %1742 = vmatpush1.msra.mxu0 %v1684
      %1743 = vmatprep.subr.mxu0 0.0
      %1744 = vmatpush1.msra.mxu0 0.0
      %1745 = vmatprep.subr.mxu0 0.0
      %1746 = vmatpush1.msra.mxu0 0.0
      %1747 = vmatprep.subr.mxu0 0.0
      %1748 = vmatpush1.msra.mxu0 0.0
      %1749 = vmatprep.subr.mxu0 0.0
      %1750 = vmatpush1.msra.mxu0 0.0
      %1751 = vmatprep.subr.mxu0 0.0
      %1752 = vmatpush1.msra.mxu0 0.0
      %1753 = vmatprep.subr.mxu0 0.0
      %1754 = vmatpush1.msra.mxu0 0.0
      %1755 = vmatprep.subr.mxu0 0.0
      %1756 = vmatpush1.msra.mxu0 0.0
      %1757 = vmatprep.subr.mxu0 0.0
      %1758 = vmatpush1.msra.mxu0 0.0
      %1759 = vmatprep.subr.mxu0 0.0
      %1760 = vmatpush1.msra.mxu0 0.0
      %1761 = vmatprep.subr.mxu0 0.0
      %1762 = vmatpush1.msra.mxu0 0.0
      %1763 = vmatprep.subr.mxu0 0.0
      %1764 = vmatpush1.msra.mxu0 0.0
      %1765 = vmatprep.subr.mxu0 0.0
      %1766 = vmatpush1.msra.mxu0 0.0
      %1767 = vmatprep.subr.mxu0 0.0
      %1768 = vmatpush1.msra.mxu0 0.0
      %1769 = vmatprep.subr.mxu0 0.0
      %1770 = vmatpush1.msra.mxu0 0.0
      %1771 = vmatprep.subr.mxu0 0.0
      %1772 = vmatpush1.msra.mxu0 0.0
      %1773 = vmatprep.subr.mxu0 0.0
      %1774 = vmatpush1.msra.mxu0 0.0
      %1775 = vmatprep.subr.mxu0 0.0
      %1776 = vmatpush1.msra.mxu0 0.0
      %1777 = vmatprep.subr.mxu0 0.0
      %1778 = vmatpush1.msra.mxu0 0.0
      %1779 = vmatprep.subr.mxu0 0.0
      %1780 = vmatpush1.msra.mxu0 0.0
      %1781 = vmatprep.subr.mxu0 0.0
      %1782 = vmatpush1.msra.mxu0 0.0
      %1783 = vmatprep.subr.mxu0 0.0
      %1784 = vmatpush1.msra.mxu0 0.0
      %1785 = vmatprep.subr.mxu0 0.0
      %1786 = vmatpush1.msra.mxu0 0.0
      %1787 = vmatprep.subr.mxu0 0.0
      %1788 = vmatpush1.msra.mxu0 0.0
      %1789 = vmatprep.subr.mxu0 0.0
      %1790 = vmatpush1.msra.mxu0 0.0
      %1791 = vmatprep.subr.mxu0 0.0
      %1792 = vmatpush1.msra.mxu0 0.0
      %1793 = vmatprep.subr.mxu0 0.0
      %1794 = vmatpush1.msra.mxu0 0.0
      %1795 = vmatprep.subr.mxu0 0.0
      %1796 = vmatpush1.msra.mxu0 0.0
      %1797 = vmatprep.subr.mxu0 0.0
      %1798 = vmatpush1.msra.mxu0 0.0
      %1799 = vmatprep.mubr.f32.mxu0 0.0
      %1800 = vmatmul.mubr.f32.gmra.mrb[0].mxu0 %v1700
      %v1801 = vpop.f32.mrb[0].mxu0
      %v1802 = vadd.f32 0.0, %v1801
      %v1803 = vpop.f32.mrb[0].mxu0
      %1804 = vmatprep.mubr.f32.mxu0 0.0
      %1805 = vmatmul.mubr.f32.gmra.mrb[0].mxu0 %v1703
      %v1806 = vpop.f32.mrb[0].mxu0
      %v1807 = vadd.f32 0.0, %v1806
      %v1808 = vpop.f32.mrb[0].mxu0
      %1809 = vmatprep.mubr.f32.mxu0 0.0
      %1810 = vmatmul.mubr.f32.gmra.mrb[0].mxu0 %v1706
      %v1811 = vpop.f32.mrb[0].mxu0
      %v1812 = vadd.f32 0.0, %v1811
      %v1813 = vpop.f32.mrb[0].mxu0
      %1814 = vmatprep.mubr.f32.mxu0 0.0
      %1815 = vmatmul.mubr.f32.gmra.mrb[0].mxu0 %v1709
      %v1816 = vpop.f32.mrb[0].mxu0
      %v1817 = vadd.f32 0.0, %v1816
      %v1818 = vpop.f32.mrb[0].mxu0
      %1819 = vmatprep.mubr.f32.mxu0 0.0
      %1820 = vmatmul.mubr.f32.gmra.mrb[0].mxu0 %v1712
      %v1821 = vpop.f32.mrb[0].mxu0
      %v1822 = vadd.f32 0.0, %v1821
      %v1823 = vpop.f32.mrb[0].mxu0
      %1824 = vmatprep.mubr.f32.mxu0 0.0
      %1825 = vmatmul.mubr.f32.gmra.mrb[0].mxu0 %v1715
      %v1826 = vpop.f32.mrb[0].mxu0
      %v1827 = vadd.f32 0.0, %v1826
      %v1828 = vpop.f32.mrb[0].mxu0
      %1829 = vmatprep.mubr.f32.mxu0 0.0
      %1830 = vmatmul.mubr.f32.gmra.mrb[0].mxu0 %v1718
      %v1831 = vpop.f32.mrb[0].mxu0
      %v1832 = vadd.f32 0.0, %v1831
      %v1833 = vpop.f32.mrb[0].mxu0
      %1834 = vmatprep.mubr.f32.mxu0 0.0
      %1835 = vmatmul.mubr.f32.gmra.mrb[0].mxu0 %v1721
      %v1836 = vpop.f32.mrb[0].mxu0
      %v1837 = vadd.f32 0.0, %v1836
      %v1838 = vpop.f32.mrb[0].mxu0
      %1839 = vmatprep.mubr.f32.mxu0 0.0
      %1840 = vmatmul.mubr.f32.gmra.mrb[0].mxu0 %v1724
      %v1841 = vpop.f32.mrb[0].mxu0
      %v1842 = vadd.f32 0.0, %v1841
      %v1843 = vpop.f32.mrb[0].mxu0
      %1844 = vmatprep.mubr.f32.mxu0 0.0
      %1845 = vmatmul.mubr.f32.gmra.mrb[0].mxu0 %v1727
      %v1846 = vpop.f32.mrb[0].mxu0
      %v1847 = vadd.f32 0.0, %v1846
      %v1848 = vpop.f32.mrb[0].mxu0
      %1849 = vmatprep.mubr.f32.mxu0 0.0
      %1850 = vmatmul.mubr.f32.gmra.mrb[0].mxu0 %v1730
      %v1851 = vpop.f32.mrb[0].mxu0
      %v1852 = vadd.f32 0.0, %v1851
      %v1853 = vpop.f32.mrb[0].mxu0
      %1854 = vmatprep.mubr.f32.mxu0 0.0
      %1855 = vmatmul.mubr.f32.gmra.mrb[0].mxu0 %v1733
      %v1856 = vpop.f32.mrb[0].mxu0
      %v1857 = vadd.f32 0.0, %v1856
      %v1858 = vpop.f32.mrb[0].mxu0
      %1859 = vdwg.mxu0
      %1864 = vrot.lane.b32.xlu0 %v1822, 127
      %v1865 = vpop.permute.xlu0 %1864
      %1866 = vrot.lane.b32.xlu0 %v1827, 127
      %v1867 = vpop.permute.xlu0 %1866
      %1868 = vrot.lane.b32.xlu0 %v1832, 127
      %v1869 = vpop.permute.xlu0 %1868
      %1870 = vrot.lane.b32.xlu0 %v1837, 127
      %v1871 = vpop.permute.xlu0 %1870
      %v1876 = vadd.f32 %v1802, %v1865
      %v1877 = vadd.f32 %v1807, %v1867
      %v1878 = vadd.f32 %v1812, %v1869
      %v1879 = vadd.f32 %v1817, %v1871
      %1884 = vrot.lane.b32.xlu0 %v1842, 126
      %v1885 = vpop.permute.xlu0 %1884
      %1886 = vrot.lane.b32.xlu0 %v1847, 126
      %v1887 = vpop.permute.xlu0 %1886
      %1888 = vrot.lane.b32.xlu0 %v1852, 126
      %v1889 = vpop.permute.xlu0 %1888
      %1890 = vrot.lane.b32.xlu0 %v1857, 126
      %v1891 = vpop.permute.xlu0 %1890
      %v1896 = vadd.f32 %v1876, %v1885
      %v1897 = vadd.f32 %v1877, %v1887
      %v1898 = vadd.f32 %v1878, %v1889
      %v1899 = vadd.f32 %v1879, %v1891
      %v1900 = vld [vmem:[%s6] sm:$0xff]
      %v1901 = vld [vmem:[%s6 + $0x8] sm:$0xff]
      %v1902 = vld [vmem:[%s6 + $0x10] sm:$0xff]
      %v1903 = vld [vmem:[%s6 + $0x18] sm:$0xff]
      %1905 = vset.pattern.permute.xlu0 0
      %1906 = vperm.xlu0 %1905, %v1900
      %v1907 = vpop.permute.xlu0 %1906
      %1910 = vset.pattern.permute.xlu0 0
      %1911 = vperm.xlu0 %1910, %v1901
      %v1912 = vpop.permute.xlu0 %1911
      %1915 = vset.pattern.permute.xlu0 0
      %1916 = vperm.xlu0 %1915, %v1902
      %v1917 = vpop.permute.xlu0 %1916
      %1920 = vset.pattern.permute.xlu0 0
      %1921 = vperm.xlu0 %1920, %v1903
      %v1922 = vpop.permute.xlu0 %1921
      %v1924 = vadd.f32 %v1896, %v1907
      %v1925 = vadd.f32 %v1897, %v1912
      %v1926 = vadd.f32 %v1898, %v1917
      %v1927 = vadd.f32 %v1899, %v1922
      %vm1928 = vcmp.ge.f32.partialorder %v1924, 0.0
      %vm1929 = vcmp.ge.f32.partialorder %v1925, 0.0
      %vm1930 = vcmp.ge.f32.partialorder %v1926, 0.0
      %vm1931 = vcmp.ge.f32.partialorder %v1927, 0.0
      %v1932 = vmul.f32 %v1924, 0.2
      %v1933 = vmul.f32 %v1925, 0.2
      %v1934 = vmul.f32 %v1926, 0.2
      %v1935 = vmul.f32 %v1927, 0.2
      %v1936 = vsel %vm1928, %v1924, %v1932
      %v1937 = vsel %vm1929, %v1925, %v1933
      %v1938 = vsel %vm1930, %v1926, %v1934
      %v1939 = vsel %vm1931, %v1927, %v1935
      %1940 = vset.pattern.permute.xlu0 1
      %1941 = vperm.xlu0 %1940, %v1900
      %v1942 = vpop.permute.xlu0 %1941
      %1944 = vset.pattern.permute.xlu0 1
      %1945 = vperm.xlu0 %1944, %v1901
      %v1946 = vpop.permute.xlu0 %1945
      %1948 = vset.pattern.permute.xlu0 1
      %1949 = vperm.xlu0 %1948, %v1902
      %v1950 = vpop.permute.xlu0 %1949
      %1952 = vset.pattern.permute.xlu0 1
      %1953 = vperm.xlu0 %1952, %v1903
      %v1954 = vpop.permute.xlu0 %1953
      %v1956 = vmul.f32 %v1936, %v1942
      %v1957 = vmul.f32 %v1937, %v1946
      %v1958 = vmul.f32 %v1938, %v1950
      %v1959 = vmul.f32 %v1939, %v1954
      %1960 = vset.pattern.permute.xlu0 2
      %1961 = vperm.xlu0 %1960, %v1900
      %v1962 = vpop.permute.xlu0 %1961
      %1964 = vset.pattern.permute.xlu0 2
      %1965 = vperm.xlu0 %1964, %v1901
      %v1966 = vpop.permute.xlu0 %1965
      %1968 = vset.pattern.permute.xlu0 2
      %1969 = vperm.xlu0 %1968, %v1902
      %v1970 = vpop.permute.xlu0 %1969
      %1972 = vset.pattern.permute.xlu0 2
      %1973 = vperm.xlu0 %1972, %v1903
      %v1974 = vpop.permute.xlu0 %1973
      %v1976 = vadd.f32 %v1956, %v1962
      %v1977 = vadd.f32 %v1957, %v1966
      %v1978 = vadd.f32 %v1958, %v1970
      %v1979 = vadd.f32 %v1959, %v1974
      %v1980 = vadd.s32 %v606, 2
      %vm1981 = vcmp.eq.s32.totalorder %v609, %v1980
      %v1982 = vsel %vm1981, 1, 0
      %v1983 = vcvt.s32.f32 %v1982
      %v1985 = vsel %vm1198, %v1976, 0
      %v1988 = vsel %vm1198, %v1977, 0
      %v1991 = vsel %vm1198, %v1978, 0
      %v1994 = vsel %vm1198, %v1979, 0
      %1996 = vmatprep.subr.mxu0 0.0
      %1997 = vmatpush1.msra.mxu0 %v1983
      %1998 = vmatprep.subr.mxu0 0.0
      %1999 = vmatpush1.msra.mxu0 0.0
      %2000 = vmatprep.subr.mxu0 0.0
      %2001 = vmatpush1.msra.mxu0 0.0
      %2002 = vmatprep.subr.mxu0 0.0
      %2003 = vmatpush1.msra.mxu0 0.0
      %2004 = vmatprep.subr.mxu0 0.0
      %2005 = vmatpush1.msra.mxu0 0.0
      %2006 = vmatprep.subr.mxu0 0.0
      %2007 = vmatpush1.msra.mxu0 0.0
      %2008 = vmatprep.subr.mxu0 0.0
      %2009 = vmatpush1.msra.mxu0 0.0
      %2010 = vmatprep.subr.mxu0 0.0
      %2011 = vmatpush1.msra.mxu0 0.0
      %2012 = vmatprep.subr.mxu0 0.0
      %2013 = vmatpush1.msra.mxu0 0.0
      %2014 = vmatprep.subr.mxu0 0.0
      %2015 = vmatpush1.msra.mxu0 0.0
      %2016 = vmatprep.subr.mxu0 0.0
      %2017 = vmatpush1.msra.mxu0 0.0
      %2018 = vmatprep.subr.mxu0 0.0
      %2019 = vmatpush1.msra.mxu0 0.0
      %2020 = vmatprep.subr.mxu0 0.0
      %2021 = vmatpush1.msra.mxu0 0.0
      %2022 = vmatprep.subr.mxu0 0.0
      %2023 = vmatpush1.msra.mxu0 0.0
      %2024 = vmatprep.subr.mxu0 0.0
      %2025 = vmatpush1.msra.mxu0 0.0
      %2026 = vmatprep.subr.mxu0 0.0
      %2027 = vmatpush1.msra.mxu0 0.0
      %2028 = vmatprep.subr.mxu0 0.0
      %2029 = vmatpush1.msra.mxu0 0.0
      %2030 = vmatprep.subr.mxu0 0.0
      %2031 = vmatpush1.msra.mxu0 0.0
      %2032 = vmatprep.subr.mxu0 0.0
      %2033 = vmatpush1.msra.mxu0 0.0
      %2034 = vmatprep.subr.mxu0 0.0
      %2035 = vmatpush1.msra.mxu0 0.0
      %2036 = vmatprep.subr.mxu0 0.0
      %2037 = vmatpush1.msra.mxu0 0.0
      %2038 = vmatprep.subr.mxu0 0.0
      %2039 = vmatpush1.msra.mxu0 0.0
      %2040 = vmatprep.subr.mxu0 0.0
      %2041 = vmatpush1.msra.mxu0 0.0
      %2042 = vmatprep.subr.mxu0 0.0
      %2043 = vmatpush1.msra.mxu0 0.0
      %2044 = vmatprep.subr.mxu0 0.0
      %2045 = vmatpush1.msra.mxu0 0.0
      %2046 = vmatprep.subr.mxu0 0.0
      %2047 = vmatpush1.msra.mxu0 0.0
      %2048 = vmatprep.subr.mxu0 0.0
      %2049 = vmatpush1.msra.mxu0 0.0
      %2050 = vmatprep.subr.mxu0 0.0
      %2051 = vmatpush1.msra.mxu0 0.0
      %2052 = vmatprep.subr.mxu0 0.0
      %2053 = vmatpush1.msra.mxu0 0.0
      %2054 = vmatprep.subr.mxu0 0.0
      %2055 = vmatpush1.msra.mxu0 0.0
      %2056 = vmatprep.subr.mxu0 0.0
      %2057 = vmatpush1.msra.mxu0 0.0
      %2058 = vmatprep.subr.mxu0 0.0
      %2059 = vmatpush1.msra.mxu0 0.0
      %2060 = vmatprep.mubr.f32.mxu0 0.0
      %2061 = vmatmul.mubr.f32.gmra.mrb[0].mxu0 %v1985
      %v2062 = vpop.f32.mrb[0].mxu0
      %v2063 = vadd.f32 0.0, %v2062
      %v2064 = vpop.f32.mrb[0].mxu0
      %2065 = vmatprep.mubr.f32.mxu0 0.0
      %2066 = vmatmul.mubr.f32.gmra.mrb[0].mxu0 %v1988
      %v2067 = vpop.f32.mrb[0].mxu0
      %v2068 = vadd.f32 0.0, %v2067
      %v2069 = vpop.f32.mrb[0].mxu0
      %2070 = vmatprep.mubr.f32.mxu0 0.0
      %2071 = vmatmul.mubr.f32.gmra.mrb[0].mxu0 %v1991
      %v2072 = vpop.f32.mrb[0].mxu0
      %v2073 = vadd.f32 0.0, %v2072
      %v2074 = vpop.f32.mrb[0].mxu0
      %2075 = vmatprep.mubr.f32.mxu0 0.0
      %2076 = vmatmul.mubr.f32.gmra.mrb[0].mxu0 %v1994
      %v2077 = vpop.f32.mrb[0].mxu0
      %v2078 = vadd.f32 0.0, %v2077
      %v2079 = vpop.f32.mrb[0].mxu0
      %2080 = vdwg.mxu0
      %v2081 = vld [vmem:[%s7] sm:$0xff]
      %v2082 = vld [vmem:[%s7 + $0x8] sm:$0xff]
      %v2083 = vld [vmem:[%s7 + $0x10] sm:$0xff]
      %v2084 = vld [vmem:[%s7 + $0x18] sm:$0xff]
      %v2085 = vld [vmem:[%s7 + $0x20] sm:$0xff]
      %v2086 = vld [vmem:[%s7 + $0x28] sm:$0xff]
      %v2087 = vld [vmem:[%s7 + $0x30] sm:$0xff]
      %v2088 = vld [vmem:[%s7 + $0x38] sm:$0xff]
      %v2089 = vld [vmem:[%s7 + $0x40] sm:$0xff]
      %v2090 = vld [vmem:[%s7 + $0x48] sm:$0xff]
      %v2091 = vld [vmem:[%s7 + $0x50] sm:$0xff]
      %v2092 = vld [vmem:[%s7 + $0x58] sm:$0xff]
      %v2093 = vld [vmem:[%s7 + $0x60] sm:$0xff]
      %v2094 = vld [vmem:[%s7 + $0x68] sm:$0xff]
      %v2095 = vld [vmem:[%s7 + $0x70] sm:$0xff]
      %v2096 = vld [vmem:[%s7 + $0x78] sm:$0xff]
      %v2097 = vld [vmem:[%s7 + $0x80] sm:$0xff]
      %v2098 = vld [vmem:[%s7 + $0x88] sm:$0xff]
      %v2099 = vld [vmem:[%s7 + $0x90] sm:$0xff]
      %v2100 = vld [vmem:[%s7 + $0x98] sm:$0xff]
      %v2102 = vsel %vm1308, %v2081, 0
      %v2105 = vsel %vm1308, %v2082, 0
      %v2108 = vsel %vm1308, %v2083, 0
      %v2111 = vsel %vm1308, %v2084, 0
      %v2114 = vsel %vm1308, %v2085, 0
      %v2117 = vsel %vm1308, %v2086, 0
      %v2120 = vsel %vm1308, %v2087, 0
      %v2123 = vsel %vm1308, %v2088, 0
      %v2126 = vsel %vm1308, %v2089, 0
      %v2129 = vsel %vm1308, %v2090, 0
      %v2132 = vsel %vm1308, %v2091, 0
      %v2135 = vsel %vm1308, %v2092, 0
      %v2138 = vsel %vm1308, %v2093, 0
      %v2141 = vsel %vm1308, %v2094, 0
      %v2144 = vsel %vm1308, %v2095, 0
      %v2147 = vsel %vm1308, %v2096, 0
      %v2150 = vsel %vm1308, %v2097, 0
      %v2153 = vsel %vm1308, %v2098, 0
      %v2156 = vsel %vm1308, %v2099, 0
      %v2159 = vsel %vm1308, %v2100, 0
      %2161 = vmatprep.subr.mxu0 0.0
      %2162 = vmatpush1.msra.mxu0 %v2063
      %2163 = vmatprep.subr.mxu0 0.0
      %2164 = vmatpush1.msra.mxu0 %v2068
      %2165 = vmatprep.subr.mxu0 0.0
      %2166 = vmatpush1.msra.mxu0 %v2073
      %2167 = vmatprep.subr.mxu0 0.0
      %2168 = vmatpush1.msra.mxu0 %v2078
      %2169 = vmatprep.subr.mxu0 0.0
      %2170 = vmatpush1.msra.mxu0 0.0
      %2171 = vmatprep.subr.mxu0 0.0
      %2172 = vmatpush1.msra.mxu0 0.0
      %2173 = vmatprep.subr.mxu0 0.0
      %2174 = vmatpush1.msra.mxu0 0.0
      %2175 = vmatprep.subr.mxu0 0.0
      %2176 = vmatpush1.msra.mxu0 0.0
      %2177 = vmatprep.subr.mxu0 0.0
      %2178 = vmatpush1.msra.mxu0 0.0
      %2179 = vmatprep.subr.mxu0 0.0
      %2180 = vmatpush1.msra.mxu0 0.0
      %2181 = vmatprep.subr.mxu0 0.0
      %2182 = vmatpush1.msra.mxu0 0.0
      %2183 = vmatprep.subr.mxu0 0.0
      %2184 = vmatpush1.msra.mxu0 0.0
      %2185 = vmatprep.subr.mxu0 0.0
      %2186 = vmatpush1.msra.mxu0 0.0
      %2187 = vmatprep.subr.mxu0 0.0
      %2188 = vmatpush1.msra.mxu0 0.0
      %2189 = vmatprep.subr.mxu0 0.0
      %2190 = vmatpush1.msra.mxu0 0.0
      %2191 = vmatprep.subr.mxu0 0.0
      %2192 = vmatpush1.msra.mxu0 0.0
      %2193 = vmatprep.subr.mxu0 0.0
      %2194 = vmatpush1.msra.mxu0 0.0
      %2195 = vmatprep.subr.mxu0 0.0
      %2196 = vmatpush1.msra.mxu0 0.0
      %2197 = vmatprep.subr.mxu0 0.0
      %2198 = vmatpush1.msra.mxu0 0.0
      %2199 = vmatprep.subr.mxu0 0.0
      %2200 = vmatpush1.msra.mxu0 0.0
      %2201 = vmatprep.subr.mxu0 0.0
      %2202 = vmatpush1.msra.mxu0 0.0
      %2203 = vmatprep.subr.mxu0 0.0
      %2204 = vmatpush1.msra.mxu0 0.0
      %2205 = vmatprep.subr.mxu0 0.0
      %2206 = vmatpush1.msra.mxu0 0.0
      %2207 = vmatprep.subr.mxu0 0.0
      %2208 = vmatpush1.msra.mxu0 0.0
      %2209 = vmatprep.subr.mxu0 0.0
      %2210 = vmatpush1.msra.mxu0 0.0
      %2211 = vmatprep.subr.mxu0 0.0
      %2212 = vmatpush1.msra.mxu0 0.0
      %2213 = vmatprep.subr.mxu0 0.0
      %2214 = vmatpush1.msra.mxu0 0.0
      %2215 = vmatprep.subr.mxu0 0.0
      %2216 = vmatpush1.msra.mxu0 0.0
      %2217 = vmatprep.subr.mxu0 0.0
      %2218 = vmatpush1.msra.mxu0 0.0
      %2219 = vmatprep.subr.mxu0 0.0
      %2220 = vmatpush1.msra.mxu0 0.0
      %2221 = vmatprep.subr.mxu0 0.0
      %2222 = vmatpush1.msra.mxu0 0.0
      %2223 = vmatprep.subr.mxu0 0.0
      %2224 = vmatpush1.msra.mxu0 0.0
      %2225 = vmatprep.mubr.f32.mxu0 0.0
      %2226 = vmatmul.mubr.f32.gmra.mrb[0].mxu0 %v2102
      %v2227 = vpop.f32.mrb[0].mxu0
      %v2228 = vadd.f32 0.0, %v2227
      %v2229 = vpop.f32.mrb[0].mxu0
      %2230 = vmatprep.mubr.f32.mxu0 0.0
      %2231 = vmatmul.mubr.f32.gmra.mrb[0].mxu0 %v2105
      %v2232 = vpop.f32.mrb[0].mxu0
      %v2233 = vadd.f32 0.0, %v2232
      %v2234 = vpop.f32.mrb[0].mxu0
      %2235 = vmatprep.mubr.f32.mxu0 0.0
      %2236 = vmatmul.mubr.f32.gmra.mrb[0].mxu0 %v2108
      %v2237 = vpop.f32.mrb[0].mxu0
      %v2238 = vadd.f32 0.0, %v2237
      %v2239 = vpop.f32.mrb[0].mxu0
      %2240 = vmatprep.mubr.f32.mxu0 0.0
      %2241 = vmatmul.mubr.f32.gmra.mrb[0].mxu0 %v2111
      %v2242 = vpop.f32.mrb[0].mxu0
      %v2243 = vadd.f32 0.0, %v2242
      %v2244 = vpop.f32.mrb[0].mxu0
      %2245 = vmatprep.mubr.f32.mxu0 0.0
      %2246 = vmatmul.mubr.f32.gmra.mrb[0].mxu0 %v2114
      %v2247 = vpop.f32.mrb[0].mxu0
      %v2248 = vadd.f32 0.0, %v2247
      %v2249 = vpop.f32.mrb[0].mxu0
      %2250 = vmatprep.mubr.f32.mxu0 0.0
      %2251 = vmatmul.mubr.f32.gmra.mrb[0].mxu0 %v2117
      %v2252 = vpop.f32.mrb[0].mxu0
      %v2253 = vadd.f32 0.0, %v2252
      %v2254 = vpop.f32.mrb[0].mxu0
      %2255 = vmatprep.mubr.f32.mxu0 0.0
      %2256 = vmatmul.mubr.f32.gmra.mrb[0].mxu0 %v2120
      %v2257 = vpop.f32.mrb[0].mxu0
      %v2258 = vadd.f32 0.0, %v2257
      %v2259 = vpop.f32.mrb[0].mxu0
      %2260 = vmatprep.mubr.f32.mxu0 0.0
      %2261 = vmatmul.mubr.f32.gmra.mrb[0].mxu0 %v2123
      %v2262 = vpop.f32.mrb[0].mxu0
      %v2263 = vadd.f32 0.0, %v2262
      %v2264 = vpop.f32.mrb[0].mxu0
      %2265 = vmatprep.mubr.f32.mxu0 0.0
      %2266 = vmatmul.mubr.f32.gmra.mrb[0].mxu0 %v2126
      %v2267 = vpop.f32.mrb[0].mxu0
      %v2268 = vadd.f32 0.0, %v2267
      %v2269 = vpop.f32.mrb[0].mxu0
      %2270 = vmatprep.mubr.f32.mxu0 0.0
      %2271 = vmatmul.mubr.f32.gmra.mrb[0].mxu0 %v2129
      %v2272 = vpop.f32.mrb[0].mxu0
      %v2273 = vadd.f32 0.0, %v2272
      %v2274 = vpop.f32.mrb[0].mxu0
      %2275 = vmatprep.mubr.f32.mxu0 0.0
      %2276 = vmatmul.mubr.f32.gmra.mrb[0].mxu0 %v2132
      %v2277 = vpop.f32.mrb[0].mxu0
      %v2278 = vadd.f32 0.0, %v2277
      %v2279 = vpop.f32.mrb[0].mxu0
      %2280 = vmatprep.mubr.f32.mxu0 0.0
      %2281 = vmatmul.mubr.f32.gmra.mrb[0].mxu0 %v2135
      %v2282 = vpop.f32.mrb[0].mxu0
      %v2283 = vadd.f32 0.0, %v2282
      %v2284 = vpop.f32.mrb[0].mxu0
      %2285 = vmatprep.mubr.f32.mxu0 0.0
      %2286 = vmatmul.mubr.f32.gmra.mrb[0].mxu0 %v2138
      %v2287 = vpop.f32.mrb[0].mxu0
      %v2288 = vadd.f32 0.0, %v2287
      %v2289 = vpop.f32.mrb[0].mxu0
      %2290 = vmatprep.mubr.f32.mxu0 0.0
      %2291 = vmatmul.mubr.f32.gmra.mrb[0].mxu0 %v2141
      %v2292 = vpop.f32.mrb[0].mxu0
      %v2293 = vadd.f32 0.0, %v2292
      %v2294 = vpop.f32.mrb[0].mxu0
      %2295 = vmatprep.mubr.f32.mxu0 0.0
      %2296 = vmatmul.mubr.f32.gmra.mrb[0].mxu0 %v2144
      %v2297 = vpop.f32.mrb[0].mxu0
      %v2298 = vadd.f32 0.0, %v2297
      %v2299 = vpop.f32.mrb[0].mxu0
      %2300 = vmatprep.mubr.f32.mxu0 0.0
      %2301 = vmatmul.mubr.f32.gmra.mrb[0].mxu0 %v2147
      %v2302 = vpop.f32.mrb[0].mxu0
      %v2303 = vadd.f32 0.0, %v2302
      %v2304 = vpop.f32.mrb[0].mxu0
      %2305 = vmatprep.mubr.f32.mxu0 0.0
      %2306 = vmatmul.mubr.f32.gmra.mrb[0].mxu0 %v2150
      %v2307 = vpop.f32.mrb[0].mxu0
      %v2308 = vadd.f32 0.0, %v2307
      %v2309 = vpop.f32.mrb[0].mxu0
      %2310 = vmatprep.mubr.f32.mxu0 0.0
      %2311 = vmatmul.mubr.f32.gmra.mrb[0].mxu0 %v2153
      %v2312 = vpop.f32.mrb[0].mxu0
      %v2313 = vadd.f32 0.0, %v2312
      %v2314 = vpop.f32.mrb[0].mxu0
      %2315 = vmatprep.mubr.f32.mxu0 0.0
      %2316 = vmatmul.mubr.f32.gmra.mrb[0].mxu0 %v2156
      %v2317 = vpop.f32.mrb[0].mxu0
      %v2318 = vadd.f32 0.0, %v2317
      %v2319 = vpop.f32.mrb[0].mxu0
      %2320 = vmatprep.mubr.f32.mxu0 0.0
      %2321 = vmatmul.mubr.f32.gmra.mrb[0].mxu0 %v2159
      %v2322 = vpop.f32.mrb[0].mxu0
      %v2323 = vadd.f32 0.0, %v2322
      %v2324 = vpop.f32.mrb[0].mxu0
      %2325 = vdwg.mxu0
      %2330 = vrot.lane.b32.xlu0 %v2248, 127
      %v2331 = vpop.permute.xlu0 %2330
      %2332 = vrot.lane.b32.xlu0 %v2253, 127
      %v2333 = vpop.permute.xlu0 %2332
      %2334 = vrot.lane.b32.xlu0 %v2258, 127
      %v2335 = vpop.permute.xlu0 %2334
      %2336 = vrot.lane.b32.xlu0 %v2263, 127
      %v2337 = vpop.permute.xlu0 %2336
      %v2342 = vadd.f32 %v2228, %v2331
      %v2343 = vadd.f32 %v2233, %v2333
      %v2344 = vadd.f32 %v2238, %v2335
      %v2345 = vadd.f32 %v2243, %v2337
      %2350 = vrot.lane.b32.xlu0 %v2268, 126
      %v2351 = vpop.permute.xlu0 %2350
      %2352 = vrot.lane.b32.xlu0 %v2273, 126
      %v2353 = vpop.permute.xlu0 %2352
      %2354 = vrot.lane.b32.xlu0 %v2278, 126
      %v2355 = vpop.permute.xlu0 %2354
      %2356 = vrot.lane.b32.xlu0 %v2283, 126
      %v2357 = vpop.permute.xlu0 %2356
      %v2362 = vadd.f32 %v2342, %v2351
      %v2363 = vadd.f32 %v2343, %v2353
      %v2364 = vadd.f32 %v2344, %v2355
      %v2365 = vadd.f32 %v2345, %v2357
      %2370 = vrot.lane.b32.xlu0 %v2288, 125
      %v2371 = vpop.permute.xlu0 %2370
      %2372 = vrot.lane.b32.xlu0 %v2293, 125
      %v2373 = vpop.permute.xlu0 %2372
      %2374 = vrot.lane.b32.xlu0 %v2298, 125
      %v2375 = vpop.permute.xlu0 %2374
      %2376 = vrot.lane.b32.xlu0 %v2303, 125
      %v2377 = vpop.permute.xlu0 %2376
      %v2382 = vadd.f32 %v2362, %v2371
      %v2383 = vadd.f32 %v2363, %v2373
      %v2384 = vadd.f32 %v2364, %v2375
      %v2385 = vadd.f32 %v2365, %v2377
      %2390 = vrot.lane.b32.xlu0 %v2308, 124
      %v2391 = vpop.permute.xlu0 %2390
      %2392 = vrot.lane.b32.xlu0 %v2313, 124
      %v2393 = vpop.permute.xlu0 %2392
      %2394 = vrot.lane.b32.xlu0 %v2318, 124
      %v2395 = vpop.permute.xlu0 %2394
      %2396 = vrot.lane.b32.xlu0 %v2323, 124
      %v2397 = vpop.permute.xlu0 %2396
      %v2402 = vadd.f32 %v2382, %v2391
      %v2403 = vadd.f32 %v2383, %v2393
      %v2404 = vadd.f32 %v2384, %v2395
      %v2405 = vadd.f32 %v2385, %v2397
      %v2406 = vld [vmem:[%s8] sm:$0xff]
      %v2407 = vld [vmem:[%s8 + $0x8] sm:$0xff]
      %v2408 = vld [vmem:[%s8 + $0x10] sm:$0xff]
      %v2409 = vld [vmem:[%s8 + $0x18] sm:$0xff]
      %2411 = vset.pattern.permute.xlu0 0
      %2412 = vperm.xlu0 %2411, %v2406
      %v2413 = vpop.permute.xlu0 %2412
      %2416 = vset.pattern.permute.xlu0 0
      %2417 = vperm.xlu0 %2416, %v2407
      %v2418 = vpop.permute.xlu0 %2417
      %2421 = vset.pattern.permute.xlu0 0
      %2422 = vperm.xlu0 %2421, %v2408
      %v2423 = vpop.permute.xlu0 %2422
      %2426 = vset.pattern.permute.xlu0 0
      %2427 = vperm.xlu0 %2426, %v2409
      %v2428 = vpop.permute.xlu0 %2427
      %v2430 = vadd.f32 %v2402, %v2413
      %v2431 = vadd.f32 %v2403, %v2418
      %v2432 = vadd.f32 %v2404, %v2423
      %v2433 = vadd.f32 %v2405, %v2428
      %vm2434 = vcmp.ge.f32.partialorder %v2430, 0.0
      %vm2435 = vcmp.ge.f32.partialorder %v2431, 0.0
      %vm2436 = vcmp.ge.f32.partialorder %v2432, 0.0
      %vm2437 = vcmp.ge.f32.partialorder %v2433, 0.0
      %v2438 = vmul.f32 %v2430, 0.2
      %v2439 = vmul.f32 %v2431, 0.2
      %v2440 = vmul.f32 %v2432, 0.2
      %v2441 = vmul.f32 %v2433, 0.2
      %v2442 = vsel %vm2434, %v2430, %v2438
      %v2443 = vsel %vm2435, %v2431, %v2439
      %v2444 = vsel %vm2436, %v2432, %v2440
      %v2445 = vsel %vm2437, %v2433, %v2441
      %2446 = vset.pattern.permute.xlu0 1
      %2447 = vperm.xlu0 %2446, %v2406
      %v2448 = vpop.permute.xlu0 %2447
      %2450 = vset.pattern.permute.xlu0 1
      %2451 = vperm.xlu0 %2450, %v2407
      %v2452 = vpop.permute.xlu0 %2451
      %2454 = vset.pattern.permute.xlu0 1
      %2455 = vperm.xlu0 %2454, %v2408
      %v2456 = vpop.permute.xlu0 %2455
      %2458 = vset.pattern.permute.xlu0 1
      %2459 = vperm.xlu0 %2458, %v2409
      %v2460 = vpop.permute.xlu0 %2459
      %v2462 = vmul.f32 %v2442, %v2448
      %v2463 = vmul.f32 %v2443, %v2452
      %v2464 = vmul.f32 %v2444, %v2456
      %v2465 = vmul.f32 %v2445, %v2460
      %2466 = vset.pattern.permute.xlu0 2
      %2467 = vperm.xlu0 %2466, %v2406
      %v2468 = vpop.permute.xlu0 %2467
      %2470 = vset.pattern.permute.xlu0 2
      %2471 = vperm.xlu0 %2470, %v2407
      %v2472 = vpop.permute.xlu0 %2471
      %2474 = vset.pattern.permute.xlu0 2
      %2475 = vperm.xlu0 %2474, %v2408
      %v2476 = vpop.permute.xlu0 %2475
      %2478 = vset.pattern.permute.xlu0 2
      %2479 = vperm.xlu0 %2478, %v2409
      %v2480 = vpop.permute.xlu0 %2479
      %v2482 = vadd.f32 %v2462, %v2468
      %v2483 = vadd.f32 %v2463, %v2472
      %v2484 = vadd.f32 %v2464, %v2476
      %v2485 = vadd.f32 %v2465, %v2480
      %v2487 = vsel %vm1198, %v2482, 0
      %v2490 = vsel %vm1198, %v2483, 0
      %v2493 = vsel %vm1198, %v2484, 0
      %v2496 = vsel %vm1198, %v2485, 0
      %2498 = vmatprep.subr.mxu0 0.0
      %2499 = vmatpush1.msra.mxu0 %v1003
      %2500 = vmatprep.subr.mxu0 0.0
      %2501 = vmatpush1.msra.mxu0 0.0
      %2502 = vmatprep.subr.mxu0 0.0
      %2503 = vmatpush1.msra.mxu0 0.0
      %2504 = vmatprep.subr.mxu0 0.0
      %2505 = vmatpush1.msra.mxu0 0.0
      %2506 = vmatprep.subr.mxu0 0.0
      %2507 = vmatpush1.msra.mxu0 0.0
      %2508 = vmatprep.subr.mxu0 0.0
      %2509 = vmatpush1.msra.mxu0 0.0
      %2510 = vmatprep.subr.mxu0 0.0
      %2511 = vmatpush1.msra.mxu0 0.0
      %2512 = vmatprep.subr.mxu0 0.0
      %2513 = vmatpush1.msra.mxu0 0.0
      %2514 = vmatprep.subr.mxu0 0.0
      %2515 = vmatpush1.msra.mxu0 0.0
      %2516 = vmatprep.subr.mxu0 0.0
      %2517 = vmatpush1.msra.mxu0 0.0
      %2518 = vmatprep.subr.mxu0 0.0
      %2519 = vmatpush1.msra.mxu0 0.0
      %2520 = vmatprep.subr.mxu0 0.0
      %2521 = vmatpush1.msra.mxu0 0.0
      %2522 = vmatprep.subr.mxu0 0.0
      %2523 = vmatpush1.msra.mxu0 0.0
      %2524 = vmatprep.subr.mxu0 0.0
      %2525 = vmatpush1.msra.mxu0 0.0
      %2526 = vmatprep.subr.mxu0 0.0
      %2527 = vmatpush1.msra.mxu0 0.0
      %2528 = vmatprep.subr.mxu0 0.0
      %2529 = vmatpush1.msra.mxu0 0.0
      %2530 = vmatprep.subr.mxu0 0.0
      %2531 = vmatpush1.msra.mxu0 0.0
      %2532 = vmatprep.subr.mxu0 0.0
      %2533 = vmatpush1.msra.mxu0 0.0
      %2534 = vmatprep.subr.mxu0 0.0
      %2535 = vmatpush1.msra.mxu0 0.0
      %2536 = vmatprep.subr.mxu0 0.0
      %2537 = vmatpush1.msra.mxu0 0.0
      %2538 = vmatprep.subr.mxu0 0.0
      %2539 = vmatpush1.msra.mxu0 0.0
      %2540 = vmatprep.subr.mxu0 0.0
      %2541 = vmatpush1.msra.mxu0 0.0
      %2542 = vmatprep.subr.mxu0 0.0
      %2543 = vmatpush1.msra.mxu0 0.0
      %2544 = vmatprep.subr.mxu0 0.0
      %2545 = vmatpush1.msra.mxu0 0.0
      %2546 = vmatprep.subr.mxu0 0.0
      %2547 = vmatpush1.msra.mxu0 0.0
      %2548 = vmatprep.subr.mxu0 0.0
      %2549 = vmatpush1.msra.mxu0 0.0
      %2550 = vmatprep.subr.mxu0 0.0
      %2551 = vmatpush1.msra.mxu0 0.0
      %2552 = vmatprep.subr.mxu0 0.0
      %2553 = vmatpush1.msra.mxu0 0.0
      %2554 = vmatprep.subr.mxu0 0.0
      %2555 = vmatpush1.msra.mxu0 0.0
      %2556 = vmatprep.subr.mxu0 0.0
      %2557 = vmatpush1.msra.mxu0 0.0
      %2558 = vmatprep.subr.mxu0 0.0
      %2559 = vmatpush1.msra.mxu0 0.0
      %2560 = vmatprep.subr.mxu0 0.0
      %2561 = vmatpush1.msra.mxu0 0.0
      %2562 = vmatprep.mubr.f32.mxu0 0.0
      %2563 = vmatmul.mubr.f32.gmra.mrb[0].mxu0 %v2487
      %v2564 = vpop.f32.mrb[0].mxu0
      %v2565 = vadd.f32 0.0, %v2564
      %v2566 = vpop.f32.mrb[0].mxu0
      %2567 = vmatprep.mubr.f32.mxu0 0.0
      %2568 = vmatmul.mubr.f32.gmra.mrb[0].mxu0 %v2490
      %v2569 = vpop.f32.mrb[0].mxu0
      %v2570 = vadd.f32 0.0, %v2569
      %v2571 = vpop.f32.mrb[0].mxu0
      %2572 = vmatprep.mubr.f32.mxu0 0.0
      %2573 = vmatmul.mubr.f32.gmra.mrb[0].mxu0 %v2493
      %v2574 = vpop.f32.mrb[0].mxu0
      %v2575 = vadd.f32 0.0, %v2574
      %v2576 = vpop.f32.mrb[0].mxu0
      %2577 = vmatprep.mubr.f32.mxu0 0.0
      %2578 = vmatmul.mubr.f32.gmra.mrb[0].mxu0 %v2496
      %v2579 = vpop.f32.mrb[0].mxu0
      %v2580 = vadd.f32 0.0, %v2579
      %v2581 = vpop.f32.mrb[0].mxu0
      %2582 = vdwg.mxu0
      %v2583 = vmul.u32 %v606, 2
      %vm2584 = vcmp.eq.s32.totalorder %v609, %v2583
      %v2585 = vadd.s32 %v2583, 1
      %vm2586 = vcmp.eq.s32.totalorder %v609, %v2585
      %vm2587 = vmor %vm2584, %vm2586
      %v2588 = vsel %vm2587, 1, 0
      %v2589 = vcvt.s32.f32 %v2588
      %vm2590 = vcmask 31744
      %v2592 = vsel %vm2590, %v2565, 0
      %v2595 = vsel %vm2590, %v2570, 0
      %v2598 = vsel %vm2590, %v2575, 0
      %v2601 = vsel %vm2590, %v2580, 0
      %vm2603 = vcmask 1043456
      %v2605 = vsel %vm2603, %v2589, 0
      %2607 = vmatprep.subr.mxu0 0.0
      %2608 = vmatpush1.msra.mxu0 %v2605
      %2609 = vmatprep.subr.mxu0 0.0
      %2610 = vmatpush1.msra.mxu0 0.0
      %2611 = vmatprep.subr.mxu0 0.0
      %2612 = vmatpush1.msra.mxu0 0.0
      %2613 = vmatprep.subr.mxu0 0.0
      %2614 = vmatpush1.msra.mxu0 0.0
      %2615 = vmatprep.subr.mxu0 0.0
      %2616 = vmatpush1.msra.mxu0 0.0
      %2617 = vmatprep.subr.mxu0 0.0
      %2618 = vmatpush1.msra.mxu0 0.0
      %2619 = vmatprep.subr.mxu0 0.0
      %2620 = vmatpush1.msra.mxu0 0.0
      %2621 = vmatprep.subr.mxu0 0.0
      %2622 = vmatpush1.msra.mxu0 0.0
      %2623 = vmatprep.subr.mxu0 0.0
      %2624 = vmatpush1.msra.mxu0 0.0
      %2625 = vmatprep.subr.mxu0 0.0
      %2626 = vmatpush1.msra.mxu0 0.0
      %2627 = vmatprep.subr.mxu0 0.0
      %2628 = vmatpush1.msra.mxu0 0.0
      %2629 = vmatprep.subr.mxu0 0.0
      %2630 = vmatpush1.msra.mxu0 0.0
      %2631 = vmatprep.subr.mxu0 0.0
      %2632 = vmatpush1.msra.mxu0 0.0
      %2633 = vmatprep.subr.mxu0 0.0
      %2634 = vmatpush1.msra.mxu0 0.0
      %2635 = vmatprep.subr.mxu0 0.0
      %2636 = vmatpush1.msra.mxu0 0.0
      %2637 = vmatprep.subr.mxu0 0.0
      %2638 = vmatpush1.msra.mxu0 0.0
      %2639 = vmatprep.subr.mxu0 0.0
      %2640 = vmatpush1.msra.mxu0 0.0
      %2641 = vmatprep.subr.mxu0 0.0
      %2642 = vmatpush1.msra.mxu0 0.0
      %2643 = vmatprep.subr.mxu0 0.0
      %2644 = vmatpush1.msra.mxu0 0.0
      %2645 = vmatprep.subr.mxu0 0.0
      %2646 = vmatpush1.msra.mxu0 0.0
      %2647 = vmatprep.subr.mxu0 0.0
      %2648 = vmatpush1.msra.mxu0 0.0
      %2649 = vmatprep.subr.mxu0 0.0
      %2650 = vmatpush1.msra.mxu0 0.0
      %2651 = vmatprep.subr.mxu0 0.0
      %2652 = vmatpush1.msra.mxu0 0.0
      %2653 = vmatprep.subr.mxu0 0.0
      %2654 = vmatpush1.msra.mxu0 0.0
      %2655 = vmatprep.subr.mxu0 0.0
      %2656 = vmatpush1.msra.mxu0 0.0
      %2657 = vmatprep.subr.mxu0 0.0
      %2658 = vmatpush1.msra.mxu0 0.0
      %2659 = vmatprep.subr.mxu0 0.0
      %2660 = vmatpush1.msra.mxu0 0.0
      %2661 = vmatprep.subr.mxu0 0.0
      %2662 = vmatpush1.msra.mxu0 0.0
      %2663 = vmatprep.subr.mxu0 0.0
      %2664 = vmatpush1.msra.mxu0 0.0
      %2665 = vmatprep.subr.mxu0 0.0
      %2666 = vmatpush1.msra.mxu0 0.0
      %2667 = vmatprep.subr.mxu0 0.0
      %2668 = vmatpush1.msra.mxu0 0.0
      %2669 = vmatprep.subr.mxu0 0.0
      %2670 = vmatpush1.msra.mxu0 0.0
      %2671 = vmatprep.mubr.f32.mxu0 0.0
      %2672 = vmatmul.mubr.f32.gmra.mrb[0].mxu0 %v2592
      %v2673 = vpop.f32.mrb[0].mxu0
      %v2674 = vadd.f32 %v1976, %v2673
      %v2675 = vpop.f32.mrb[0].mxu0
      %2676 = vmatprep.mubr.f32.mxu0 0.0
      %2677 = vmatmul.mubr.f32.gmra.mrb[0].mxu0 %v2595
      %v2678 = vpop.f32.mrb[0].mxu0
      %v2679 = vadd.f32 %v1977, %v2678
      %v2680 = vpop.f32.mrb[0].mxu0
      %2681 = vmatprep.mubr.f32.mxu0 0.0
      %2682 = vmatmul.mubr.f32.gmra.mrb[0].mxu0 %v2598
      %v2683 = vpop.f32.mrb[0].mxu0
      %v2684 = vadd.f32 %v1978, %v2683
      %v2685 = vpop.f32.mrb[0].mxu0
      %2686 = vmatprep.mubr.f32.mxu0 0.0
      %2687 = vmatmul.mubr.f32.gmra.mrb[0].mxu0 %v2601
      %v2688 = vpop.f32.mrb[0].mxu0
      %v2689 = vadd.f32 %v1979, %v2688
      %v2690 = vpop.f32.mrb[0].mxu0
      %2691 = vdwg.mxu0
      %v2693 = vsel %vm1198, %v2674, 0
      %v2696 = vsel %vm1198, %v2679, 0
      %v2699 = vsel %vm1198, %v2684, 0
      %v2702 = vsel %vm1198, %v2689, 0
      %2704 = vmatprep.subr.mxu0 0.0
      %2705 = vmatpush1.msra.mxu0 %v616
      %2706 = vmatprep.subr.mxu0 0.0
      %2707 = vmatpush1.msra.mxu0 0.0
      %2708 = vmatprep.subr.mxu0 0.0
      %2709 = vmatpush1.msra.mxu0 0.0
      %2710 = vmatprep.subr.mxu0 0.0
      %2711 = vmatpush1.msra.mxu0 0.0
      %2712 = vmatprep.subr.mxu0 0.0
      %2713 = vmatpush1.msra.mxu0 0.0
      %2714 = vmatprep.subr.mxu0 0.0
      %2715 = vmatpush1.msra.mxu0 0.0
      %2716 = vmatprep.subr.mxu0 0.0
      %2717 = vmatpush1.msra.mxu0 0.0
      %2718 = vmatprep.subr.mxu0 0.0
      %2719 = vmatpush1.msra.mxu0 0.0
      %2720 = vmatprep.subr.mxu0 0.0
      %2721 = vmatpush1.msra.mxu0 0.0
      %2722 = vmatprep.subr.mxu0 0.0
      %2723 = vmatpush1.msra.mxu0 0.0
      %2724 = vmatprep.subr.mxu0 0.0
      %2725 = vmatpush1.msra.mxu0 0.0
      %2726 = vmatprep.subr.mxu0 0.0
      %2727 = vmatpush1.msra.mxu0 0.0
      %2728 = vmatprep.subr.mxu0 0.0
      %2729 = vmatpush1.msra.mxu0 0.0
      %2730 = vmatprep.subr.mxu0 0.0
      %2731 = vmatpush1.msra.mxu0 0.0
      %2732 = vmatprep.subr.mxu0 0.0
      %2733 = vmatpush1.msra.mxu0 0.0
      %2734 = vmatprep.subr.mxu0 0.0
      %2735 = vmatpush1.msra.mxu0 0.0
      %2736 = vmatprep.subr.mxu0 0.0
      %2737 = vmatpush1.msra.mxu0 0.0
      %2738 = vmatprep.subr.mxu0 0.0
      %2739 = vmatpush1.msra.mxu0 0.0
      %2740 = vmatprep.subr.mxu0 0.0
      %2741 = vmatpush1.msra.mxu0 0.0
      %2742 = vmatprep.subr.mxu0 0.0
      %2743 = vmatpush1.msra.mxu0 0.0
      %2744 = vmatprep.subr.mxu0 0.0
      %2745 = vmatpush1.msra.mxu0 0.0
      %2746 = vmatprep.subr.mxu0 0.0
      %2747 = vmatpush1.msra.mxu0 0.0
      %2748 = vmatprep.subr.mxu0 0.0
      %2749 = vmatpush1.msra.mxu0 0.0
      %2750 = vmatprep.subr.mxu0 0.0
      %2751 = vmatpush1.msra.mxu0 0.0
      %2752 = vmatprep.subr.mxu0 0.0
      %2753 = vmatpush1.msra.mxu0 0.0
      %2754 = vmatprep.subr.mxu0 0.0
      %2755 = vmatpush1.msra.mxu0 0.0
      %2756 = vmatprep.subr.mxu0 0.0
      %2757 = vmatpush1.msra.mxu0 0.0
      %2758 = vmatprep.subr.mxu0 0.0
      %2759 = vmatpush1.msra.mxu0 0.0
      %2760 = vmatprep.subr.mxu0 0.0
      %2761 = vmatpush1.msra.mxu0 0.0
      %2762 = vmatprep.subr.mxu0 0.0
      %2763 = vmatpush1.msra.mxu0 0.0
      %2764 = vmatprep.subr.mxu0 0.0
      %2765 = vmatpush1.msra.mxu0 0.0
      %2766 = vmatprep.subr.mxu0 0.0
      %2767 = vmatpush1.msra.mxu0 0.0
      %2768 = vmatprep.mubr.f32.mxu0 0.0
      %2769 = vmatmul.mubr.f32.gmra.mrb[0].mxu0 %v2693
      %v2770 = vpop.f32.mrb[0].mxu0
      %v2771 = vadd.f32 0.0, %v2770
      %v2772 = vpop.f32.mrb[0].mxu0
      %2773 = vmatprep.mubr.f32.mxu0 0.0
      %2774 = vmatmul.mubr.f32.gmra.mrb[0].mxu0 %v2696
      %v2775 = vpop.f32.mrb[0].mxu0
      %v2776 = vadd.f32 0.0, %v2775
      %v2777 = vpop.f32.mrb[0].mxu0
      %2778 = vmatprep.mubr.f32.mxu0 0.0
      %2779 = vmatmul.mubr.f32.gmra.mrb[0].mxu0 %v2699
      %v2780 = vpop.f32.mrb[0].mxu0
      %v2781 = vadd.f32 0.0, %v2780
      %v2782 = vpop.f32.mrb[0].mxu0
      %2783 = vmatprep.mubr.f32.mxu0 0.0
      %2784 = vmatmul.mubr.f32.gmra.mrb[0].mxu0 %v2702
      %v2785 = vpop.f32.mrb[0].mxu0
      %v2786 = vadd.f32 0.0, %v2785
      %v2787 = vpop.f32.mrb[0].mxu0
      %2788 = vdwg.mxu0
      %v2789 = vld [vmem:[%s9] sm:$0xff]
      %v2790 = vld [vmem:[%s9 + $0x8] sm:$0xff]
      %v2791 = vld [vmem:[%s9 + $0x10] sm:$0xff]
      %v2792 = vld [vmem:[%s9 + $0x18] sm:$0xff]
      %v2793 = vld [vmem:[%s9 + $0x20] sm:$0xff]
      %v2794 = vld [vmem:[%s9 + $0x28] sm:$0xff]
      %v2795 = vld [vmem:[%s9 + $0x30] sm:$0xff]
      %v2796 = vld [vmem:[%s9 + $0x38] sm:$0xff]
      %v2797 = vld [vmem:[%s9 + $0x40] sm:$0xff]
      %v2798 = vld [vmem:[%s9 + $0x48] sm:$0xff]
      %v2799 = vld [vmem:[%s9 + $0x50] sm:$0xff]
      %v2800 = vld [vmem:[%s9 + $0x58] sm:$0xff]
      %v2802 = vsel %vm1308, %v2789, 0
      %v2805 = vsel %vm1308, %v2790, 0
      %v2808 = vsel %vm1308, %v2791, 0
      %v2811 = vsel %vm1308, %v2792, 0
      %v2814 = vsel %vm1308, %v2793, 0
      %v2817 = vsel %vm1308, %v2794, 0
      %v2820 = vsel %vm1308, %v2795, 0
      %v2823 = vsel %vm1308, %v2796, 0
      %v2826 = vsel %vm1308, %v2797, 0
      %v2829 = vsel %vm1308, %v2798, 0
      %v2832 = vsel %vm1308, %v2799, 0
      %v2835 = vsel %vm1308, %v2800, 0
      %2837 = vmatprep.subr.mxu0 0.0
      %2838 = vmatpush1.msra.mxu0 %v2771
      %2839 = vmatprep.subr.mxu0 0.0
      %2840 = vmatpush1.msra.mxu0 %v2776
      %2841 = vmatprep.subr.mxu0 0.0
      %2842 = vmatpush1.msra.mxu0 %v2781
      %2843 = vmatprep.subr.mxu0 0.0
      %2844 = vmatpush1.msra.mxu0 %v2786
      %2845 = vmatprep.subr.mxu0 0.0
      %2846 = vmatpush1.msra.mxu0 0.0
      %2847 = vmatprep.subr.mxu0 0.0
      %2848 = vmatpush1.msra.mxu0 0.0
      %2849 = vmatprep.subr.mxu0 0.0
      %2850 = vmatpush1.msra.mxu0 0.0
      %2851 = vmatprep.subr.mxu0 0.0
      %2852 = vmatpush1.msra.mxu0 0.0
      %2853 = vmatprep.subr.mxu0 0.0
      %2854 = vmatpush1.msra.mxu0 0.0
      %2855 = vmatprep.subr.mxu0 0.0
      %2856 = vmatpush1.msra.mxu0 0.0
      %2857 = vmatprep.subr.mxu0 0.0
      %2858 = vmatpush1.msra.mxu0 0.0
      %2859 = vmatprep.subr.mxu0 0.0
      %2860 = vmatpush1.msra.mxu0 0.0
      %2861 = vmatprep.subr.mxu0 0.0
      %2862 = vmatpush1.msra.mxu0 0.0
      %2863 = vmatprep.subr.mxu0 0.0
      %2864 = vmatpush1.msra.mxu0 0.0
      %2865 = vmatprep.subr.mxu0 0.0
      %2866 = vmatpush1.msra.mxu0 0.0
      %2867 = vmatprep.subr.mxu0 0.0
      %2868 = vmatpush1.msra.mxu0 0.0
      %2869 = vmatprep.subr.mxu0 0.0
      %2870 = vmatpush1.msra.mxu0 0.0
      %2871 = vmatprep.subr.mxu0 0.0
      %2872 = vmatpush1.msra.mxu0 0.0
      %2873 = vmatprep.subr.mxu0 0.0
      %2874 = vmatpush1.msra.mxu0 0.0
      %2875 = vmatprep.subr.mxu0 0.0
      %2876 = vmatpush1.msra.mxu0 0.0
      %2877 = vmatprep.subr.mxu0 0.0
      %2878 = vmatpush1.msra.mxu0 0.0
      %2879 = vmatprep.subr.mxu0 0.0
      %2880 = vmatpush1.msra.mxu0 0.0
      %2881 = vmatprep.subr.mxu0 0.0
      %2882 = vmatpush1.msra.mxu0 0.0
      %2883 = vmatprep.subr.mxu0 0.0
      %2884 = vmatpush1.msra.mxu0 0.0
      %2885 = vmatprep.subr.mxu0 0.0
      %2886 = vmatpush1.msra.mxu0 0.0
      %2887 = vmatprep.subr.mxu0 0.0
      %2888 = vmatpush1.msra.mxu0 0.0
      %2889 = vmatprep.subr.mxu0 0.0
      %2890 = vmatpush1.msra.mxu0 0.0
      %2891 = vmatprep.subr.mxu0 0.0
      %2892 = vmatpush1.msra.mxu0 0.0
      %2893 = vmatprep.subr.mxu0 0.0
      %2894 = vmatpush1.msra.mxu0 0.0
      %2895 = vmatprep.subr.mxu0 0.0
      %2896 = vmatpush1.msra.mxu0 0.0
      %2897 = vmatprep.subr.mxu0 0.0
      %2898 = vmatpush1.msra.mxu0 0.0
      %2899 = vmatprep.subr.mxu0 0.0
      %2900 = vmatpush1.msra.mxu0 0.0
      %2901 = vmatprep.mubr.f32.mxu0 0.0
      %2902 = vmatmul.mubr.f32.gmra.mrb[0].mxu0 %v2802
      %v2903 = vpop.f32.mrb[0].mxu0
      %v2904 = vadd.f32 0.0, %v2903
      %v2905 = vpop.f32.mrb[0].mxu0
      %2906 = vmatprep.mubr.f32.mxu0 0.0
      %2907 = vmatmul.mubr.f32.gmra.mrb[0].mxu0 %v2805
      %v2908 = vpop.f32.mrb[0].mxu0
      %v2909 = vadd.f32 0.0, %v2908
      %v2910 = vpop.f32.mrb[0].mxu0
      %2911 = vmatprep.mubr.f32.mxu0 0.0
      %2912 = vmatmul.mubr.f32.gmra.mrb[0].mxu0 %v2808
      %v2913 = vpop.f32.mrb[0].mxu0
      %v2914 = vadd.f32 0.0, %v2913
      %v2915 = vpop.f32.mrb[0].mxu0
      %2916 = vmatprep.mubr.f32.mxu0 0.0
      %2917 = vmatmul.mubr.f32.gmra.mrb[0].mxu0 %v2811
      %v2918 = vpop.f32.mrb[0].mxu0
      %v2919 = vadd.f32 0.0, %v2918
      %v2920 = vpop.f32.mrb[0].mxu0
      %2921 = vmatprep.mubr.f32.mxu0 0.0
      %2922 = vmatmul.mubr.f32.gmra.mrb[0].mxu0 %v2814
      %v2923 = vpop.f32.mrb[0].mxu0
      %v2924 = vadd.f32 0.0, %v2923
      %v2925 = vpop.f32.mrb[0].mxu0
      %2926 = vmatprep.mubr.f32.mxu0 0.0
      %2927 = vmatmul.mubr.f32.gmra.mrb[0].mxu0 %v2817
      %v2928 = vpop.f32.mrb[0].mxu0
      %v2929 = vadd.f32 0.0, %v2928
      %v2930 = vpop.f32.mrb[0].mxu0
      %2931 = vmatprep.mubr.f32.mxu0 0.0
      %2932 = vmatmul.mubr.f32.gmra.mrb[0].mxu0 %v2820
      %v2933 = vpop.f32.mrb[0].mxu0
      %v2934 = vadd.f32 0.0, %v2933
      %v2935 = vpop.f32.mrb[0].mxu0
      %2936 = vmatprep.mubr.f32.mxu0 0.0
      %2937 = vmatmul.mubr.f32.gmra.mrb[0].mxu0 %v2823
      %v2938 = vpop.f32.mrb[0].mxu0
      %v2939 = vadd.f32 0.0, %v2938
      %v2940 = vpop.f32.mrb[0].mxu0
      %2941 = vmatprep.mubr.f32.mxu0 0.0
      %2942 = vmatmul.mubr.f32.gmra.mrb[0].mxu0 %v2826
      %v2943 = vpop.f32.mrb[0].mxu0
      %v2944 = vadd.f32 0.0, %v2943
      %v2945 = vpop.f32.mrb[0].mxu0
      %2946 = vmatprep.mubr.f32.mxu0 0.0
      %2947 = vmatmul.mubr.f32.gmra.mrb[0].mxu0 %v2829
      %v2948 = vpop.f32.mrb[0].mxu0
      %v2949 = vadd.f32 0.0, %v2948
      %v2950 = vpop.f32.mrb[0].mxu0
      %2951 = vmatprep.mubr.f32.mxu0 0.0
      %2952 = vmatmul.mubr.f32.gmra.mrb[0].mxu0 %v2832
      %v2953 = vpop.f32.mrb[0].mxu0
      %v2954 = vadd.f32 0.0, %v2953
      %v2955 = vpop.f32.mrb[0].mxu0
      %2956 = vmatprep.mubr.f32.mxu0 0.0
      %2957 = vmatmul.mubr.f32.gmra.mrb[0].mxu0 %v2835
      %v2958 = vpop.f32.mrb[0].mxu0
      %v2959 = vadd.f32 0.0, %v2958
      %v2960 = vpop.f32.mrb[0].mxu0
      %2961 = vdwg.mxu0
      %2966 = vrot.lane.b32.xlu0 %v2924, 127
      %v2967 = vpop.permute.xlu0 %2966
      %2968 = vrot.lane.b32.xlu0 %v2929, 127
      %v2969 = vpop.permute.xlu0 %2968
      %2970 = vrot.lane.b32.xlu0 %v2934, 127
      %v2971 = vpop.permute.xlu0 %2970
      %2972 = vrot.lane.b32.xlu0 %v2939, 127
      %v2973 = vpop.permute.xlu0 %2972
      %v2978 = vadd.f32 %v2904, %v2967
      %v2979 = vadd.f32 %v2909, %v2969
      %v2980 = vadd.f32 %v2914, %v2971
      %v2981 = vadd.f32 %v2919, %v2973
      %2986 = vrot.lane.b32.xlu0 %v2944, 126
      %v2987 = vpop.permute.xlu0 %2986
      %2988 = vrot.lane.b32.xlu0 %v2949, 126
      %v2989 = vpop.permute.xlu0 %2988
      %2990 = vrot.lane.b32.xlu0 %v2954, 126
      %v2991 = vpop.permute.xlu0 %2990
      %2992 = vrot.lane.b32.xlu0 %v2959, 126
      %v2993 = vpop.permute.xlu0 %2992
      %v2998 = vadd.f32 %v2978, %v2987
      %v2999 = vadd.f32 %v2979, %v2989
      %v3000 = vadd.f32 %v2980, %v2991
      %v3001 = vadd.f32 %v2981, %v2993
      %v3002 = vld [vmem:[%s10] sm:$0xff]
      %v3003 = vld [vmem:[%s10 + $0x8] sm:$0xff]
      %v3004 = vld [vmem:[%s10 + $0x10] sm:$0xff]
      %v3005 = vld [vmem:[%s10 + $0x18] sm:$0xff]
      %3007 = vset.pattern.permute.xlu0 0
      %3008 = vperm.xlu0 %3007, %v3002
      %v3009 = vpop.permute.xlu0 %3008
      %3012 = vset.pattern.permute.xlu0 0
      %3013 = vperm.xlu0 %3012, %v3003
      %v3014 = vpop.permute.xlu0 %3013
      %3017 = vset.pattern.permute.xlu0 0
      %3018 = vperm.xlu0 %3017, %v3004
      %v3019 = vpop.permute.xlu0 %3018
      %3022 = vset.pattern.permute.xlu0 0
      %3023 = vperm.xlu0 %3022, %v3005
      %v3024 = vpop.permute.xlu0 %3023
      %v3026 = vadd.f32 %v2998, %v3009
      %v3027 = vadd.f32 %v2999, %v3014
      %v3028 = vadd.f32 %v3000, %v3019
      %v3029 = vadd.f32 %v3001, %v3024
      %vm3030 = vcmp.ge.f32.partialorder %v3026, 0.0
      %vm3031 = vcmp.ge.f32.partialorder %v3027, 0.0
      %vm3032 = vcmp.ge.f32.partialorder %v3028, 0.0
      %vm3033 = vcmp.ge.f32.partialorder %v3029, 0.0
      %v3034 = vmul.f32 %v3026, 0.2
      %v3035 = vmul.f32 %v3027, 0.2
      %v3036 = vmul.f32 %v3028, 0.2
      %v3037 = vmul.f32 %v3029, 0.2
      %v3038 = vsel %vm3030, %v3026, %v3034
      %v3039 = vsel %vm3031, %v3027, %v3035
      %v3040 = vsel %vm3032, %v3028, %v3036
      %v3041 = vsel %vm3033, %v3029, %v3037
      %3042 = vset.pattern.permute.xlu0 1
      %3043 = vperm.xlu0 %3042, %v3002
      %v3044 = vpop.permute.xlu0 %3043
      %3046 = vset.pattern.permute.xlu0 1
      %3047 = vperm.xlu0 %3046, %v3003
      %v3048 = vpop.permute.xlu0 %3047
      %3050 = vset.pattern.permute.xlu0 1
      %3051 = vperm.xlu0 %3050, %v3004
      %v3052 = vpop.permute.xlu0 %3051
      %3054 = vset.pattern.permute.xlu0 1
      %3055 = vperm.xlu0 %3054, %v3005
      %v3056 = vpop.permute.xlu0 %3055
      %v3058 = vmul.f32 %v3038, %v3044
      %v3059 = vmul.f32 %v3039, %v3048
      %v3060 = vmul.f32 %v3040, %v3052
      %v3061 = vmul.f32 %v3041, %v3056
      %3062 = vset.pattern.permute.xlu0 2
      %3063 = vperm.xlu0 %3062, %v3002
      %v3064 = vpop.permute.xlu0 %3063
      %3066 = vset.pattern.permute.xlu0 2
      %3067 = vperm.xlu0 %3066, %v3003
      %v3068 = vpop.permute.xlu0 %3067
      %3070 = vset.pattern.permute.xlu0 2
      %3071 = vperm.xlu0 %3070, %v3004
      %v3072 = vpop.permute.xlu0 %3071
      %3074 = vset.pattern.permute.xlu0 2
      %3075 = vperm.xlu0 %3074, %v3005
      %v3076 = vpop.permute.xlu0 %3075
      %v3078 = vadd.f32 %v3058, %v3064
      %v3079 = vadd.f32 %v3059, %v3068
      %v3080 = vadd.f32 %v3060, %v3072
      %v3081 = vadd.f32 %v3061, %v3076
      %v3082 = vadd.f32 %v3078, %v1586
      %v3083 = vadd.f32 %v3079, %v1587
      %v3084 = vadd.f32 %v3080, %v1588
      %v3085 = vadd.f32 %v3081, %v1589
      %v3087 = vsel %vm1198, %v3082, 0
      %v3090 = vsel %vm1198, %v3083, 0
      %v3093 = vsel %vm1198, %v3084, 0
      %v3096 = vsel %vm1198, %v3085, 0
      %3098 = vmatprep.subr.mxu0 0.0
      %3099 = vmatpush1.msra.mxu0 %v616
      %3100 = vmatprep.subr.mxu0 0.0
      %3101 = vmatpush1.msra.mxu0 0.0
      %3102 = vmatprep.subr.mxu0 0.0
      %3103 = vmatpush1.msra.mxu0 0.0
      %3104 = vmatprep.subr.mxu0 0.0
      %3105 = vmatpush1.msra.mxu0 0.0
      %3106 = vmatprep.subr.mxu0 0.0
      %3107 = vmatpush1.msra.mxu0 0.0
      %3108 = vmatprep.subr.mxu0 0.0
      %3109 = vmatpush1.msra.mxu0 0.0
      %3110 = vmatprep.subr.mxu0 0.0
      %3111 = vmatpush1.msra.mxu0 0.0
      %3112 = vmatprep.subr.mxu0 0.0
      %3113 = vmatpush1.msra.mxu0 0.0
      %3114 = vmatprep.subr.mxu0 0.0
      %3115 = vmatpush1.msra.mxu0 0.0
      %3116 = vmatprep.subr.mxu0 0.0
      %3117 = vmatpush1.msra.mxu0 0.0
      %3118 = vmatprep.subr.mxu0 0.0
      %3119 = vmatpush1.msra.mxu0 0.0
      %3120 = vmatprep.subr.mxu0 0.0
      %3121 = vmatpush1.msra.mxu0 0.0
      %3122 = vmatprep.subr.mxu0 0.0
      %3123 = vmatpush1.msra.mxu0 0.0
      %3124 = vmatprep.subr.mxu0 0.0
      %3125 = vmatpush1.msra.mxu0 0.0
      %3126 = vmatprep.subr.mxu0 0.0
      %3127 = vmatpush1.msra.mxu0 0.0
      %3128 = vmatprep.subr.mxu0 0.0
      %3129 = vmatpush1.msra.mxu0 0.0
      %3130 = vmatprep.subr.mxu0 0.0
      %3131 = vmatpush1.msra.mxu0 0.0
      %3132 = vmatprep.subr.mxu0 0.0
      %3133 = vmatpush1.msra.mxu0 0.0
      %3134 = vmatprep.subr.mxu0 0.0
      %3135 = vmatpush1.msra.mxu0 0.0
      %3136 = vmatprep.subr.mxu0 0.0
      %3137 = vmatpush1.msra.mxu0 0.0
      %3138 = vmatprep.subr.mxu0 0.0
      %3139 = vmatpush1.msra.mxu0 0.0
      %3140 = vmatprep.subr.mxu0 0.0
      %3141 = vmatpush1.msra.mxu0 0.0
      %3142 = vmatprep.subr.mxu0 0.0
      %3143 = vmatpush1.msra.mxu0 0.0
      %3144 = vmatprep.subr.mxu0 0.0
      %3145 = vmatpush1.msra.mxu0 0.0
      %3146 = vmatprep.subr.mxu0 0.0
      %3147 = vmatpush1.msra.mxu0 0.0
      %3148 = vmatprep.subr.mxu0 0.0
      %3149 = vmatpush1.msra.mxu0 0.0
      %3150 = vmatprep.subr.mxu0 0.0
      %3151 = vmatpush1.msra.mxu0 0.0
      %3152 = vmatprep.subr.mxu0 0.0
      %3153 = vmatpush1.msra.mxu0 0.0
      %3154 = vmatprep.subr.mxu0 0.0
      %3155 = vmatpush1.msra.mxu0 0.0
      %3156 = vmatprep.subr.mxu0 0.0
      %3157 = vmatpush1.msra.mxu0 0.0
      %3158 = vmatprep.subr.mxu0 0.0
      %3159 = vmatpush1.msra.mxu0 0.0
      %3160 = vmatprep.subr.mxu0 0.0
      %3161 = vmatpush1.msra.mxu0 0.0
      %3162 = vmatprep.mubr.f32.mxu0 0.0
      %3163 = vmatmul.mubr.f32.gmra.mrb[0].mxu0 %v3087
      %v3164 = vpop.f32.mrb[0].mxu0
      %v3165 = vadd.f32 0.0, %v3164
      %v3166 = vpop.f32.mrb[0].mxu0
      %3167 = vmatprep.mubr.f32.mxu0 0.0
      %3168 = vmatmul.mubr.f32.gmra.mrb[0].mxu0 %v3090
      %v3169 = vpop.f32.mrb[0].mxu0
      %v3170 = vadd.f32 0.0, %v3169
      %v3171 = vpop.f32.mrb[0].mxu0
      %3172 = vmatprep.mubr.f32.mxu0 0.0
      %3173 = vmatmul.mubr.f32.gmra.mrb[0].mxu0 %v3093
      %v3174 = vpop.f32.mrb[0].mxu0
      %v3175 = vadd.f32 0.0, %v3174
      %v3176 = vpop.f32.mrb[0].mxu0
      %3177 = vmatprep.mubr.f32.mxu0 0.0
      %3178 = vmatmul.mubr.f32.gmra.mrb[0].mxu0 %v3096
      %v3179 = vpop.f32.mrb[0].mxu0
      %v3180 = vadd.f32 0.0, %v3179
      %v3181 = vpop.f32.mrb[0].mxu0
      %3182 = vdwg.mxu0
      %v3183 = vld [vmem:[%s11] sm:$0xff]
      %v3184 = vld [vmem:[%s11 + $0x8] sm:$0xff]
      %v3185 = vld [vmem:[%s11 + $0x10] sm:$0xff]
      %v3186 = vld [vmem:[%s11 + $0x18] sm:$0xff]
      %v3187 = vld [vmem:[%s11 + $0x20] sm:$0xff]
      %v3188 = vld [vmem:[%s11 + $0x28] sm:$0xff]
      %v3189 = vld [vmem:[%s11 + $0x30] sm:$0xff]
      %v3190 = vld [vmem:[%s11 + $0x38] sm:$0xff]
      %v3191 = vld [vmem:[%s11 + $0x40] sm:$0xff]
      %v3192 = vld [vmem:[%s11 + $0x48] sm:$0xff]
      %v3193 = vld [vmem:[%s11 + $0x50] sm:$0xff]
      %v3194 = vld [vmem:[%s11 + $0x58] sm:$0xff]
      %v3196 = vsel %vm1308, %v3183, 0
      %v3199 = vsel %vm1308, %v3184, 0
      %v3202 = vsel %vm1308, %v3185, 0
      %v3205 = vsel %vm1308, %v3186, 0
      %v3208 = vsel %vm1308, %v3187, 0
      %v3211 = vsel %vm1308, %v3188, 0
      %v3214 = vsel %vm1308, %v3189, 0
      %v3217 = vsel %vm1308, %v3190, 0
      %v3220 = vsel %vm1308, %v3191, 0
      %v3223 = vsel %vm1308, %v3192, 0
      %v3226 = vsel %vm1308, %v3193, 0
      %v3229 = vsel %vm1308, %v3194, 0
      %3231 = vmatprep.subr.mxu0 0.0
      %3232 = vmatpush1.msra.mxu0 %v3165
      %3233 = vmatprep.subr.mxu0 0.0
      %3234 = vmatpush1.msra.mxu0 %v3170
      %3235 = vmatprep.subr.mxu0 0.0
      %3236 = vmatpush1.msra.mxu0 %v3175
      %3237 = vmatprep.subr.mxu0 0.0
      %3238 = vmatpush1.msra.mxu0 %v3180
      %3239 = vmatprep.subr.mxu0 0.0
      %3240 = vmatpush1.msra.mxu0 0.0
      %3241 = vmatprep.subr.mxu0 0.0
      %3242 = vmatpush1.msra.mxu0 0.0
      %3243 = vmatprep.subr.mxu0 0.0
      %3244 = vmatpush1.msra.mxu0 0.0
      %3245 = vmatprep.subr.mxu0 0.0
      %3246 = vmatpush1.msra.mxu0 0.0
      %3247 = vmatprep.subr.mxu0 0.0
      %3248 = vmatpush1.msra.mxu0 0.0
      %3249 = vmatprep.subr.mxu0 0.0
      %3250 = vmatpush1.msra.mxu0 0.0
      %3251 = vmatprep.subr.mxu0 0.0
      %3252 = vmatpush1.msra.mxu0 0.0
      %3253 = vmatprep.subr.mxu0 0.0
      %3254 = vmatpush1.msra.mxu0 0.0
      %3255 = vmatprep.subr.mxu0 0.0
      %3256 = vmatpush1.msra.mxu0 0.0
      %3257 = vmatprep.subr.mxu0 0.0
      %3258 = vmatpush1.msra.mxu0 0.0
      %3259 = vmatprep.subr.mxu0 0.0
      %3260 = vmatpush1.msra.mxu0 0.0
      %3261 = vmatprep.subr.mxu0 0.0
      %3262 = vmatpush1.msra.mxu0 0.0
      %3263 = vmatprep.subr.mxu0 0.0
      %3264 = vmatpush1.msra.mxu0 0.0
      %3265 = vmatprep.subr.mxu0 0.0
      %3266 = vmatpush1.msra.mxu0 0.0
      %3267 = vmatprep.subr.mxu0 0.0
      %3268 = vmatpush1.msra.mxu0 0.0
      %3269 = vmatprep.subr.mxu0 0.0
      %3270 = vmatpush1.msra.mxu0 0.0
      %3271 = vmatprep.subr.mxu0 0.0
      %3272 = vmatpush1.msra.mxu0 0.0
      %3273 = vmatprep.subr.mxu0 0.0
      %3274 = vmatpush1.msra.mxu0 0.0
      %3275 = vmatprep.subr.mxu0 0.0
      %3276 = vmatpush1.msra.mxu0 0.0
      %3277 = vmatprep.subr.mxu0 0.0
      %3278 = vmatpush1.msra.mxu0 0.0
      %3279 = vmatprep.subr.mxu0 0.0
      %3280 = vmatpush1.msra.mxu0 0.0
      %3281 = vmatprep.subr.mxu0 0.0
      %3282 = vmatpush1.msra.mxu0 0.0
      %3283 = vmatprep.subr.mxu0 0.0
      %3284 = vmatpush1.msra.mxu0 0.0
      %3285 = vmatprep.subr.mxu0 0.0
      %3286 = vmatpush1.msra.mxu0 0.0
      %3287 = vmatprep.subr.mxu0 0.0
      %3288 = vmatpush1.msra.mxu0 0.0
      %3289 = vmatprep.subr.mxu0 0.0
      %3290 = vmatpush1.msra.mxu0 0.0
      %3291 = vmatprep.subr.mxu0 0.0
      %3292 = vmatpush1.msra.mxu0 0.0
      %3293 = vmatprep.subr.mxu0 0.0
      %3294 = vmatpush1.msra.mxu0 0.0
      %3295 = vmatprep.mubr.f32.mxu0 0.0
      %3296 = vmatmul.mubr.f32.gmra.mrb[0].mxu0 %v3196
      %v3297 = vpop.f32.mrb[0].mxu0
      %v3298 = vadd.f32 0.0, %v3297
      %v3299 = vpop.f32.mrb[0].mxu0
      %3300 = vmatprep.mubr.f32.mxu0 0.0
      %3301 = vmatmul.mubr.f32.gmra.mrb[0].mxu0 %v3199
      %v3302 = vpop.f32.mrb[0].mxu0
      %v3303 = vadd.f32 0.0, %v3302
      %v3304 = vpop.f32.mrb[0].mxu0
      %3305 = vmatprep.mubr.f32.mxu0 0.0
      %3306 = vmatmul.mubr.f32.gmra.mrb[0].mxu0 %v3202
      %v3307 = vpop.f32.mrb[0].mxu0
      %v3308 = vadd.f32 0.0, %v3307
      %v3309 = vpop.f32.mrb[0].mxu0
      %3310 = vmatprep.mubr.f32.mxu0 0.0
      %3311 = vmatmul.mubr.f32.gmra.mrb[0].mxu0 %v3205
      %v3312 = vpop.f32.mrb[0].mxu0
      %v3313 = vadd.f32 0.0, %v3312
      %v3314 = vpop.f32.mrb[0].mxu0
      %3315 = vmatprep.mubr.f32.mxu0 0.0
      %3316 = vmatmul.mubr.f32.gmra.mrb[0].mxu0 %v3208
      %v3317 = vpop.f32.mrb[0].mxu0
      %v3318 = vadd.f32 0.0, %v3317
      %v3319 = vpop.f32.mrb[0].mxu0
      %3320 = vmatprep.mubr.f32.mxu0 0.0
      %3321 = vmatmul.mubr.f32.gmra.mrb[0].mxu0 %v3211
      %v3322 = vpop.f32.mrb[0].mxu0
      %v3323 = vadd.f32 0.0, %v3322
      %v3324 = vpop.f32.mrb[0].mxu0
      %3325 = vmatprep.mubr.f32.mxu0 0.0
      %3326 = vmatmul.mubr.f32.gmra.mrb[0].mxu0 %v3214
      %v3327 = vpop.f32.mrb[0].mxu0
      %v3328 = vadd.f32 0.0, %v3327
      %v3329 = vpop.f32.mrb[0].mxu0
      %3330 = vmatprep.mubr.f32.mxu0 0.0
      %3331 = vmatmul.mubr.f32.gmra.mrb[0].mxu0 %v3217
      %v3332 = vpop.f32.mrb[0].mxu0
      %v3333 = vadd.f32 0.0, %v3332
      %v3334 = vpop.f32.mrb[0].mxu0
      %3335 = vmatprep.mubr.f32.mxu0 0.0
      %3336 = vmatmul.mubr.f32.gmra.mrb[0].mxu0 %v3220
      %v3337 = vpop.f32.mrb[0].mxu0
      %v3338 = vadd.f32 0.0, %v3337
      %v3339 = vpop.f32.mrb[0].mxu0
      %3340 = vmatprep.mubr.f32.mxu0 0.0
      %3341 = vmatmul.mubr.f32.gmra.mrb[0].mxu0 %v3223
      %v3342 = vpop.f32.mrb[0].mxu0
      %v3343 = vadd.f32 0.0, %v3342
      %v3344 = vpop.f32.mrb[0].mxu0
      %3345 = vmatprep.mubr.f32.mxu0 0.0
      %3346 = vmatmul.mubr.f32.gmra.mrb[0].mxu0 %v3226
      %v3347 = vpop.f32.mrb[0].mxu0
      %v3348 = vadd.f32 0.0, %v3347
      %v3349 = vpop.f32.mrb[0].mxu0
      %3350 = vmatprep.mubr.f32.mxu0 0.0
      %3351 = vmatmul.mubr.f32.gmra.mrb[0].mxu0 %v3229
      %v3352 = vpop.f32.mrb[0].mxu0
      %v3353 = vadd.f32 0.0, %v3352
      %v3354 = vpop.f32.mrb[0].mxu0
      %3355 = vdwg.mxu0
      %3360 = vrot.lane.b32.xlu0 %v3318, 127
      %v3361 = vpop.permute.xlu0 %3360
      %3362 = vrot.lane.b32.xlu0 %v3323, 127
      %v3363 = vpop.permute.xlu0 %3362
      %3364 = vrot.lane.b32.xlu0 %v3328, 127
      %v3365 = vpop.permute.xlu0 %3364
      %3366 = vrot.lane.b32.xlu0 %v3333, 127
      %v3367 = vpop.permute.xlu0 %3366
      %v3372 = vadd.f32 %v3298, %v3361
      %v3373 = vadd.f32 %v3303, %v3363
      %v3374 = vadd.f32 %v3308, %v3365
      %v3375 = vadd.f32 %v3313, %v3367
      %3380 = vrot.lane.b32.xlu0 %v3338, 126
      %v3381 = vpop.permute.xlu0 %3380
      %3382 = vrot.lane.b32.xlu0 %v3343, 126
      %v3383 = vpop.permute.xlu0 %3382
      %3384 = vrot.lane.b32.xlu0 %v3348, 126
      %v3385 = vpop.permute.xlu0 %3384
      %3386 = vrot.lane.b32.xlu0 %v3353, 126
      %v3387 = vpop.permute.xlu0 %3386
      %v3392 = vadd.f32 %v3372, %v3381
      %v3393 = vadd.f32 %v3373, %v3383
      %v3394 = vadd.f32 %v3374, %v3385
      %v3395 = vadd.f32 %v3375, %v3387
      %v3396 = vld [vmem:[%s12] sm:$0xff]
      %v3397 = vld [vmem:[%s12 + $0x8] sm:$0xff]
      %v3398 = vld [vmem:[%s12 + $0x10] sm:$0xff]
      %v3399 = vld [vmem:[%s12 + $0x18] sm:$0xff]
      %3401 = vset.pattern.permute.xlu0 0
      %3402 = vperm.xlu0 %3401, %v3396
      %v3403 = vpop.permute.xlu0 %3402
      %3406 = vset.pattern.permute.xlu0 0
      %3407 = vperm.xlu0 %3406, %v3397
      %v3408 = vpop.permute.xlu0 %3407
      %3411 = vset.pattern.permute.xlu0 0
      %3412 = vperm.xlu0 %3411, %v3398
      %v3413 = vpop.permute.xlu0 %3412
      %3416 = vset.pattern.permute.xlu0 0
      %3417 = vperm.xlu0 %3416, %v3399
      %v3418 = vpop.permute.xlu0 %3417
      %v3420 = vadd.f32 %v3392, %v3403
      %v3421 = vadd.f32 %v3393, %v3408
      %v3422 = vadd.f32 %v3394, %v3413
      %v3423 = vadd.f32 %v3395, %v3418
      %vm3424 = vcmp.ge.f32.partialorder %v3420, 0.0
      %vm3425 = vcmp.ge.f32.partialorder %v3421, 0.0
      %vm3426 = vcmp.ge.f32.partialorder %v3422, 0.0
      %vm3427 = vcmp.ge.f32.partialorder %v3423, 0.0
      %v3428 = vmul.f32 %v3420, 0.2
      %v3429 = vmul.f32 %v3421, 0.2
      %v3430 = vmul.f32 %v3422, 0.2
      %v3431 = vmul.f32 %v3423, 0.2
      %v3432 = vsel %vm3424, %v3420, %v3428
      %v3433 = vsel %vm3425, %v3421, %v3429
      %v3434 = vsel %vm3426, %v3422, %v3430
      %v3435 = vsel %vm3427, %v3423, %v3431
      %3436 = vset.pattern.permute.xlu0 1
      %3437 = vperm.xlu0 %3436, %v3396
      %v3438 = vpop.permute.xlu0 %3437
      %3440 = vset.pattern.permute.xlu0 1
      %3441 = vperm.xlu0 %3440, %v3397
      %v3442 = vpop.permute.xlu0 %3441
      %3444 = vset.pattern.permute.xlu0 1
      %3445 = vperm.xlu0 %3444, %v3398
      %v3446 = vpop.permute.xlu0 %3445
      %3448 = vset.pattern.permute.xlu0 1
      %3449 = vperm.xlu0 %3448, %v3399
      %v3450 = vpop.permute.xlu0 %3449
      %v3452 = vmul.f32 %v3432, %v3438
      %v3453 = vmul.f32 %v3433, %v3442
      %v3454 = vmul.f32 %v3434, %v3446
      %v3455 = vmul.f32 %v3435, %v3450
      %3456 = vset.pattern.permute.xlu0 2
      %3457 = vperm.xlu0 %3456, %v3396
      %v3458 = vpop.permute.xlu0 %3457
      %3460 = vset.pattern.permute.xlu0 2
      %3461 = vperm.xlu0 %3460, %v3397
      %v3462 = vpop.permute.xlu0 %3461
      %3464 = vset.pattern.permute.xlu0 2
      %3465 = vperm.xlu0 %3464, %v3398
      %v3466 = vpop.permute.xlu0 %3465
      %3468 = vset.pattern.permute.xlu0 2
      %3469 = vperm.xlu0 %3468, %v3399
      %v3470 = vpop.permute.xlu0 %3469
      %v3472 = vadd.f32 %v3452, %v3458
      %v3473 = vadd.f32 %v3453, %v3462
      %v3474 = vadd.f32 %v3454, %v3466
      %v3475 = vadd.f32 %v3455, %v3470
      %v3477 = vsel %vm1198, %v3472, 0
      %v3480 = vsel %vm1198, %v3473, 0
      %v3483 = vsel %vm1198, %v3474, 0
      %v3486 = vsel %vm1198, %v3475, 0
      %3488 = vmatprep.subr.mxu0 0.0
      %3489 = vmatpush1.msra.mxu0 %v616
      %3490 = vmatprep.subr.mxu0 0.0
      %3491 = vmatpush1.msra.mxu0 0.0
      %3492 = vmatprep.subr.mxu0 0.0
      %3493 = vmatpush1.msra.mxu0 0.0
      %3494 = vmatprep.subr.mxu0 0.0
      %3495 = vmatpush1.msra.mxu0 0.0
      %3496 = vmatprep.subr.mxu0 0.0
      %3497 = vmatpush1.msra.mxu0 0.0
      %3498 = vmatprep.subr.mxu0 0.0
      %3499 = vmatpush1.msra.mxu0 0.0
      %3500 = vmatprep.subr.mxu0 0.0
      %3501 = vmatpush1.msra.mxu0 0.0
      %3502 = vmatprep.subr.mxu0 0.0
      %3503 = vmatpush1.msra.mxu0 0.0
      %3504 = vmatprep.subr.mxu0 0.0
      %3505 = vmatpush1.msra.mxu0 0.0
      %3506 = vmatprep.subr.mxu0 0.0
      %3507 = vmatpush1.msra.mxu0 0.0
      %3508 = vmatprep.subr.mxu0 0.0
      %3509 = vmatpush1.msra.mxu0 0.0
      %3510 = vmatprep.subr.mxu0 0.0
      %3511 = vmatpush1.msra.mxu0 0.0
      %3512 = vmatprep.subr.mxu0 0.0
      %3513 = vmatpush1.msra.mxu0 0.0
      %3514 = vmatprep.subr.mxu0 0.0
      %3515 = vmatpush1.msra.mxu0 0.0
      %3516 = vmatprep.subr.mxu0 0.0
      %3517 = vmatpush1.msra.mxu0 0.0
      %3518 = vmatprep.subr.mxu0 0.0
      %3519 = vmatpush1.msra.mxu0 0.0
      %3520 = vmatprep.subr.mxu0 0.0
      %3521 = vmatpush1.msra.mxu0 0.0
      %3522 = vmatprep.subr.mxu0 0.0
      %3523 = vmatpush1.msra.mxu0 0.0
      %3524 = vmatprep.subr.mxu0 0.0
      %3525 = vmatpush1.msra.mxu0 0.0
      %3526 = vmatprep.subr.mxu0 0.0
      %3527 = vmatpush1.msra.mxu0 0.0
      %3528 = vmatprep.subr.mxu0 0.0
      %3529 = vmatpush1.msra.mxu0 0.0
      %3530 = vmatprep.subr.mxu0 0.0
      %3531 = vmatpush1.msra.mxu0 0.0
      %3532 = vmatprep.subr.mxu0 0.0
      %3533 = vmatpush1.msra.mxu0 0.0
      %3534 = vmatprep.subr.mxu0 0.0
      %3535 = vmatpush1.msra.mxu0 0.0
      %3536 = vmatprep.subr.mxu0 0.0
      %3537 = vmatpush1.msra.mxu0 0.0
      %3538 = vmatprep.subr.mxu0 0.0
      %3539 = vmatpush1.msra.mxu0 0.0
      %3540 = vmatprep.subr.mxu0 0.0
      %3541 = vmatpush1.msra.mxu0 0.0
      %3542 = vmatprep.subr.mxu0 0.0
      %3543 = vmatpush1.msra.mxu0 0.0
      %3544 = vmatprep.subr.mxu0 0.0
      %3545 = vmatpush1.msra.mxu0 0.0
      %3546 = vmatprep.subr.mxu0 0.0
      %3547 = vmatpush1.msra.mxu0 0.0
      %3548 = vmatprep.subr.mxu0 0.0
      %3549 = vmatpush1.msra.mxu0 0.0
      %3550 = vmatprep.subr.mxu0 0.0
      %3551 = vmatpush1.msra.mxu0 0.0
      %3552 = vmatprep.mubr.f32.mxu0 0.0
      %3553 = vmatmul.mubr.f32.gmra.mrb[0].mxu0 %v3477
      %v3554 = vpop.f32.mrb[0].mxu0
      %v3555 = vadd.f32 0.0, %v3554
      %v3556 = vpop.f32.mrb[0].mxu0
      %3557 = vmatprep.mubr.f32.mxu0 0.0
      %3558 = vmatmul.mubr.f32.gmra.mrb[0].mxu0 %v3480
      %v3559 = vpop.f32.mrb[0].mxu0
      %v3560 = vadd.f32 0.0, %v3559
      %v3561 = vpop.f32.mrb[0].mxu0
      %3562 = vmatprep.mubr.f32.mxu0 0.0
      %3563 = vmatmul.mubr.f32.gmra.mrb[0].mxu0 %v3483
      %v3564 = vpop.f32.mrb[0].mxu0
      %v3565 = vadd.f32 0.0, %v3564
      %v3566 = vpop.f32.mrb[0].mxu0
      %3567 = vmatprep.mubr.f32.mxu0 0.0
      %3568 = vmatmul.mubr.f32.gmra.mrb[0].mxu0 %v3486
      %v3569 = vpop.f32.mrb[0].mxu0
      %v3570 = vadd.f32 0.0, %v3569
      %v3571 = vpop.f32.mrb[0].mxu0
      %3572 = vdwg.mxu0
      %v3573 = vld [vmem:[%s13] sm:$0xff]
      %v3574 = vld [vmem:[%s13 + $0x8] sm:$0xff]
      %v3575 = vld [vmem:[%s13 + $0x10] sm:$0xff]
      %v3576 = vld [vmem:[%s13 + $0x18] sm:$0xff]
      %v3577 = vld [vmem:[%s13 + $0x20] sm:$0xff]
      %v3578 = vld [vmem:[%s13 + $0x28] sm:$0xff]
      %v3579 = vld [vmem:[%s13 + $0x30] sm:$0xff]
      %v3580 = vld [vmem:[%s13 + $0x38] sm:$0xff]
      %v3581 = vld [vmem:[%s13 + $0x40] sm:$0xff]
      %v3582 = vld [vmem:[%s13 + $0x48] sm:$0xff]
      %v3583 = vld [vmem:[%s13 + $0x50] sm:$0xff]
      %v3584 = vld [vmem:[%s13 + $0x58] sm:$0xff]
      %v3586 = vsel %vm1308, %v3573, 0
      %v3589 = vsel %vm1308, %v3574, 0
      %v3592 = vsel %vm1308, %v3575, 0
      %v3595 = vsel %vm1308, %v3576, 0
      %v3598 = vsel %vm1308, %v3577, 0
      %v3601 = vsel %vm1308, %v3578, 0
      %v3604 = vsel %vm1308, %v3579, 0
      %v3607 = vsel %vm1308, %v3580, 0
      %v3610 = vsel %vm1308, %v3581, 0
      %v3613 = vsel %vm1308, %v3582, 0
      %v3616 = vsel %vm1308, %v3583, 0
      %v3619 = vsel %vm1308, %v3584, 0
      %3621 = vmatprep.subr.mxu0 0.0
      %3622 = vmatpush1.msra.mxu0 %v3555
      %3623 = vmatprep.subr.mxu0 0.0
      %3624 = vmatpush1.msra.mxu0 %v3560
      %3625 = vmatprep.subr.mxu0 0.0
      %3626 = vmatpush1.msra.mxu0 %v3565
      %3627 = vmatprep.subr.mxu0 0.0
      %3628 = vmatpush1.msra.mxu0 %v3570
      %3629 = vmatprep.subr.mxu0 0.0
      %3630 = vmatpush1.msra.mxu0 0.0
      %3631 = vmatprep.subr.mxu0 0.0
      %3632 = vmatpush1.msra.mxu0 0.0
      %3633 = vmatprep.subr.mxu0 0.0
      %3634 = vmatpush1.msra.mxu0 0.0
      %3635 = vmatprep.subr.mxu0 0.0
      %3636 = vmatpush1.msra.mxu0 0.0
      %3637 = vmatprep.subr.mxu0 0.0
      %3638 = vmatpush1.msra.mxu0 0.0
      %3639 = vmatprep.subr.mxu0 0.0
      %3640 = vmatpush1.msra.mxu0 0.0
      %3641 = vmatprep.subr.mxu0 0.0
      %3642 = vmatpush1.msra.mxu0 0.0
      %3643 = vmatprep.subr.mxu0 0.0
      %3644 = vmatpush1.msra.mxu0 0.0
      %3645 = vmatprep.subr.mxu0 0.0
      %3646 = vmatpush1.msra.mxu0 0.0
      %3647 = vmatprep.subr.mxu0 0.0
      %3648 = vmatpush1.msra.mxu0 0.0
      %3649 = vmatprep.subr.mxu0 0.0
      %3650 = vmatpush1.msra.mxu0 0.0
      %3651 = vmatprep.subr.mxu0 0.0
      %3652 = vmatpush1.msra.mxu0 0.0
      %3653 = vmatprep.subr.mxu0 0.0
      %3654 = vmatpush1.msra.mxu0 0.0
      %3655 = vmatprep.subr.mxu0 0.0
      %3656 = vmatpush1.msra.mxu0 0.0
      %3657 = vmatprep.subr.mxu0 0.0
      %3658 = vmatpush1.msra.mxu0 0.0
      %3659 = vmatprep.subr.mxu0 0.0
      %3660 = vmatpush1.msra.mxu0 0.0
      %3661 = vmatprep.subr.mxu0 0.0
      %3662 = vmatpush1.msra.mxu0 0.0
      %3663 = vmatprep.subr.mxu0 0.0
      %3664 = vmatpush1.msra.mxu0 0.0
      %3665 = vmatprep.subr.mxu0 0.0
      %3666 = vmatpush1.msra.mxu0 0.0
      %3667 = vmatprep.subr.mxu0 0.0
      %3668 = vmatpush1.msra.mxu0 0.0
      %3669 = vmatprep.subr.mxu0 0.0
      %3670 = vmatpush1.msra.mxu0 0.0
      %3671 = vmatprep.subr.mxu0 0.0
      %3672 = vmatpush1.msra.mxu0 0.0
      %3673 = vmatprep.subr.mxu0 0.0
      %3674 = vmatpush1.msra.mxu0 0.0
      %3675 = vmatprep.subr.mxu0 0.0
      %3676 = vmatpush1.msra.mxu0 0.0
      %3677 = vmatprep.subr.mxu0 0.0
      %3678 = vmatpush1.msra.mxu0 0.0
      %3679 = vmatprep.subr.mxu0 0.0
      %3680 = vmatpush1.msra.mxu0 0.0
      %3681 = vmatprep.subr.mxu0 0.0
      %3682 = vmatpush1.msra.mxu0 0.0
      %3683 = vmatprep.subr.mxu0 0.0
      %3684 = vmatpush1.msra.mxu0 0.0
      %3685 = vmatprep.mubr.f32.mxu0 0.0
      %3686 = vmatmul.mubr.f32.gmra.mrb[0].mxu0 %v3586
      %v3687 = vpop.f32.mrb[0].mxu0
      %v3688 = vadd.f32 0.0, %v3687
      %v3689 = vpop.f32.mrb[0].mxu0
      %3690 = vmatprep.mubr.f32.mxu0 0.0
      %3691 = vmatmul.mubr.f32.gmra.mrb[0].mxu0 %v3589
      %v3692 = vpop.f32.mrb[0].mxu0
      %v3693 = vadd.f32 0.0, %v3692
      %v3694 = vpop.f32.mrb[0].mxu0
      %3695 = vmatprep.mubr.f32.mxu0 0.0
      %3696 = vmatmul.mubr.f32.gmra.mrb[0].mxu0 %v3592
      %v3697 = vpop.f32.mrb[0].mxu0
      %v3698 = vadd.f32 0.0, %v3697
      %v3699 = vpop.f32.mrb[0].mxu0
      %3700 = vmatprep.mubr.f32.mxu0 0.0
      %3701 = vmatmul.mubr.f32.gmra.mrb[0].mxu0 %v3595
      %v3702 = vpop.f32.mrb[0].mxu0
      %v3703 = vadd.f32 0.0, %v3702
      %v3704 = vpop.f32.mrb[0].mxu0
      %3705 = vmatprep.mubr.f32.mxu0 0.0
      %3706 = vmatmul.mubr.f32.gmra.mrb[0].mxu0 %v3598
      %v3707 = vpop.f32.mrb[0].mxu0
      %v3708 = vadd.f32 0.0, %v3707
      %v3709 = vpop.f32.mrb[0].mxu0
      %3710 = vmatprep.mubr.f32.mxu0 0.0
      %3711 = vmatmul.mubr.f32.gmra.mrb[0].mxu0 %v3601
      %v3712 = vpop.f32.mrb[0].mxu0
      %v3713 = vadd.f32 0.0, %v3712
      %v3714 = vpop.f32.mrb[0].mxu0
      %3715 = vmatprep.mubr.f32.mxu0 0.0
      %3716 = vmatmul.mubr.f32.gmra.mrb[0].mxu0 %v3604
      %v3717 = vpop.f32.mrb[0].mxu0
      %v3718 = vadd.f32 0.0, %v3717
      %v3719 = vpop.f32.mrb[0].mxu0
      %3720 = vmatprep.mubr.f32.mxu0 0.0
      %3721 = vmatmul.mubr.f32.gmra.mrb[0].mxu0 %v3607
      %v3722 = vpop.f32.mrb[0].mxu0
      %v3723 = vadd.f32 0.0, %v3722
      %v3724 = vpop.f32.mrb[0].mxu0
      %3725 = vmatprep.mubr.f32.mxu0 0.0
      %3726 = vmatmul.mubr.f32.gmra.mrb[0].mxu0 %v3610
      %v3727 = vpop.f32.mrb[0].mxu0
      %v3728 = vadd.f32 0.0, %v3727
      %v3729 = vpop.f32.mrb[0].mxu0
      %3730 = vmatprep.mubr.f32.mxu0 0.0
      %3731 = vmatmul.mubr.f32.gmra.mrb[0].mxu0 %v3613
      %v3732 = vpop.f32.mrb[0].mxu0
      %v3733 = vadd.f32 0.0, %v3732
      %v3734 = vpop.f32.mrb[0].mxu0
      %3735 = vmatprep.mubr.f32.mxu0 0.0
      %3736 = vmatmul.mubr.f32.gmra.mrb[0].mxu0 %v3616
      %v3737 = vpop.f32.mrb[0].mxu0
      %v3738 = vadd.f32 0.0, %v3737
      %v3739 = vpop.f32.mrb[0].mxu0
      %3740 = vmatprep.mubr.f32.mxu0 0.0
      %3741 = vmatmul.mubr.f32.gmra.mrb[0].mxu0 %v3619
      %v3742 = vpop.f32.mrb[0].mxu0
      %v3743 = vadd.f32 0.0, %v3742
      %v3744 = vpop.f32.mrb[0].mxu0
      %3745 = vdwg.mxu0
      %3750 = vrot.lane.b32.xlu0 %v3708, 127
      %v3751 = vpop.permute.xlu0 %3750
      %3752 = vrot.lane.b32.xlu0 %v3713, 127
      %v3753 = vpop.permute.xlu0 %3752
      %3754 = vrot.lane.b32.xlu0 %v3718, 127
      %v3755 = vpop.permute.xlu0 %3754
      %3756 = vrot.lane.b32.xlu0 %v3723, 127
      %v3757 = vpop.permute.xlu0 %3756
      %v3762 = vadd.f32 %v3688, %v3751
      %v3763 = vadd.f32 %v3693, %v3753
      %v3764 = vadd.f32 %v3698, %v3755
      %v3765 = vadd.f32 %v3703, %v3757
      %3770 = vrot.lane.b32.xlu0 %v3728, 126
      %v3771 = vpop.permute.xlu0 %3770
      %3772 = vrot.lane.b32.xlu0 %v3733, 126
      %v3773 = vpop.permute.xlu0 %3772
      %3774 = vrot.lane.b32.xlu0 %v3738, 126
      %v3775 = vpop.permute.xlu0 %3774
      %3776 = vrot.lane.b32.xlu0 %v3743, 126
      %v3777 = vpop.permute.xlu0 %3776
      %v3782 = vadd.f32 %v3762, %v3771
      %v3783 = vadd.f32 %v3763, %v3773
      %v3784 = vadd.f32 %v3764, %v3775
      %v3785 = vadd.f32 %v3765, %v3777
      %v3786 = vld [vmem:[%s14] sm:$0xff]
      %v3787 = vld [vmem:[%s14 + $0x8] sm:$0xff]
      %v3788 = vld [vmem:[%s14 + $0x10] sm:$0xff]
      %v3789 = vld [vmem:[%s14 + $0x18] sm:$0xff]
      %3791 = vset.pattern.permute.xlu0 0
      %3792 = vperm.xlu0 %3791, %v3786
      %v3793 = vpop.permute.xlu0 %3792
      %3796 = vset.pattern.permute.xlu0 0
      %3797 = vperm.xlu0 %3796, %v3787
      %v3798 = vpop.permute.xlu0 %3797
      %3801 = vset.pattern.permute.xlu0 0
      %3802 = vperm.xlu0 %3801, %v3788
      %v3803 = vpop.permute.xlu0 %3802
      %3806 = vset.pattern.permute.xlu0 0
      %3807 = vperm.xlu0 %3806, %v3789
      %v3808 = vpop.permute.xlu0 %3807
      %v3810 = vadd.f32 %v3782, %v3793
      %v3811 = vadd.f32 %v3783, %v3798
      %v3812 = vadd.f32 %v3784, %v3803
      %v3813 = vadd.f32 %v3785, %v3808
      %vm3814 = vcmp.ge.f32.partialorder %v3810, 0.0
      %vm3815 = vcmp.ge.f32.partialorder %v3811, 0.0
      %vm3816 = vcmp.ge.f32.partialorder %v3812, 0.0
      %vm3817 = vcmp.ge.f32.partialorder %v3813, 0.0
      %v3818 = vmul.f32 %v3810, 0.2
      %v3819 = vmul.f32 %v3811, 0.2
      %v3820 = vmul.f32 %v3812, 0.2
      %v3821 = vmul.f32 %v3813, 0.2
      %v3822 = vsel %vm3814, %v3810, %v3818
      %v3823 = vsel %vm3815, %v3811, %v3819
      %v3824 = vsel %vm3816, %v3812, %v3820
      %v3825 = vsel %vm3817, %v3813, %v3821
      %3826 = vset.pattern.permute.xlu0 1
      %3827 = vperm.xlu0 %3826, %v3786
      %v3828 = vpop.permute.xlu0 %3827
      %3830 = vset.pattern.permute.xlu0 1
      %3831 = vperm.xlu0 %3830, %v3787
      %v3832 = vpop.permute.xlu0 %3831
      %3834 = vset.pattern.permute.xlu0 1
      %3835 = vperm.xlu0 %3834, %v3788
      %v3836 = vpop.permute.xlu0 %3835
      %3838 = vset.pattern.permute.xlu0 1
      %3839 = vperm.xlu0 %3838, %v3789
      %v3840 = vpop.permute.xlu0 %3839
      %v3842 = vmul.f32 %v3822, %v3828
      %v3843 = vmul.f32 %v3823, %v3832
      %v3844 = vmul.f32 %v3824, %v3836
      %v3845 = vmul.f32 %v3825, %v3840
      %3846 = vset.pattern.permute.xlu0 2
      %3847 = vperm.xlu0 %3846, %v3786
      %v3848 = vpop.permute.xlu0 %3847
      %3850 = vset.pattern.permute.xlu0 2
      %3851 = vperm.xlu0 %3850, %v3787
      %v3852 = vpop.permute.xlu0 %3851
      %3854 = vset.pattern.permute.xlu0 2
      %3855 = vperm.xlu0 %3854, %v3788
      %v3856 = vpop.permute.xlu0 %3855
      %3858 = vset.pattern.permute.xlu0 2
      %3859 = vperm.xlu0 %3858, %v3789
      %v3860 = vpop.permute.xlu0 %3859
      %v3862 = vadd.f32 %v3842, %v3848
      %v3863 = vadd.f32 %v3843, %v3852
      %v3864 = vadd.f32 %v3844, %v3856
      %v3865 = vadd.f32 %v3845, %v3860
      %v3866 = vsel %vm2584, 1, 0
      %v3867 = vcvt.s32.f32 %v3866
      %v3869 = vsel %vm1198, %v3862, 0
      %v3872 = vsel %vm1198, %v3863, 0
      %v3875 = vsel %vm1198, %v3864, 0
      %v3878 = vsel %vm1198, %v3865, 0
      %3880 = vmatprep.subr.mxu0 0.0
      %3881 = vmatpush1.msra.mxu0 %v3867
      %3882 = vmatprep.subr.mxu0 0.0
      %3883 = vmatpush1.msra.mxu0 0.0
      %3884 = vmatprep.subr.mxu0 0.0
      %3885 = vmatpush1.msra.mxu0 0.0
      %3886 = vmatprep.subr.mxu0 0.0
      %3887 = vmatpush1.msra.mxu0 0.0
      %3888 = vmatprep.subr.mxu0 0.0
      %3889 = vmatpush1.msra.mxu0 0.0
      %3890 = vmatprep.subr.mxu0 0.0
      %3891 = vmatpush1.msra.mxu0 0.0
      %3892 = vmatprep.subr.mxu0 0.0
      %3893 = vmatpush1.msra.mxu0 0.0
      %3894 = vmatprep.subr.mxu0 0.0
      %3895 = vmatpush1.msra.mxu0 0.0
      %3896 = vmatprep.subr.mxu0 0.0
      %3897 = vmatpush1.msra.mxu0 0.0
      %3898 = vmatprep.subr.mxu0 0.0
      %3899 = vmatpush1.msra.mxu0 0.0
      %3900 = vmatprep.subr.mxu0 0.0
      %3901 = vmatpush1.msra.mxu0 0.0
      %3902 = vmatprep.subr.mxu0 0.0
      %3903 = vmatpush1.msra.mxu0 0.0
      %3904 = vmatprep.subr.mxu0 0.0
      %3905 = vmatpush1.msra.mxu0 0.0
      %3906 = vmatprep.subr.mxu0 0.0
      %3907 = vmatpush1.msra.mxu0 0.0
      %3908 = vmatprep.subr.mxu0 0.0
      %3909 = vmatpush1.msra.mxu0 0.0
      %3910 = vmatprep.subr.mxu0 0.0
      %3911 = vmatpush1.msra.mxu0 0.0
      %3912 = vmatprep.subr.mxu0 0.0
      %3913 = vmatpush1.msra.mxu0 0.0
      %3914 = vmatprep.subr.mxu0 0.0
      %3915 = vmatpush1.msra.mxu0 0.0
      %3916 = vmatprep.subr.mxu0 0.0
      %3917 = vmatpush1.msra.mxu0 0.0
      %3918 = vmatprep.subr.mxu0 0.0
      %3919 = vmatpush1.msra.mxu0 0.0
      %3920 = vmatprep.subr.mxu0 0.0
      %3921 = vmatpush1.msra.mxu0 0.0
      %3922 = vmatprep.subr.mxu0 0.0
      %3923 = vmatpush1.msra.mxu0 0.0
      %3924 = vmatprep.subr.mxu0 0.0
      %3925 = vmatpush1.msra.mxu0 0.0
      %3926 = vmatprep.subr.mxu0 0.0
      %3927 = vmatpush1.msra.mxu0 0.0
      %3928 = vmatprep.subr.mxu0 0.0
      %3929 = vmatpush1.msra.mxu0 0.0
      %3930 = vmatprep.subr.mxu0 0.0
      %3931 = vmatpush1.msra.mxu0 0.0
      %3932 = vmatprep.subr.mxu0 0.0
      %3933 = vmatpush1.msra.mxu0 0.0
      %3934 = vmatprep.subr.mxu0 0.0
      %3935 = vmatpush1.msra.mxu0 0.0
      %3936 = vmatprep.subr.mxu0 0.0
      %3937 = vmatpush1.msra.mxu0 0.0
      %3938 = vmatprep.subr.mxu0 0.0
      %3939 = vmatpush1.msra.mxu0 0.0
      %3940 = vmatprep.subr.mxu0 0.0
      %3941 = vmatpush1.msra.mxu0 0.0
      %3942 = vmatprep.subr.mxu0 0.0
      %3943 = vmatpush1.msra.mxu0 0.0
      %3944 = vmatprep.mubr.f32.mxu0 0.0
      %3945 = vmatmul.mubr.f32.gmra.mrb[0].mxu0 %v3869
      %v3946 = vpop.f32.mrb[0].mxu0
      %v3947 = vadd.f32 0.0, %v3946
      %v3948 = vpop.f32.mrb[0].mxu0
      %3949 = vmatprep.mubr.f32.mxu0 0.0
      %3950 = vmatmul.mubr.f32.gmra.mrb[0].mxu0 %v3872
      %v3951 = vpop.f32.mrb[0].mxu0
      %v3952 = vadd.f32 0.0, %v3951
      %v3953 = vpop.f32.mrb[0].mxu0
      %3954 = vmatprep.mubr.f32.mxu0 0.0
      %3955 = vmatmul.mubr.f32.gmra.mrb[0].mxu0 %v3875
      %v3956 = vpop.f32.mrb[0].mxu0
      %v3957 = vadd.f32 0.0, %v3956
      %v3958 = vpop.f32.mrb[0].mxu0
      %3959 = vmatprep.mubr.f32.mxu0 0.0
      %3960 = vmatmul.mubr.f32.gmra.mrb[0].mxu0 %v3878
      %v3961 = vpop.f32.mrb[0].mxu0
      %v3962 = vadd.f32 0.0, %v3961
      %v3963 = vpop.f32.mrb[0].mxu0
      %3964 = vdwg.mxu0
      %v3965 = vadd.s32 %v606, 3
      %v3966 = vadd.s32 %v607, 3
      %vm3967 = vcmp.eq.s32.totalorder %v609, %v3965
      %vm3968 = vcmp.eq.s32.totalorder %v609, %v3966
      %v3969 = vsel %vm3967, 1, 0
      %v3970 = vsel %vm3968, 1, 0
      %v3971 = vcvt.s32.f32 %v3969
      %v3972 = vcvt.s32.f32 %v3970
      %v3974 = vsel %vm618, %v3947, 0
      %v3977 = vsel %vm618, %v3952, 0
      %v3980 = vsel %vm618, %v3957, 0
      %v3983 = vsel %vm618, %v3962, 0
      %3985 = vmatprep.subr.mxu0 0.0
      %3986 = vmatpush1.msra.mxu0 %v3971
      %3987 = vmatprep.subr.mxu0 0.0
      %3988 = vmatpush1.msra.mxu0 %v3972
      %3989 = vmatprep.subr.mxu0 0.0
      %3990 = vmatpush1.msra.mxu0 0.0
      %3991 = vmatprep.subr.mxu0 0.0
      %3992 = vmatpush1.msra.mxu0 0.0
      %3993 = vmatprep.subr.mxu0 0.0
      %3994 = vmatpush1.msra.mxu0 0.0
      %3995 = vmatprep.subr.mxu0 0.0
      %3996 = vmatpush1.msra.mxu0 0.0
      %3997 = vmatprep.subr.mxu0 0.0
      %3998 = vmatpush1.msra.mxu0 0.0
      %3999 = vmatprep.subr.mxu0 0.0
      %4000 = vmatpush1.msra.mxu0 0.0
      %4001 = vmatprep.subr.mxu0 0.0
      %4002 = vmatpush1.msra.mxu0 0.0
      %4003 = vmatprep.subr.mxu0 0.0
      %4004 = vmatpush1.msra.mxu0 0.0
      %4005 = vmatprep.subr.mxu0 0.0
      %4006 = vmatpush1.msra.mxu0 0.0
      %4007 = vmatprep.subr.mxu0 0.0
      %4008 = vmatpush1.msra.mxu0 0.0
      %4009 = vmatprep.subr.mxu0 0.0
      %4010 = vmatpush1.msra.mxu0 0.0
      %4011 = vmatprep.subr.mxu0 0.0
      %4012 = vmatpush1.msra.mxu0 0.0
      %4013 = vmatprep.subr.mxu0 0.0
      %4014 = vmatpush1.msra.mxu0 0.0
      %4015 = vmatprep.subr.mxu0 0.0
      %4016 = vmatpush1.msra.mxu0 0.0
      %4017 = vmatprep.subr.mxu0 0.0
      %4018 = vmatpush1.msra.mxu0 0.0
      %4019 = vmatprep.subr.mxu0 0.0
      %4020 = vmatpush1.msra.mxu0 0.0
      %4021 = vmatprep.subr.mxu0 0.0
      %4022 = vmatpush1.msra.mxu0 0.0
      %4023 = vmatprep.subr.mxu0 0.0
      %4024 = vmatpush1.msra.mxu0 0.0
      %4025 = vmatprep.subr.mxu0 0.0
      %4026 = vmatpush1.msra.mxu0 0.0
      %4027 = vmatprep.subr.mxu0 0.0
      %4028 = vmatpush1.msra.mxu0 0.0
      %4029 = vmatprep.subr.mxu0 0.0
      %4030 = vmatpush1.msra.mxu0 0.0
      %4031 = vmatprep.subr.mxu0 0.0
      %4032 = vmatpush1.msra.mxu0 0.0
      %4033 = vmatprep.subr.mxu0 0.0
      %4034 = vmatpush1.msra.mxu0 0.0
      %4035 = vmatprep.subr.mxu0 0.0
      %4036 = vmatpush1.msra.mxu0 0.0
      %4037 = vmatprep.subr.mxu0 0.0
      %4038 = vmatpush1.msra.mxu0 0.0
      %4039 = vmatprep.subr.mxu0 0.0
      %4040 = vmatpush1.msra.mxu0 0.0
      %4041 = vmatprep.subr.mxu0 0.0
      %4042 = vmatpush1.msra.mxu0 0.0
      %4043 = vmatprep.subr.mxu0 0.0
      %4044 = vmatpush1.msra.mxu0 0.0
      %4045 = vmatprep.subr.mxu0 0.0
      %4046 = vmatpush1.msra.mxu0 0.0
      %4047 = vmatprep.subr.mxu0 0.0
      %4048 = vmatpush1.msra.mxu0 0.0
      %4049 = vmatprep.mubr.f32.mxu0 0.0
      %4050 = vmatmul.mubr.f32.gmra.mrb[0].mxu0 %v3974
      %v4051 = vpop.f32.mrb[0].mxu0
      %v4052 = vadd.f32 0.0, %v4051
      %v4053 = vpop.f32.mrb[0].mxu0
      %4054 = vmatprep.mubr.f32.mxu0 0.0
      %4055 = vmatmul.mubr.f32.gmra.mrb[0].mxu0 %v3977
      %v4056 = vpop.f32.mrb[0].mxu0
      %v4057 = vadd.f32 0.0, %v4056
      %v4058 = vpop.f32.mrb[0].mxu0
      %4059 = vmatprep.mubr.f32.mxu0 0.0
      %4060 = vmatmul.mubr.f32.gmra.mrb[0].mxu0 %v3980
      %v4061 = vpop.f32.mrb[0].mxu0
      %v4062 = vadd.f32 0.0, %v4061
      %v4063 = vpop.f32.mrb[0].mxu0
      %4064 = vmatprep.mubr.f32.mxu0 0.0
      %4065 = vmatmul.mubr.f32.gmra.mrb[0].mxu0 %v3983
      %v4066 = vpop.f32.mrb[0].mxu0
      %v4067 = vadd.f32 0.0, %v4066
      %v4068 = vpop.f32.mrb[0].mxu0
      %4069 = vdwg.mxu0
      %v4070 = vld [vmem:[%s15] sm:$0xff]
      %v4071 = vld [vmem:[%s15 + $0x8] sm:$0xff]
      %v4072 = vld [vmem:[%s15 + $0x10] sm:$0xff]
      %v4073 = vld [vmem:[%s15 + $0x18] sm:$0xff]
      %v4074 = vld [vmem:[%s15 + $0x20] sm:$0xff]
      %v4075 = vld [vmem:[%s15 + $0x28] sm:$0xff]
      %v4076 = vld [vmem:[%s15 + $0x30] sm:$0xff]
      %v4077 = vld [vmem:[%s15 + $0x38] sm:$0xff]
      %v4078 = vld [vmem:[%s15 + $0x40] sm:$0xff]
      %v4079 = vld [vmem:[%s15 + $0x48] sm:$0xff]
      %v4080 = vld [vmem:[%s15 + $0x50] sm:$0xf]
      %v4082 = vsel %vm1308, %v4070, 0
      %v4085 = vsel %vm1308, %v4071, 0
      %v4088 = vsel %vm1308, %v4072, 0
      %v4091 = vsel %vm1308, %v4073, 0
      %v4094 = vsel %vm1308, %v4074, 0
      %v4097 = vsel %vm1308, %v4075, 0
      %v4100 = vsel %vm1308, %v4076, 0
      %v4103 = vsel %vm1308, %v4077, 0
      %v4106 = vsel %vm1308, %v4078, 0
      %v4109 = vsel %vm1308, %v4079, 0
      %v4112 = vsel %vm1308, %v4080, 0
      %4114 = vmatprep.subr.mxu0 0.0
      %4115 = vmatpush1.msra.mxu0 %v4052
      %4116 = vmatprep.subr.mxu0 0.0
      %4117 = vmatpush1.msra.mxu0 %v4057
      %4118 = vmatprep.subr.mxu0 0.0
      %4119 = vmatpush1.msra.mxu0 %v4062
      %4120 = vmatprep.subr.mxu0 0.0
      %4121 = vmatpush1.msra.mxu0 %v4067
      %4122 = vmatprep.subr.mxu0 0.0
      %4123 = vmatpush1.msra.mxu0 0.0
      %4124 = vmatprep.subr.mxu0 0.0
      %4125 = vmatpush1.msra.mxu0 0.0
      %4126 = vmatprep.subr.mxu0 0.0
      %4127 = vmatpush1.msra.mxu0 0.0
      %4128 = vmatprep.subr.mxu0 0.0
      %4129 = vmatpush1.msra.mxu0 0.0
      %4130 = vmatprep.subr.mxu0 0.0
      %4131 = vmatpush1.msra.mxu0 0.0
      %4132 = vmatprep.subr.mxu0 0.0
      %4133 = vmatpush1.msra.mxu0 0.0
      %4134 = vmatprep.subr.mxu0 0.0
      %4135 = vmatpush1.msra.mxu0 0.0
      %4136 = vmatprep.subr.mxu0 0.0
      %4137 = vmatpush1.msra.mxu0 0.0
      %4138 = vmatprep.subr.mxu0 0.0
      %4139 = vmatpush1.msra.mxu0 0.0
      %4140 = vmatprep.subr.mxu0 0.0
      %4141 = vmatpush1.msra.mxu0 0.0
      %4142 = vmatprep.subr.mxu0 0.0
      %4143 = vmatpush1.msra.mxu0 0.0
      %4144 = vmatprep.subr.mxu0 0.0
      %4145 = vmatpush1.msra.mxu0 0.0
      %4146 = vmatprep.subr.mxu0 0.0
      %4147 = vmatpush1.msra.mxu0 0.0
      %4148 = vmatprep.subr.mxu0 0.0
      %4149 = vmatpush1.msra.mxu0 0.0
      %4150 = vmatprep.subr.mxu0 0.0
      %4151 = vmatpush1.msra.mxu0 0.0
      %4152 = vmatprep.subr.mxu0 0.0
      %4153 = vmatpush1.msra.mxu0 0.0
      %4154 = vmatprep.subr.mxu0 0.0
      %4155 = vmatpush1.msra.mxu0 0.0
      %4156 = vmatprep.subr.mxu0 0.0
      %4157 = vmatpush1.msra.mxu0 0.0
      %4158 = vmatprep.subr.mxu0 0.0
      %4159 = vmatpush1.msra.mxu0 0.0
      %4160 = vmatprep.subr.mxu0 0.0
      %4161 = vmatpush1.msra.mxu0 0.0
      %4162 = vmatprep.subr.mxu0 0.0
      %4163 = vmatpush1.msra.mxu0 0.0
      %4164 = vmatprep.subr.mxu0 0.0
      %4165 = vmatpush1.msra.mxu0 0.0
      %4166 = vmatprep.subr.mxu0 0.0
      %4167 = vmatpush1.msra.mxu0 0.0
      %4168 = vmatprep.subr.mxu0 0.0
      %4169 = vmatpush1.msra.mxu0 0.0
      %4170 = vmatprep.subr.mxu0 0.0
      %4171 = vmatpush1.msra.mxu0 0.0
      %4172 = vmatprep.subr.mxu0 0.0
      %4173 = vmatpush1.msra.mxu0 0.0
      %4174 = vmatprep.subr.mxu0 0.0
      %4175 = vmatpush1.msra.mxu0 0.0
      %4176 = vmatprep.subr.mxu0 0.0
      %4177 = vmatpush1.msra.mxu0 0.0
      %4178 = vmatprep.mubr.f32.mxu0 0.0
      %4179 = vmatmul.mubr.f32.gmra.mrb[0].mxu0 %v4082
      %v4180 = vpop.f32.mrb[0].mxu0
      %v4181 = vadd.f32 0.0, %v4180
      %v4182 = vpop.f32.mrb[0].mxu0
      %4183 = vmatprep.mubr.f32.mxu0 0.0
      %4184 = vmatmul.mubr.f32.gmra.mrb[0].mxu0 %v4085
      %v4185 = vpop.f32.mrb[0].mxu0
      %v4186 = vadd.f32 0.0, %v4185
      %v4187 = vpop.f32.mrb[0].mxu0
      %4188 = vmatprep.mubr.f32.mxu0 0.0
      %4189 = vmatmul.mubr.f32.gmra.mrb[0].mxu0 %v4088
      %v4190 = vpop.f32.mrb[0].mxu0
      %v4191 = vadd.f32 0.0, %v4190
      %v4192 = vpop.f32.mrb[0].mxu0
      %4193 = vmatprep.mubr.f32.mxu0 0.0
      %4194 = vmatmul.mubr.f32.gmra.mrb[0].mxu0 %v4091
      %v4195 = vpop.f32.mrb[0].mxu0
      %v4196 = vadd.f32 0.0, %v4195
      %v4197 = vpop.f32.mrb[0].mxu0
      %4198 = vmatprep.mubr.f32.mxu0 0.0
      %4199 = vmatmul.mubr.f32.gmra.mrb[0].mxu0 %v4094
      %v4200 = vpop.f32.mrb[0].mxu0
      %v4201 = vadd.f32 0.0, %v4200
      %v4202 = vpop.f32.mrb[0].mxu0
      %4203 = vmatprep.mubr.f32.mxu0 0.0
      %4204 = vmatmul.mubr.f32.gmra.mrb[0].mxu0 %v4097
      %v4205 = vpop.f32.mrb[0].mxu0
      %v4206 = vadd.f32 0.0, %v4205
      %v4207 = vpop.f32.mrb[0].mxu0
      %4208 = vmatprep.mubr.f32.mxu0 0.0
      %4209 = vmatmul.mubr.f32.gmra.mrb[0].mxu0 %v4100
      %v4210 = vpop.f32.mrb[0].mxu0
      %v4211 = vadd.f32 0.0, %v4210
      %v4212 = vpop.f32.mrb[0].mxu0
      %4213 = vmatprep.mubr.f32.mxu0 0.0
      %4214 = vmatmul.mubr.f32.gmra.mrb[0].mxu0 %v4103
      %v4215 = vpop.f32.mrb[0].mxu0
      %v4216 = vadd.f32 0.0, %v4215
      %v4217 = vpop.f32.mrb[0].mxu0
      %4218 = vmatprep.mubr.f32.mxu0 0.0
      %4219 = vmatmul.mubr.f32.gmra.mrb[0].mxu0 %v4106
      %v4220 = vpop.f32.mrb[0].mxu0
      %v4221 = vadd.f32 0.0, %v4220
      %v4222 = vpop.f32.mrb[0].mxu0
      %4223 = vmatprep.mubr.f32.mxu0 0.0
      %4224 = vmatmul.mubr.f32.gmra.mrb[0].mxu0 %v4109
      %v4225 = vpop.f32.mrb[0].mxu0
      %v4226 = vadd.f32 0.0, %v4225
      %v4227 = vpop.f32.mrb[0].mxu0
      %4228 = vmatprep.mubr.f32.mxu0 0.0
      %4229 = vmatmul.mubr.f32.gmra.mrb[0].mxu0 %v4112
      %v4230 = vpop.f32.mrb[0].mxu0
      %v4231 = vadd.f32 0.0, %v4230
      %v4232 = vpop.f32.mrb[0].mxu0
      %4233 = vdwg.mxu0
      %v4236 = vrot.slane %v4186, 4
      %v4237 = vrot.slane %v4191, 4
      %v4238 = vsel %vm2603, %v4236, %v4237
      %4239 = vrot.lane.b32.xlu0 %v4238, 127
      %v4240 = vpop.permute.xlu0 %4239
      %4241 = vrot.lane.b32.xlu0 %v4237, 127
      %v4242 = vpop.permute.xlu0 %4241
      %v4245 = vadd.f32 %v4181, %v4240
      %v4246 = vadd.f32 %v4186, %v4242
      %4249 = vrot.lane.b32.xlu0 %v4196, 126
      %v4250 = vpop.permute.xlu0 %4249
      %4251 = vrot.lane.b32.xlu0 %v4201, 126
      %v4252 = vpop.permute.xlu0 %4251
      %v4255 = vadd.f32 %v4245, %v4250
      %v4256 = vadd.f32 %v4246, %v4252
      %v4258 = vrot.slane %v4201, 4
      %v4259 = vrot.slane %v4206, 4
      %v4260 = vsel %vm2603, %v4258, %v4259
      %4261 = vrot.lane.b32.xlu0 %v4260, 125
      %v4262 = vpop.permute.xlu0 %4261
      %4263 = vrot.lane.b32.xlu0 %v4259, 125
      %v4264 = vpop.permute.xlu0 %4263
      %v4267 = vadd.f32 %v4255, %v4262
      %v4268 = vadd.f32 %v4256, %v4264
      %4271 = vrot.lane.b32.xlu0 %v4211, 124
      %v4272 = vpop.permute.xlu0 %4271
      %4273 = vrot.lane.b32.xlu0 %v4216, 124
      %v4274 = vpop.permute.xlu0 %4273
      %v4277 = vadd.f32 %v4267, %v4272
      %v4278 = vadd.f32 %v4268, %v4274
      %v4280 = vrot.slane %v4216, 4
      %v4281 = vrot.slane %v4221, 4
      %v4282 = vsel %vm2603, %v4280, %v4281
      %4283 = vrot.lane.b32.xlu0 %v4282, 123
      %v4284 = vpop.permute.xlu0 %4283
      %4285 = vrot.lane.b32.xlu0 %v4281, 123
      %v4286 = vpop.permute.xlu0 %4285
      %v4289 = vadd.f32 %v4277, %v4284
      %v4290 = vadd.f32 %v4278, %v4286
      %4293 = vrot.lane.b32.xlu0 %v4226, 122
      %v4294 = vpop.permute.xlu0 %4293
      %4295 = vrot.lane.b32.xlu0 %v4231, 122
      %v4296 = vpop.permute.xlu0 %4295
      %v4299 = vadd.f32 %v4289, %v4294
      %v4300 = vadd.f32 %v4290, %v4296
      %v4301 = vld [vmem:[%s16] sm:$0xff]
      %v4302 = vld [vmem:[%s16 + $0x8] sm:$0xf]
      %4304 = vset.pattern.permute.xlu0 0
      %4305 = vperm.xlu0 %4304, %v4301
      %v4306 = vpop.permute.xlu0 %4305
      %4309 = vset.pattern.permute.xlu0 0
      %4310 = vperm.xlu0 %4309, %v4302
      %v4311 = vpop.permute.xlu0 %4310
      %v4313 = vadd.f32 %v4299, %v4306
      %v4314 = vadd.f32 %v4300, %v4311
      %v4315 = vmax.f32 %v4313, 0.0
      %v4316 = vmax.f32 %v4314, 0.0
      %4317 = vset.pattern.permute.xlu0 1
      %4318 = vperm.xlu0 %4317, %v4301
      %v4319 = vpop.permute.xlu0 %4318
      %4321 = vset.pattern.permute.xlu0 1
      %4322 = vperm.xlu0 %4321, %v4302
      %v4323 = vpop.permute.xlu0 %4322
      %v4325 = vmul.f32 %v4315, %v4319
      %v4326 = vmul.f32 %v4316, %v4323
      %4327 = vset.pattern.permute.xlu0 2
      %4328 = vperm.xlu0 %4327, %v4301
      %v4329 = vpop.permute.xlu0 %4328
      %4331 = vset.pattern.permute.xlu0 2
      %4332 = vperm.xlu0 %4331, %v4302
      %v4333 = vpop.permute.xlu0 %4332
      %v4335 = vadd.f32 %v4325, %v4329
      %v4336 = vadd.f32 %v4326, %v4333
      %v4338 = vsel %vm618, %v4335, 0
      %v4341 = vsel %vm618, %v4336, 0
      %4343 = vmatprep.subr.mxu0 0.0
      %4344 = vmatpush1.msra.mxu0 %v3971
      %4345 = vmatprep.subr.mxu0 0.0
      %4346 = vmatpush1.msra.mxu0 %v3972
      %4347 = vmatprep.subr.mxu0 0.0
      %4348 = vmatpush1.msra.mxu0 0.0
      %4349 = vmatprep.subr.mxu0 0.0
      %4350 = vmatpush1.msra.mxu0 0.0
      %4351 = vmatprep.subr.mxu0 0.0
      %4352 = vmatpush1.msra.mxu0 0.0
      %4353 = vmatprep.subr.mxu0 0.0
      %4354 = vmatpush1.msra.mxu0 0.0
      %4355 = vmatprep.subr.mxu0 0.0
      %4356 = vmatpush1.msra.mxu0 0.0
      %4357 = vmatprep.subr.mxu0 0.0
      %4358 = vmatpush1.msra.mxu0 0.0
      %4359 = vmatprep.subr.mxu0 0.0
      %4360 = vmatpush1.msra.mxu0 0.0
      %4361 = vmatprep.subr.mxu0 0.0
      %4362 = vmatpush1.msra.mxu0 0.0
      %4363 = vmatprep.subr.mxu0 0.0
      %4364 = vmatpush1.msra.mxu0 0.0
      %4365 = vmatprep.subr.mxu0 0.0
      %4366 = vmatpush1.msra.mxu0 0.0
      %4367 = vmatprep.subr.mxu0 0.0
      %4368 = vmatpush1.msra.mxu0 0.0
      %4369 = vmatprep.subr.mxu0 0.0
      %4370 = vmatpush1.msra.mxu0 0.0
      %4371 = vmatprep.subr.mxu0 0.0
      %4372 = vmatpush1.msra.mxu0 0.0
      %4373 = vmatprep.subr.mxu0 0.0
      %4374 = vmatpush1.msra.mxu0 0.0
      %4375 = vmatprep.subr.mxu0 0.0
      %4376 = vmatpush1.msra.mxu0 0.0
      %4377 = vmatprep.subr.mxu0 0.0
      %4378 = vmatpush1.msra.mxu0 0.0
      %4379 = vmatprep.subr.mxu0 0.0
      %4380 = vmatpush1.msra.mxu0 0.0
      %4381 = vmatprep.subr.mxu0 0.0
      %4382 = vmatpush1.msra.mxu0 0.0
      %4383 = vmatprep.subr.mxu0 0.0
      %4384 = vmatpush1.msra.mxu0 0.0
      %4385 = vmatprep.subr.mxu0 0.0
      %4386 = vmatpush1.msra.mxu0 0.0
      %4387 = vmatprep.subr.mxu0 0.0
      %4388 = vmatpush1.msra.mxu0 0.0
      %4389 = vmatprep.subr.mxu0 0.0
      %4390 = vmatpush1.msra.mxu0 0.0
      %4391 = vmatprep.subr.mxu0 0.0
      %4392 = vmatpush1.msra.mxu0 0.0
      %4393 = vmatprep.subr.mxu0 0.0
      %4394 = vmatpush1.msra.mxu0 0.0
      %4395 = vmatprep.subr.mxu0 0.0
      %4396 = vmatpush1.msra.mxu0 0.0
      %4397 = vmatprep.subr.mxu0 0.0
      %4398 = vmatpush1.msra.mxu0 0.0
      %4399 = vmatprep.subr.mxu0 0.0
      %4400 = vmatpush1.msra.mxu0 0.0
      %4401 = vmatprep.subr.mxu0 0.0
      %4402 = vmatpush1.msra.mxu0 0.0
      %4403 = vmatprep.subr.mxu0 0.0
      %4404 = vmatpush1.msra.mxu0 0.0
      %4405 = vmatprep.subr.mxu0 0.0
      %4406 = vmatpush1.msra.mxu0 0.0
      %4407 = vmatprep.mubr.f32.mxu0 0.0
      %4408 = vmatmul.mubr.f32.gmra.mrb[0].mxu0 %v4338
      %v4409 = vpop.f32.mrb[0].mxu0
      %v4410 = vadd.f32 0.0, %v4409
      %v4411 = vpop.f32.mrb[0].mxu0
      %4412 = vmatprep.mubr.f32.mxu0 0.0
      %4413 = vmatmul.mubr.f32.gmra.mrb[0].mxu0 %v4341
      %v4414 = vpop.f32.mrb[0].mxu0
      %v4415 = vadd.f32 0.0, %v4414
      %v4416 = vpop.f32.mrb[0].mxu0
      %4417 = vdwg.mxu0
      %v4418 = vld [vmem:[%s17] sm:$0xff]
      %v4419 = vld [vmem:[%s17 + $0x8] sm:$0xff]
      %v4420 = vld [vmem:[%s17 + $0x10] sm:$0xff]
      %v4421 = vld [vmem:[%s17 + $0x18] sm:$0xff]
      %v4422 = vld [vmem:[%s17 + $0x20] sm:$0xff]
      %v4423 = vld [vmem:[%s17 + $0x28] sm:$0xff]
      %v4424 = vld [vmem:[%s17 + $0x30] sm:$0xff]
      %v4425 = vld [vmem:[%s17 + $0x38] sm:$0xff]
      %v4426 = vld [vmem:[%s17 + $0x40] sm:$0xff]
      %v4427 = vld [vmem:[%s17 + $0x48] sm:$0xff]
      %v4428 = vld [vmem:[%s17 + $0x50] sm:$0xf]
      %vm4429 = vcmask 97280
      %v4431 = vsel %vm4429, %v4418, 0
      %v4434 = vsel %vm4429, %v4419, 0
      %v4437 = vsel %vm4429, %v4420, 0
      %v4440 = vsel %vm4429, %v4421, 0
      %v4443 = vsel %vm4429, %v4422, 0
      %v4446 = vsel %vm4429, %v4423, 0
      %v4449 = vsel %vm4429, %v4424, 0
      %v4452 = vsel %vm4429, %v4425, 0
      %v4455 = vsel %vm4429, %v4426, 0
      %v4458 = vsel %vm4429, %v4427, 0
      %v4461 = vsel %vm4429, %v4428, 0
      %v4464 = vsel %vm2603, %v4415, 0
      %4466 = vmatprep.subr.mxu0 0.0
      %4467 = vmatpush1.msra.mxu0 %v4410
      %4468 = vmatprep.subr.mxu0 0.0
      %4469 = vmatpush1.msra.mxu0 %v4464
      %4470 = vmatprep.subr.mxu0 0.0
      %4471 = vmatpush1.msra.mxu0 0.0
      %4472 = vmatprep.subr.mxu0 0.0
      %4473 = vmatpush1.msra.mxu0 0.0
      %4474 = vmatprep.subr.mxu0 0.0
      %4475 = vmatpush1.msra.mxu0 0.0
      %4476 = vmatprep.subr.mxu0 0.0
      %4477 = vmatpush1.msra.mxu0 0.0
      %4478 = vmatprep.subr.mxu0 0.0
      %4479 = vmatpush1.msra.mxu0 0.0
      %4480 = vmatprep.subr.mxu0 0.0
      %4481 = vmatpush1.msra.mxu0 0.0
      %4482 = vmatprep.subr.mxu0 0.0
      %4483 = vmatpush1.msra.mxu0 0.0
      %4484 = vmatprep.subr.mxu0 0.0
      %4485 = vmatpush1.msra.mxu0 0.0
      %4486 = vmatprep.subr.mxu0 0.0
      %4487 = vmatpush1.msra.mxu0 0.0
      %4488 = vmatprep.subr.mxu0 0.0
      %4489 = vmatpush1.msra.mxu0 0.0
      %4490 = vmatprep.subr.mxu0 0.0
      %4491 = vmatpush1.msra.mxu0 0.0
      %4492 = vmatprep.subr.mxu0 0.0
      %4493 = vmatpush1.msra.mxu0 0.0
      %4494 = vmatprep.subr.mxu0 0.0
      %4495 = vmatpush1.msra.mxu0 0.0
      %4496 = vmatprep.subr.mxu0 0.0
      %4497 = vmatpush1.msra.mxu0 0.0
      %4498 = vmatprep.subr.mxu0 0.0
      %4499 = vmatpush1.msra.mxu0 0.0
      %4500 = vmatprep.subr.mxu0 0.0
      %4501 = vmatpush1.msra.mxu0 0.0
      %4502 = vmatprep.subr.mxu0 0.0
      %4503 = vmatpush1.msra.mxu0 0.0
      %4504 = vmatprep.subr.mxu0 0.0
      %4505 = vmatpush1.msra.mxu0 0.0
      %4506 = vmatprep.subr.mxu0 0.0
      %4507 = vmatpush1.msra.mxu0 0.0
      %4508 = vmatprep.subr.mxu0 0.0
      %4509 = vmatpush1.msra.mxu0 0.0
      %4510 = vmatprep.subr.mxu0 0.0
      %4511 = vmatpush1.msra.mxu0 0.0
      %4512 = vmatprep.subr.mxu0 0.0
      %4513 = vmatpush1.msra.mxu0 0.0
      %4514 = vmatprep.subr.mxu0 0.0
      %4515 = vmatpush1.msra.mxu0 0.0
      %4516 = vmatprep.subr.mxu0 0.0
      %4517 = vmatpush1.msra.mxu0 0.0
      %4518 = vmatprep.subr.mxu0 0.0
      %4519 = vmatpush1.msra.mxu0 0.0
      %4520 = vmatprep.subr.mxu0 0.0
      %4521 = vmatpush1.msra.mxu0 0.0
      %4522 = vmatprep.subr.mxu0 0.0
      %4523 = vmatpush1.msra.mxu0 0.0
      %4524 = vmatprep.subr.mxu0 0.0
      %4525 = vmatpush1.msra.mxu0 0.0
      %4526 = vmatprep.subr.mxu0 0.0
      %4527 = vmatpush1.msra.mxu0 0.0
      %4528 = vmatprep.subr.mxu0 0.0
      %4529 = vmatpush1.msra.mxu0 0.0
      %4530 = vmatprep.mubr.f32.mxu0 0.0
      %4531 = vmatmul.mubr.f32.gmra.mrb[0].mxu0 %v4431
      %v4532 = vpop.f32.mrb[0].mxu0
      %v4533 = vadd.f32 0.0, %v4532
      %v4534 = vpop.f32.mrb[0].mxu0
      %4535 = vmatprep.mubr.f32.mxu0 0.0
      %4536 = vmatmul.mubr.f32.gmra.mrb[0].mxu0 %v4434
      %v4537 = vpop.f32.mrb[0].mxu0
      %v4538 = vadd.f32 0.0, %v4537
      %v4539 = vpop.f32.mrb[0].mxu0
      %4540 = vmatprep.mubr.f32.mxu0 0.0
      %4541 = vmatmul.mubr.f32.gmra.mrb[0].mxu0 %v4437
      %v4542 = vpop.f32.mrb[0].mxu0
      %v4543 = vadd.f32 0.0, %v4542
      %v4544 = vpop.f32.mrb[0].mxu0
      %4545 = vmatprep.mubr.f32.mxu0 0.0
      %4546 = vmatmul.mubr.f32.gmra.mrb[0].mxu0 %v4440
      %v4547 = vpop.f32.mrb[0].mxu0
      %v4548 = vadd.f32 0.0, %v4547
      %v4549 = vpop.f32.mrb[0].mxu0
      %4550 = vmatprep.mubr.f32.mxu0 0.0
      %4551 = vmatmul.mubr.f32.gmra.mrb[0].mxu0 %v4443
      %v4552 = vpop.f32.mrb[0].mxu0
      %v4553 = vadd.f32 0.0, %v4552
      %v4554 = vpop.f32.mrb[0].mxu0
      %4555 = vmatprep.mubr.f32.mxu0 0.0
      %4556 = vmatmul.mubr.f32.gmra.mrb[0].mxu0 %v4446
      %v4557 = vpop.f32.mrb[0].mxu0
      %v4558 = vadd.f32 0.0, %v4557
      %v4559 = vpop.f32.mrb[0].mxu0
      %4560 = vmatprep.mubr.f32.mxu0 0.0
      %4561 = vmatmul.mubr.f32.gmra.mrb[0].mxu0 %v4449
      %v4562 = vpop.f32.mrb[0].mxu0
      %v4563 = vadd.f32 0.0, %v4562
      %v4564 = vpop.f32.mrb[0].mxu0
      %4565 = vmatprep.mubr.f32.mxu0 0.0
      %4566 = vmatmul.mubr.f32.gmra.mrb[0].mxu0 %v4452
      %v4567 = vpop.f32.mrb[0].mxu0
      %v4568 = vadd.f32 0.0, %v4567
      %v4569 = vpop.f32.mrb[0].mxu0
      %4570 = vmatprep.mubr.f32.mxu0 0.0
      %4571 = vmatmul.mubr.f32.gmra.mrb[0].mxu0 %v4455
      %v4572 = vpop.f32.mrb[0].mxu0
      %v4573 = vadd.f32 0.0, %v4572
      %v4574 = vpop.f32.mrb[0].mxu0
      %4575 = vmatprep.mubr.f32.mxu0 0.0
      %4576 = vmatmul.mubr.f32.gmra.mrb[0].mxu0 %v4458
      %v4577 = vpop.f32.mrb[0].mxu0
      %v4578 = vadd.f32 0.0, %v4577
      %v4579 = vpop.f32.mrb[0].mxu0
      %4580 = vmatprep.mubr.f32.mxu0 0.0
      %4581 = vmatmul.mubr.f32.gmra.mrb[0].mxu0 %v4461
      %v4582 = vpop.f32.mrb[0].mxu0
      %v4583 = vadd.f32 0.0, %v4582
      %v4584 = vpop.f32.mrb[0].mxu0
      %4585 = vdwg.mxu0
      %v4588 = vrot.slane %v4538, 4
      %v4589 = vrot.slane %v4543, 4
      %v4590 = vsel %vm2603, %v4588, %v4589
      %4591 = vrot.lane.b32.xlu0 %v4590, 127
      %v4592 = vpop.permute.xlu0 %4591
      %4593 = vrot.lane.b32.xlu0 %v4589, 127
      %v4594 = vpop.permute.xlu0 %4593
      %v4597 = vadd.f32 %v4533, %v4592
      %v4598 = vadd.f32 %v4538, %v4594
      %4601 = vrot.lane.b32.xlu0 %v4548, 126
      %v4602 = vpop.permute.xlu0 %4601
      %4603 = vrot.lane.b32.xlu0 %v4553, 126
      %v4604 = vpop.permute.xlu0 %4603
      %v4607 = vadd.f32 %v4597, %v4602
      %v4608 = vadd.f32 %v4598, %v4604
      %v4610 = vrot.slane %v4553, 4
      %v4611 = vrot.slane %v4558, 4
      %v4612 = vsel %vm2603, %v4610, %v4611
      %4613 = vrot.lane.b32.xlu0 %v4612, 125
      %v4614 = vpop.permute.xlu0 %4613
      %4615 = vrot.lane.b32.xlu0 %v4611, 125
      %v4616 = vpop.permute.xlu0 %4615
      %v4619 = vadd.f32 %v4607, %v4614
      %v4620 = vadd.f32 %v4608, %v4616
      %4623 = vrot.lane.b32.xlu0 %v4563, 124
      %v4624 = vpop.permute.xlu0 %4623
      %4625 = vrot.lane.b32.xlu0 %v4568, 124
      %v4626 = vpop.permute.xlu0 %4625
      %v4629 = vadd.f32 %v4619, %v4624
      %v4630 = vadd.f32 %v4620, %v4626
      %v4632 = vrot.slane %v4568, 4
      %v4633 = vrot.slane %v4573, 4
      %v4634 = vsel %vm2603, %v4632, %v4633
      %4635 = vrot.lane.b32.xlu0 %v4634, 123
      %v4636 = vpop.permute.xlu0 %4635
      %4637 = vrot.lane.b32.xlu0 %v4633, 123
      %v4638 = vpop.permute.xlu0 %4637
      %v4641 = vadd.f32 %v4629, %v4636
      %v4642 = vadd.f32 %v4630, %v4638
      %4645 = vrot.lane.b32.xlu0 %v4578, 122
      %v4646 = vpop.permute.xlu0 %4645
      %4647 = vrot.lane.b32.xlu0 %v4583, 122
      %v4648 = vpop.permute.xlu0 %4647
      %v4651 = vadd.f32 %v4641, %v4646
      %v4652 = vadd.f32 %v4642, %v4648
      %v4653 = vld [vmem:[%s18] sm:$0xff]
      %v4654 = vld [vmem:[%s18 + $0x8] sm:$0xf]
      %4656 = vset.pattern.permute.xlu0 0
      %4657 = vperm.xlu0 %4656, %v4653
      %v4658 = vpop.permute.xlu0 %4657
      %4661 = vset.pattern.permute.xlu0 0
      %4662 = vperm.xlu0 %4661, %v4654
      %v4663 = vpop.permute.xlu0 %4662
      %v4665 = vadd.f32 %v4651, %v4658
      %v4666 = vadd.f32 %v4652, %v4663
      %4667 = vset.pattern.permute.xlu0 1
      %4668 = vperm.xlu0 %4667, %v4653
      %v4669 = vpop.permute.xlu0 %4668
      %4671 = vset.pattern.permute.xlu0 1
      %4672 = vperm.xlu0 %4671, %v4654
      %v4673 = vpop.permute.xlu0 %4672
      %v4675 = vmul.f32 %v4665, %v4669
      %v4676 = vmul.f32 %v4666, %v4673
      %4677 = vset.pattern.permute.xlu0 2
      %4678 = vperm.xlu0 %4677, %v4653
      %v4679 = vpop.permute.xlu0 %4678
      %4681 = vset.pattern.permute.xlu0 2
      %4682 = vperm.xlu0 %4681, %v4654
      %v4683 = vpop.permute.xlu0 %4682
      %v4685 = vadd.f32 %v4675, %v4679
      %v4686 = vadd.f32 %v4676, %v4683
      %4687 = vst.msk [vmem:[%s602] sm:$0xff] %vm618, %v4685
      %vm4688 = vcmask 125952
      %4689 = vst.msk [vmem:[%s602 + $0x8] sm:$0xf] %vm4688, %v4686
      %p4690 = scmp.lt.s32.totalorder %s30, 1
      %s4691 = scalar_select %p4690, %s30, 1
      %s4692 = smul.addr %s4691, 2
      %s4693 = smul.addr %s4692, 8
      %s4694 = scalar_lea.vmem %s19, %s4693
      // Predicated region
      $region97: #{forward.1} parent=95 // pred_check
        %p4695 = pneg %p452
      $region98: #{forward.1} parent=95 // pred_check_branch
        %4697 = sbr.rel (%p4695) target = $region100
      $region99: #{forward.1} parent=95 // pred_region
        _
      $region100: #{forward.1} parent=95 // pred_fallthru
        _
    $region96: #{forward.1} parent=5 // pred_fallthru
      _
    %p4698 = scmp.le.s32.totalorder 2, %s25
    // Predicated region
    $region101: #{forward.1} parent=5 // pred_check
      %p4699 = pneg %p4698
    $region102: #{forward.1} parent=5 // pred_check_branch
      %4701 = sbr.rel (%p4699) target = $region104
    $region103: #{forward.1} parent=5 // pred_region
      %s4702 = ssub.s32 %s25, 2
      // Predicated region
      $region105: #{forward.1} parent=103 // pred_check
        %p4703 = pneg %p458
      $region106: #{forward.1} parent=103 // pred_check_branch
        %4705 = sbr.rel (%p4703) target = $region108
      $region107: #{forward.1} parent=103 // pred_region
        %p4706 = scmp.lt.s32.totalorder %s31, 1
        %s4707 = scalar_select %p4706, %s31, 1
        %s4708 = smul.addr %s4707, 2
        %s4709 = smul.addr %s4708, 8
        %s4710 = scalar_lea.vmem %s19, %s4709
      $region108: #{forward.1} parent=103 // pred_fallthru
        _
    $region104: #{forward.1} parent=5 // pred_fallthru
      _
  $region6: #{forward.1} parent=0 // loop_footer
    %s29 = sadd.s32 1, %s25
  $region7: #{forward.1} parent=0 // loop_footer_branch
    %24 = sbr.rel target = $region3
  $region8: #{forward.1} parent=0 // loop_exit
    _

</llo_original>
